<compile_context>
chip_gen: v7x
topology: tpu7x:2x2x1
jax: 0.10.0
libtpu: 0.0.40
codegen_flags: <defaults>
</compile_context>

<pallas_src>
import jax
import jax.numpy as jnp
from jax.experimental import pallas as pl
from jax.experimental.pallas import tpu as pltpu

COMMON_DIM = 512      # common_dim (module default)
TEXT_DIM = 512        # text_encoder_dim_output
CNN_DIM = 512         # cnn_dim_output
BN_EPS = 1e-5
OUT_PAD = 128         # lane-dense padded classifier width


def _multimodal_kernel(gap_ref, txt_ref,
                       we_ref, be_ref,
                       wi1_ref, bi1_ref, wi2_ref, bi2_ref,
                       wt1_ref, bt1_ref, wt2_ref, bt2_ref,
                       wf1a_ref, wf1b_ref, bf1_ref,
                       wf2_ref, bf2_ref,
                       wf3_ref, bf3_ref,
                       out_ref):
    f32 = jnp.float32
    bf16 = jnp.bfloat16

    # ---- image encoder stub: (GAP done in wrapper) -> Linear(C -> CNN_DIM)
    vis_feat = jnp.dot(gap_ref[...], we_ref[...],
                       preferred_element_type=f32) + be_ref[...]

    # ---- image_projector: Linear -> ReLU -> Linear
    h = jnp.dot(vis_feat.astype(bf16), wi1_ref[...],
                preferred_element_type=f32) + bi1_ref[...]
    h = jnp.maximum(h, 0.0)
    vis_proj = jnp.dot(h.astype(bf16), wi2_ref[...],
                       preferred_element_type=f32) + bi2_ref[...]

    # ---- text path (metadata is NOT a dict -> txt_feat = metadata.float())
    h = jnp.dot(txt_ref[...], wt1_ref[...],
                preferred_element_type=f32) + bt1_ref[...]
    h = jnp.maximum(h, 0.0)
    txt_proj = jnp.dot(h.astype(bf16), wt2_ref[...],
                       preferred_element_type=f32) + bt2_ref[...]

    # ---- fusion MLP (concat removed; BN folded into weights/biases)
    x = (jnp.dot(vis_proj.astype(bf16), wf1a_ref[...], preferred_element_type=f32)
         + jnp.dot(txt_proj.astype(bf16), wf1b_ref[...], preferred_element_type=f32)
         + bf1_ref[...])
    x = jnp.maximum(x, 0.0)

    x = jnp.dot(x.astype(bf16), wf2_ref[...],
                preferred_element_type=f32) + bf2_ref[...]
    x = jnp.maximum(x, 0.0)

    out_ref[...] = jnp.dot(x.astype(bf16), wf3_ref[...],
                           preferred_element_type=f32) + bf3_ref[...]


def init_params(key, num_classes=8, in_channels=4):
    """Deterministic synthetic parameters with the shapes implied by __init__."""
    ks = list(jax.random.split(key, 12))

    def lin(k, din, dout, scale=0.02):
        kw, kb = jax.random.split(k)
        w = jax.random.normal(kw, (din, dout), jnp.float32) * scale
        b = jax.random.normal(kb, (1, dout), jnp.float32) * scale
        return w, b

    def bn(k, dim):
        kg, kb = jax.random.split(k)
        gamma = 1.0 + 0.1 * jax.random.normal(kg, (1, dim), jnp.float32)
        beta = 0.1 * jax.random.normal(kb, (1, dim), jnp.float32)
        # fresh nn.BatchNorm1d running stats: mean=0, var=1
        mean = jnp.zeros((1, dim), jnp.float32)
        var = jnp.ones((1, dim), jnp.float32)
        return gamma, beta, mean, var

    p = {}
    p["we"], p["be"] = lin(ks[0], in_channels, CNN_DIM)           # image encoder stub
    p["wi1"], p["bi1"] = lin(ks[1], CNN_DIM, COMMON_DIM)          # image_projector[0]
    p["wi2"], p["bi2"] = lin(ks[2], COMMON_DIM, COMMON_DIM)       # image_projector[2]
    p["wt1"], p["bt1"] = lin(ks[3], TEXT_DIM, COMMON_DIM)         # text_projector[0]
    p["wt2"], p["bt2"] = lin(ks[4], COMMON_DIM, COMMON_DIM)       # text_projector[2]
    p["wf1"], p["bf1"] = lin(ks[5], COMMON_DIM * 2, COMMON_DIM)   # fc_fusion Linear 1 (n=2)
    p["g1"], p["b1"], p["m1"], p["v1"] = bn(ks[6], COMMON_DIM)    # BatchNorm1d(512)
    p["wf2"], p["bf2"] = lin(ks[7], COMMON_DIM, COMMON_DIM // 2)  # fc_fusion Linear 2
    p["g2"], p["b2"], p["m2"], p["v2"] = bn(ks[8], COMMON_DIM // 2)  # BatchNorm1d(256)
    p["wf3"], p["bf3"] = lin(ks[9], COMMON_DIM // 2, num_classes)  # final classifier
    return p


def _fold_bn(w, b, gamma, beta, mean, var, eps=BN_EPS):
    """Fold an eval-mode BatchNorm1d into the preceding Linear."""
    scale = gamma * jax.lax.rsqrt(var + eps)          # (1, dim)
    return w * scale, (b - mean) * scale + beta


def _prepare_kernel_args(params):
    """Fold BN, split wf1, pad classifier to lane-dense width, cast weights bf16."""
    f32, bf16 = jnp.float32, jnp.bfloat16

    wf1, bf1 = _fold_bn(params["wf1"], params["bf1"], params["g1"], params["b1"],
                        params["m1"], params["v1"])
    wf2, bf2 = _fold_bn(params["wf2"], params["bf2"], params["g2"], params["b2"],
                        params["m2"], params["v2"])
    wf1a, wf1b = wf1[:COMMON_DIM], wf1[COMMON_DIM:]

    nc = params["wf3"].shape[1]
    wf3 = jnp.zeros((COMMON_DIM // 2, OUT_PAD), f32).at[:, :nc].set(params["wf3"])
    bf3 = jnp.zeros((1, OUT_PAD), f32).at[:, :nc].set(params["bf3"])

    def w(x):
        return x.astype(bf16)

    return (
        w(params["we"]), params["be"].astype(f32),
        w(params["wi1"]), params["bi1"].astype(f32),
        w(params["wi2"]), params["bi2"].astype(f32),
        w(params["wt1"]), params["bt1"].astype(f32),
        w(params["wt2"]), params["bt2"].astype(f32),
        w(wf1a), w(wf1b), bf1.astype(f32),
        w(wf2), bf2.astype(f32),
        w(wf3), bf3.astype(f32),
    )


def _round_up(x, m):
    return ((x + m - 1) // m) * m


def multimodal_forward(images, metadata, params, *, max_tile_m=128):
    """images: (B, C, H, W) NCHW; metadata: (B, TEXT_DIM) precomputed text features."""
    B, C, _, _ = images.shape
    num_classes = params["wf3"].shape[1]

    # Global average pool in XLA: raw image never enters the kernel's VMEM.
    gap = images.astype(jnp.float32).mean(axis=(2, 3))            # (B, C)
    txt = metadata.astype(jnp.float32)                            # (B, TEXT_DIM)

    # Batch tiling: multiple of 8 (f32 sublane); 128 rows fills the MXU.
    tile_m = min(max_tile_m, _round_up(B, 8))
    bp = _round_up(B, tile_m)
    gap = jnp.pad(gap, ((0, bp - B), (0, 0))).astype(jnp.bfloat16)
    txt = jnp.pad(txt, ((0, bp - B), (0, 0))).astype(jnp.bfloat16)

    weights = _prepare_kernel_args(params)

    act_specs = [
        pl.BlockSpec((tile_m, C), lambda i: (i, 0)),
        pl.BlockSpec((tile_m, TEXT_DIM), lambda i: (i, 0)),
    ]
    # Weights/biases: full-array blocks, constant block index -> stay VMEM-resident.
    w_specs = [pl.BlockSpec(wa.shape, lambda i: (0, 0)) for wa in weights]
    out_spec = pl.BlockSpec((tile_m, OUT_PAD), lambda i: (i, 0))

    # Modest, explicitly computed VMEM request (double buffers + headroom);
    # stays well under v7x's 64 MiB physical VMEM.
    weight_bytes = sum(int(x.size) * x.dtype.itemsize for x in weights)
    act_bytes = (tile_m * C + tile_m * TEXT_DIM) * 2            # bf16 activation tiles
    out_bytes = tile_m * OUT_PAD * 4
    vmem_bytes = min(2 * (weight_bytes + act_bytes + out_bytes) + (8 << 20), 32 << 20)

    out = pl.pallas_call(
        _multimodal_kernel,
        out_shape=jax.ShapeDtypeStruct((bp, OUT_PAD), jnp.float32),
        grid=(bp // tile_m,),
        in_specs=act_specs + w_specs,
        out_specs=out_spec,
        compiler_params=pltpu.CompilerParams(
            dimension_semantics=("parallel",),
            vmem_limit_bytes=vmem_bytes,
        ),
    )(gap, txt, *weights)

    return out[:B, :num_classes]


if __name__ == "__main__":
    key = jax.random.PRNGKey(0)
    k_img, k_txt, k_par = jax.random.split(key, 3)

    B, C, H, W = 2, 4, 16, 16
    num_classes = 8

    images = jax.random.normal(k_img, (B, C, H, W), jnp.float32)     # NCHW
    metadata = jax.random.normal(k_txt, (B, TEXT_DIM), jnp.float32)  # precomputed text feats
    params = init_params(k_par, num_classes=num_classes, in_channels=C)

    logits = multimodal_forward(images, metadata, params)
    jax.block_until_ready(logits)
    assert logits.shape == (B, num_classes), logits.shape
    assert bool(jnp.all(jnp.isfinite(logits)))
    print("KERNEL_OK")
</pallas_src>

<mosaic_0001>
module attributes {stable_mosaic.version = 11 : i64} {
  func.func @_multimodal_kernel(%arg0: i32, %arg1: memref<8x4xbf16, #tpu.memory_space<vmem>>, %arg2: memref<8x512xbf16, #tpu.memory_space<vmem>>, %arg3: memref<4x512xbf16, #tpu.memory_space<vmem>>, %arg4: memref<1x512xf32, #tpu.memory_space<vmem>>, %arg5: memref<512x512xbf16, #tpu.memory_space<vmem>>, %arg6: memref<1x512xf32, #tpu.memory_space<vmem>>, %arg7: memref<512x512xbf16, #tpu.memory_space<vmem>>, %arg8: memref<1x512xf32, #tpu.memory_space<vmem>>, %arg9: memref<512x512xbf16, #tpu.memory_space<vmem>>, %arg10: memref<1x512xf32, #tpu.memory_space<vmem>>, %arg11: memref<512x512xbf16, #tpu.memory_space<vmem>>, %arg12: memref<1x512xf32, #tpu.memory_space<vmem>>, %arg13: memref<512x512xbf16, #tpu.memory_space<vmem>>, %arg14: memref<512x512xbf16, #tpu.memory_space<vmem>>, %arg15: memref<1x512xf32, #tpu.memory_space<vmem>>, %arg16: memref<512x256xbf16, #tpu.memory_space<vmem>>, %arg17: memref<1x256xf32, #tpu.memory_space<vmem>>, %arg18: memref<256x128xbf16, #tpu.memory_space<vmem>>, %arg19: memref<1x128xf32, #tpu.memory_space<vmem>>, %arg20: memref<8x128xf32, #tpu.memory_space<vmem>>) attributes {dimension_semantics = [#tpu.dimension_semantics<parallel>], iteration_bounds = array<i64: 1>, scalar_prefetch = 0 : i64, scratch_operands = 0 : i64, tpu.core_type = #tpu.core_type<tc>, window_params = [{transform_indices = @transform_0, window_bounds = array<i64: 8, 4>}, {transform_indices = @transform_1, window_bounds = array<i64: 8, 512>}, {pipeline_mode = #tpu.pipeline_mode<synchronous>, transform_indices = @transform_2, window_bounds = array<i64: 4, 512>}, {pipeline_mode = #tpu.pipeline_mode<synchronous>, transform_indices = @transform_3, window_bounds = array<i64: 1, 512>}, {pipeline_mode = #tpu.pipeline_mode<synchronous>, transform_indices = @transform_4, window_bounds = array<i64: 512, 512>}, {pipeline_mode = #tpu.pipeline_mode<synchronous>, transform_indices = @transform_5, window_bounds = array<i64: 1, 512>}, {pipeline_mode = #tpu.pipeline_mode<synchronous>, transform_indices = @transform_6, window_bounds = array<i64: 512, 512>}, {pipeline_mode = #tpu.pipeline_mode<synchronous>, transform_indices = @transform_7, window_bounds = array<i64: 1, 512>}, {pipeline_mode = #tpu.pipeline_mode<synchronous>, transform_indices = @transform_8, window_bounds = array<i64: 512, 512>}, {pipeline_mode = #tpu.pipeline_mode<synchronous>, transform_indices = @transform_9, window_bounds = array<i64: 1, 512>}, {pipeline_mode = #tpu.pipeline_mode<synchronous>, transform_indices = @transform_10, window_bounds = array<i64: 512, 512>}, {pipeline_mode = #tpu.pipeline_mode<synchronous>, transform_indices = @transform_11, window_bounds = array<i64: 1, 512>}, {pipeline_mode = #tpu.pipeline_mode<synchronous>, transform_indices = @transform_12, window_bounds = array<i64: 512, 512>}, {pipeline_mode = #tpu.pipeline_mode<synchronous>, transform_indices = @transform_13, window_bounds = array<i64: 512, 512>}, {pipeline_mode = #tpu.pipeline_mode<synchronous>, transform_indices = @transform_14, window_bounds = array<i64: 1, 512>}, {pipeline_mode = #tpu.pipeline_mode<synchronous>, transform_indices = @transform_15, window_bounds = array<i64: 512, 256>}, {pipeline_mode = #tpu.pipeline_mode<synchronous>, transform_indices = @transform_16, window_bounds = array<i64: 1, 256>}, {pipeline_mode = #tpu.pipeline_mode<synchronous>, transform_indices = @transform_17, window_bounds = array<i64: 256, 128>}, {pipeline_mode = #tpu.pipeline_mode<synchronous>, transform_indices = @transform_18, window_bounds = array<i64: 1, 128>}, {transform_indices = @transform_19, window_bounds = array<i64: 8, 128>}]} {
    %c0 = arith.constant 0 : index
    %c0_0 = arith.constant 0 : index
    %0 = vector.load %arg1[%c0, %c0_0] : memref<8x4xbf16, #tpu.memory_space<vmem>>, vector<8x4xbf16>
    %c0_1 = arith.constant 0 : index
    %c0_2 = arith.constant 0 : index
    %1 = vector.load %arg3[%c0_1, %c0_2] : memref<4x512xbf16, #tpu.memory_space<vmem>>, vector<4x512xbf16>
    %cst = arith.constant dense<0.000000e+00> : vector<8x512xf32>
    %2 = tpu.matmul %0, %1, %cst {dimension_numbers = #tpu.dot_dimension_numbers<[1], [0], [0], [1], [0, 0, 1, 1], [], []>} : vector<8x4xbf16>, vector<4x512xbf16>, vector<8x512xf32> -> vector<8x512xf32>
    %c0_3 = arith.constant 0 : index
    %c0_4 = arith.constant 0 : index
    %3 = vector.load %arg4[%c0_3, %c0_4] : memref<1x512xf32, #tpu.memory_space<vmem>>, vector<1x512xf32>
    %4 = vector.broadcast %3 : vector<1x512xf32> to vector<8x512xf32>
    %5 = arith.addf %2, %4 : vector<8x512xf32>
    %6 = arith.truncf %5 : vector<8x512xf32> to vector<8x512xbf16>
    %c0_5 = arith.constant 0 : index
    %c0_6 = arith.constant 0 : index
    %7 = vector.load %arg5[%c0_5, %c0_6] : memref<512x512xbf16, #tpu.memory_space<vmem>>, vector<512x512xbf16>
    %cst_7 = arith.constant dense<0.000000e+00> : vector<8x512xf32>
    %8 = tpu.matmul %6, %7, %cst_7 {dimension_numbers = #tpu.dot_dimension_numbers<[1], [0], [0], [1], [0, 0, 1, 1], [], []>} : vector<8x512xbf16>, vector<512x512xbf16>, vector<8x512xf32> -> vector<8x512xf32>
    %c0_8 = arith.constant 0 : index
    %c0_9 = arith.constant 0 : index
    %9 = vector.load %arg6[%c0_8, %c0_9] : memref<1x512xf32, #tpu.memory_space<vmem>>, vector<1x512xf32>
    %10 = vector.broadcast %9 : vector<1x512xf32> to vector<8x512xf32>
    %11 = arith.addf %8, %10 : vector<8x512xf32>
    %cst_10 = arith.constant 0.000000e+00 : f32
    %12 = vector.broadcast %cst_10 : f32 to vector<8x512xf32>
    %13 = arith.maximumf %11, %12 : vector<8x512xf32>
    %14 = arith.truncf %13 : vector<8x512xf32> to vector<8x512xbf16>
    %c0_11 = arith.constant 0 : index
    %c0_12 = arith.constant 0 : index
    %15 = vector.load %arg7[%c0_11, %c0_12] : memref<512x512xbf16, #tpu.memory_space<vmem>>, vector<512x512xbf16>
    %cst_13 = arith.constant dense<0.000000e+00> : vector<8x512xf32>
    %16 = tpu.matmul %14, %15, %cst_13 {dimension_numbers = #tpu.dot_dimension_numbers<[1], [0], [0], [1], [0, 0, 1, 1], [], []>} : vector<8x512xbf16>, vector<512x512xbf16>, vector<8x512xf32> -> vector<8x512xf32>
    %c0_14 = arith.constant 0 : index
    %c0_15 = arith.constant 0 : index
    %17 = vector.load %arg8[%c0_14, %c0_15] : memref<1x512xf32, #tpu.memory_space<vmem>>, vector<1x512xf32>
    %18 = vector.broadcast %17 : vector<1x512xf32> to vector<8x512xf32>
    %19 = arith.addf %16, %18 : vector<8x512xf32>
    %c0_16 = arith.constant 0 : index
    %c0_17 = arith.constant 0 : index
    %20 = vector.load %arg2[%c0_16, %c0_17] : memref<8x512xbf16, #tpu.memory_space<vmem>>, vector<8x512xbf16>
    %c0_18 = arith.constant 0 : index
    %c0_19 = arith.constant 0 : index
    %21 = vector.load %arg9[%c0_18, %c0_19] : memref<512x512xbf16, #tpu.memory_space<vmem>>, vector<512x512xbf16>
    %cst_20 = arith.constant dense<0.000000e+00> : vector<8x512xf32>
    %22 = tpu.matmul %20, %21, %cst_20 {dimension_numbers = #tpu.dot_dimension_numbers<[1], [0], [0], [1], [0, 0, 1, 1], [], []>} : vector<8x512xbf16>, vector<512x512xbf16>, vector<8x512xf32> -> vector<8x512xf32>
    %c0_21 = arith.constant 0 : index
    %c0_22 = arith.constant 0 : index
    %23 = vector.load %arg10[%c0_21, %c0_22] : memref<1x512xf32, #tpu.memory_space<vmem>>, vector<1x512xf32>
    %24 = vector.broadcast %23 : vector<1x512xf32> to vector<8x512xf32>
    %25 = arith.addf %22, %24 : vector<8x512xf32>
    %cst_23 = arith.constant 0.000000e+00 : f32
    %26 = vector.broadcast %cst_23 : f32 to vector<8x512xf32>
    %27 = arith.maximumf %25, %26 : vector<8x512xf32>
    %28 = arith.truncf %27 : vector<8x512xf32> to vector<8x512xbf16>
    %c0_24 = arith.constant 0 : index
    %c0_25 = arith.constant 0 : index
    %29 = vector.load %arg11[%c0_24, %c0_25] : memref<512x512xbf16, #tpu.memory_space<vmem>>, vector<512x512xbf16>
    %cst_26 = arith.constant dense<0.000000e+00> : vector<8x512xf32>
    %30 = tpu.matmul %28, %29, %cst_26 {dimension_numbers = #tpu.dot_dimension_numbers<[1], [0], [0], [1], [0, 0, 1, 1], [], []>} : vector<8x512xbf16>, vector<512x512xbf16>, vector<8x512xf32> -> vector<8x512xf32>
    %c0_27 = arith.constant 0 : index
    %c0_28 = arith.constant 0 : index
    %31 = vector.load %arg12[%c0_27, %c0_28] : memref<1x512xf32, #tpu.memory_space<vmem>>, vector<1x512xf32>
    %32 = vector.broadcast %31 : vector<1x512xf32> to vector<8x512xf32>
    %33 = arith.addf %30, %32 : vector<8x512xf32>
    %34 = arith.truncf %19 : vector<8x512xf32> to vector<8x512xbf16>
    %c0_29 = arith.constant 0 : index
    %c0_30 = arith.constant 0 : index
    %35 = vector.load %arg13[%c0_29, %c0_30] : memref<512x512xbf16, #tpu.memory_space<vmem>>, vector<512x512xbf16>
    %cst_31 = arith.constant dense<0.000000e+00> : vector<8x512xf32>
    %36 = tpu.matmul %34, %35, %cst_31 {dimension_numbers = #tpu.dot_dimension_numbers<[1], [0], [0], [1], [0, 0, 1, 1], [], []>} : vector<8x512xbf16>, vector<512x512xbf16>, vector<8x512xf32> -> vector<8x512xf32>
    %37 = arith.truncf %33 : vector<8x512xf32> to vector<8x512xbf16>
    %c0_32 = arith.constant 0 : index
    %c0_33 = arith.constant 0 : index
    %38 = vector.load %arg14[%c0_32, %c0_33] : memref<512x512xbf16, #tpu.memory_space<vmem>>, vector<512x512xbf16>
    %cst_34 = arith.constant dense<0.000000e+00> : vector<8x512xf32>
    %39 = tpu.matmul %37, %38, %cst_34 {dimension_numbers = #tpu.dot_dimension_numbers<[1], [0], [0], [1], [0, 0, 1, 1], [], []>} : vector<8x512xbf16>, vector<512x512xbf16>, vector<8x512xf32> -> vector<8x512xf32>
    %40 = arith.addf %36, %39 : vector<8x512xf32>
    %c0_35 = arith.constant 0 : index
    %c0_36 = arith.constant 0 : index
    %41 = vector.load %arg15[%c0_35, %c0_36] : memref<1x512xf32, #tpu.memory_space<vmem>>, vector<1x512xf32>
    %42 = vector.broadcast %41 : vector<1x512xf32> to vector<8x512xf32>
    %43 = arith.addf %40, %42 : vector<8x512xf32>
    %cst_37 = arith.constant 0.000000e+00 : f32
    %44 = vector.broadcast %cst_37 : f32 to vector<8x512xf32>
    %45 = arith.maximumf %43, %44 : vector<8x512xf32>
    %46 = arith.truncf %45 : vector<8x512xf32> to vector<8x512xbf16>
    %c0_38 = arith.constant 0 : index
    %c0_39 = arith.constant 0 : index
    %47 = vector.load %arg16[%c0_38, %c0_39] : memref<512x256xbf16, #tpu.memory_space<vmem>>, vector<512x256xbf16>
    %cst_40 = arith.constant dense<0.000000e+00> : vector<8x256xf32>
    %48 = tpu.matmul %46, %47, %cst_40 {dimension_numbers = #tpu.dot_dimension_numbers<[1], [0], [0], [1], [0, 0, 1, 1], [], []>} : vector<8x512xbf16>, vector<512x256xbf16>, vector<8x256xf32> -> vector<8x256xf32>
    %c0_41 = arith.constant 0 : index
    %c0_42 = arith.constant 0 : index
    %49 = vector.load %arg17[%c0_41, %c0_42] : memref<1x256xf32, #tpu.memory_space<vmem>>, vector<1x256xf32>
    %50 = vector.broadcast %49 : vector<1x256xf32> to vector<8x256xf32>
    %51 = arith.addf %48, %50 : vector<8x256xf32>
    %cst_43 = arith.constant 0.000000e+00 : f32
    %52 = vector.broadcast %cst_43 : f32 to vector<8x256xf32>
    %53 = arith.maximumf %51, %52 : vector<8x256xf32>
    %54 = arith.truncf %53 : vector<8x256xf32> to vector<8x256xbf16>
    %c0_44 = arith.constant 0 : index
    %c0_45 = arith.constant 0 : index
    %55 = vector.load %arg18[%c0_44, %c0_45] : memref<256x128xbf16, #tpu.memory_space<vmem>>, vector<256x128xbf16>
    %cst_46 = arith.constant dense<0.000000e+00> : vector<8x128xf32>
    %56 = tpu.matmul %54, %55, %cst_46 {dimension_numbers = #tpu.dot_dimension_numbers<[1], [0], [0], [1], [0, 0, 1, 1], [], []>} : vector<8x256xbf16>, vector<256x128xbf16>, vector<8x128xf32> -> vector<8x128xf32>
    %c0_47 = arith.constant 0 : index
    %c0_48 = arith.constant 0 : index
    %57 = vector.load %arg19[%c0_47, %c0_48] : memref<1x128xf32, #tpu.memory_space<vmem>>, vector<1x128xf32>
    %58 = vector.broadcast %57 : vector<1x128xf32> to vector<8x128xf32>
    %59 = arith.addf %56, %58 : vector<8x128xf32>
    %c0_49 = arith.constant 0 : index
    %c0_50 = arith.constant 0 : index
    %60 = vector.load %arg20[%c0_49, %c0_50] : memref<8x128xf32, #tpu.memory_space<vmem>>, vector<8x128xf32>
    tpu.vector_store %arg20[%c0_49, %c0_50], %59 {strides = array<i32>} : memref<8x128xf32, #tpu.memory_space<vmem>>, vector<8x128xf32>,
    return
  }
  func.func @transform_0(%arg0: i32) -> (i32, i32) {
    %c0_i32 = arith.constant 0 : i32
    %c0_i32_0 = arith.constant 0 : i32
    return %arg0, %c0_i32 : i32, i32
  }
  func.func @transform_1(%arg0: i32) -> (i32, i32) {
    %c0_i32 = arith.constant 0 : i32
    %c0_i32_0 = arith.constant 0 : i32
    return %arg0, %c0_i32 : i32, i32
  }
  func.func @transform_2(%arg0: i32) -> (i32, i32) {
    %c0_i32 = arith.constant 0 : i32
    %c0_i32_0 = arith.constant 0 : i32
    %c0_i32_1 = arith.constant 0 : i32
    return %c0_i32, %c0_i32_0 : i32, i32
  }
  func.func @transform_3(%arg0: i32) -> (i32, i32) {
    %c0_i32 = arith.constant 0 : i32
    %c0_i32_0 = arith.constant 0 : i32
    %c0_i32_1 = arith.constant 0 : i32
    return %c0_i32, %c0_i32_0 : i32, i32
  }
  func.func @transform_4(%arg0: i32) -> (i32, i32) {
    %c0_i32 = arith.constant 0 : i32
    %c0_i32_0 = arith.constant 0 : i32
    %c0_i32_1 = arith.constant 0 : i32
    return %c0_i32, %c0_i32_0 : i32, i32
  }
  func.func @transform_5(%arg0: i32) -> (i32, i32) {
    %c0_i32 = arith.constant 0 : i32
    %c0_i32_0 = arith.constant 0 : i32
    %c0_i32_1 = arith.constant 0 : i32
    return %c0_i32, %c0_i32_0 : i32, i32
  }
  func.func @transform_6(%arg0: i32) -> (i32, i32) {
    %c0_i32 = arith.constant 0 : i32
    %c0_i32_0 = arith.constant 0 : i32
    %c0_i32_1 = arith.constant 0 : i32
    return %c0_i32, %c0_i32_0 : i32, i32
  }
  func.func @transform_7(%arg0: i32) -> (i32, i32) {
    %c0_i32 = arith.constant 0 : i32
    %c0_i32_0 = arith.constant 0 : i32
    %c0_i32_1 = arith.constant 0 : i32
    return %c0_i32, %c0_i32_0 : i32, i32
  }
  func.func @transform_8(%arg0: i32) -> (i32, i32) {
    %c0_i32 = arith.constant 0 : i32
    %c0_i32_0 = arith.constant 0 : i32
    %c0_i32_1 = arith.constant 0 : i32
    return %c0_i32, %c0_i32_0 : i32, i32
  }
  func.func @transform_9(%arg0: i32) -> (i32, i32) {
    %c0_i32 = arith.constant 0 : i32
    %c0_i32_0 = arith.constant 0 : i32
    %c0_i32_1 = arith.constant 0 : i32
    return %c0_i32, %c0_i32_0 : i32, i32
  }
  func.func @transform_10(%arg0: i32) -> (i32, i32) {
    %c0_i32 = arith.constant 0 : i32
    %c0_i32_0 = arith.constant 0 : i32
    %c0_i32_1 = arith.constant 0 : i32
    return %c0_i32, %c0_i32_0 : i32, i32
  }
  func.func @transform_11(%arg0: i32) -> (i32, i32) {
    %c0_i32 = arith.constant 0 : i32
    %c0_i32_0 = arith.constant 0 : i32
    %c0_i32_1 = arith.constant 0 : i32
    return %c0_i32, %c0_i32_0 : i32, i32
  }
  func.func @transform_12(%arg0: i32) -> (i32, i32) {
    %c0_i32 = arith.constant 0 : i32
    %c0_i32_0 = arith.constant 0 : i32
    %c0_i32_1 = arith.constant 0 : i32
    return %c0_i32, %c0_i32_0 : i32, i32
  }
  func.func @transform_13(%arg0: i32) -> (i32, i32) {
    %c0_i32 = arith.constant 0 : i32
    %c0_i32_0 = arith.constant 0 : i32
    %c0_i32_1 = arith.constant 0 : i32
    return %c0_i32, %c0_i32_0 : i32, i32
  }
  func.func @transform_14(%arg0: i32) -> (i32, i32) {
    %c0_i32 = arith.constant 0 : i32
    %c0_i32_0 = arith.constant 0 : i32
    %c0_i32_1 = arith.constant 0 : i32
    return %c0_i32, %c0_i32_0 : i32, i32
  }
  func.func @transform_15(%arg0: i32) -> (i32, i32) {
    %c0_i32 = arith.constant 0 : i32
    %c0_i32_0 = arith.constant 0 : i32
    %c0_i32_1 = arith.constant 0 : i32
    return %c0_i32, %c0_i32_0 : i32, i32
  }
  func.func @transform_16(%arg0: i32) -> (i32, i32) {
    %c0_i32 = arith.constant 0 : i32
    %c0_i32_0 = arith.constant 0 : i32
    %c0_i32_1 = arith.constant 0 : i32
    return %c0_i32, %c0_i32_0 : i32, i32
  }
  func.func @transform_17(%arg0: i32) -> (i32, i32) {
    %c0_i32 = arith.constant 0 : i32
    %c0_i32_0 = arith.constant 0 : i32
    %c0_i32_1 = arith.constant 0 : i32
    return %c0_i32, %c0_i32_0 : i32, i32
  }
  func.func @transform_18(%arg0: i32) -> (i32, i32) {
    %c0_i32 = arith.constant 0 : i32
    %c0_i32_0 = arith.constant 0 : i32
    %c0_i32_1 = arith.constant 0 : i32
    return %c0_i32, %c0_i32_0 : i32, i32
  }
  func.func @transform_19(%arg0: i32) -> (i32, i32) {
    %c0_i32 = arith.constant 0 : i32
    %c0_i32_0 = arith.constant 0 : i32
    return %arg0, %c0_i32 : i32, i32
  }
}

</mosaic_0001>

<llo_original>
// kernel: tpu_custom_call.1
$region0: #{tpu_custom_call.1}
  #allocation0 [shape = 'u32[]', space=smem, size = 0x4, offset = 0x4, fixed_abs, tag = 'smem constant byte address 0x4 - core index']
  #allocation1 [shape = 'u32[144,128]{1,0:T(1,128)}', space=vmem, size = 0x12000, scoped, tag = 'internal scratch']
  %s0 = inlined_call_operand.vmem [shape: bf16[8,4], index: 0, kind: input, shape index: {}]
  %s1 = inlined_call_operand.hbm [shape: bf16[8,512], index: 1, kind: input, shape index: {}]
  %s2 = inlined_call_operand.vmem [shape: bf16[4,512], index: 2, kind: input, shape index: {}]
  %s3 = inlined_call_operand.vmem [shape: f32[1,512], index: 3, kind: input, shape index: {}]
  %s4 = inlined_call_operand.hbm [shape: bf16[512,512], index: 4, kind: input, shape index: {}]
  %s5 = inlined_call_operand.vmem [shape: f32[1,512], index: 5, kind: input, shape index: {}]
  %s6 = inlined_call_operand.hbm [shape: bf16[512,512], index: 6, kind: input, shape index: {}]
  %s7 = inlined_call_operand.vmem [shape: f32[1,512], index: 7, kind: input, shape index: {}]
  %s8 = inlined_call_operand.hbm [shape: bf16[512,512], index: 8, kind: input, shape index: {}]
  %s9 = inlined_call_operand.vmem [shape: f32[1,512], index: 9, kind: input, shape index: {}]
  %s10 = inlined_call_operand.hbm [shape: bf16[512,512], index: 10, kind: input, shape index: {}]
  %s11 = inlined_call_operand.vmem [shape: f32[1,512], index: 11, kind: input, shape index: {}]
  %s12 = inlined_call_operand.hbm [shape: bf16[512,512], index: 12, kind: input, shape index: {}]
  %s13 = inlined_call_operand.hbm [shape: bf16[512,512], index: 13, kind: input, shape index: {}]
  %s14 = inlined_call_operand.vmem [shape: f32[1,512], index: 14, kind: input, shape index: {}]
  %s15 = inlined_call_operand.hbm [shape: bf16[512,256], index: 15, kind: input, shape index: {}]
  %s16 = inlined_call_operand.vmem [shape: f32[1,256], index: 16, kind: input, shape index: {}]
  %s17 = inlined_call_operand.hbm [shape: bf16[256,128], index: 17, kind: input, shape index: {}]
  %s18 = inlined_call_operand.vmem [shape: f32[1,128], index: 18, kind: input, shape index: {}]
  %s19 = inlined_call_operand.hbm [shape: f32[8,128], index: 19, kind: output, shape index: {}]
  %s20 = sld [smem:[#allocation0]]
  $region122: #{tpu_custom_call.1} parent=0
    _
  %s22 = ssub.s32 1, %s20
  %s23 = scalar_select 0, %s22, %s20
  $region1: #{tpu_custom_call.1} parent=0
    #allocation2 [shape = 'u8[8192]{0}', space=vmem, size = 0x2000, scoped, tag = 'input window, operand 1, single buffered']
    #allocation3 [shape = 's32[1]{0}', space=sflag, size = 0x4, scoped, tag = 'scoped memory for tpu_custom_call.1']
    #allocation4 [shape = 's32[1]{0}', space=sflag, size = 0x4, scoped, tag = 'scoped memory for tpu_custom_call.1']
    #allocation5 [shape = 'u8[524288]{0}', space=vmem, size = 0x80000, scoped, tag = 'input window, operand 4, single buffered']
    #allocation6 [shape = 's32[1]{0}', space=sflag, size = 0x4, scoped, tag = 'scoped memory for tpu_custom_call.1']
    #allocation7 [shape = 'u8[524288]{0}', space=vmem, size = 0x80000, scoped, tag = 'input window, operand 6, single buffered']
    #allocation8 [shape = 'u8[524288]{0}', space=vmem, size = 0x80000, scoped, tag = 'input window, operand 8, single buffered']
    #allocation9 [shape = 's32[1]{0}', space=sflag, size = 0x4, scoped, tag = 'scoped memory for tpu_custom_call.1']
    #allocation10 [shape = 'u8[524288]{0}', space=vmem, size = 0x80000, scoped, tag = 'input window, operand 10, single buffered']
    #allocation11 [shape = 'u8[524288]{0}', space=vmem, size = 0x80000, scoped, tag = 'input window, operand 12, single buffered']
    #allocation12 [shape = 's32[1]{0}', space=sflag, size = 0x4, scoped, tag = 'scoped memory for tpu_custom_call.1']
    #allocation13 [shape = 'u8[524288]{0}', space=vmem, size = 0x80000, scoped, tag = 'input window, operand 13, single buffered']
    #allocation14 [shape = 'u8[262144]{0}', space=vmem, size = 0x40000, scoped, tag = 'input window, operand 15, single buffered']
    #allocation15 [shape = 's32[1]{0}', space=sflag, size = 0x4, scoped, tag = 'scoped memory for tpu_custom_call.1']
    #allocation16 [shape = 'u8[65536]{0}', space=vmem, size = 0x10000, scoped, tag = 'input window, operand 17, single buffered']
    #allocation17 [shape = 'u8[4096]{0}', space=vmem, size = 0x1000, scoped, tag = 'output window, operand 0, single buffered']
    %24 = vsyncpa [#allocation3], 0
    %25 = vsyncpa [#allocation6], 0
    %26 = vsyncpa [#allocation9], 0
    %27 = vsyncpa [#allocation12], 0
    %28 = vsyncpa [#allocation15], 0
    %29 = vsyncpa [#allocation4], 0
    // Predicated region
    $region2: #{tpu_custom_call.1} parent=1 // pred_check
      _
    $region3: #{tpu_custom_call.1} parent=1 // pred_check_branch
      %31 = sbr.rel (0) target = $region5
    $region4: #{tpu_custom_call.1} parent=1 // pred_region
      _
    $region5: #{tpu_custom_call.1} parent=1 // pred_fallthru
      _
    // Predicated region
    $region6: #{tpu_custom_call.1} parent=1 // pred_check
      _
    $region7: #{tpu_custom_call.1} parent=1 // pred_check_branch
      %33 = sbr.rel (0) target = $region9
    $region8: #{tpu_custom_call.1} parent=1 // pred_region
      %s35 = ssub.s32 256, 256
      %36 = vsyncadd [#allocation3], %s35
      %s38 = sshll.u32 [#allocation2], 4
      %s39 = int_to_ptr.vmem [resolvable:$true] %s38
      %41 = dma.hbm_to_vmem [thread:$0]  %s1, 256, %s39, [#allocation3]
    $region9: #{tpu_custom_call.1} parent=1 // pred_fallthru
      _
    // Predicated region
    $region10: #{tpu_custom_call.1} parent=1 // pred_check
      _
    $region11: #{tpu_custom_call.1} parent=1 // pred_check_branch
      %43 = sbr.rel (0) target = $region13
    $region12: #{tpu_custom_call.1} parent=1 // pred_region
      _
    $region13: #{tpu_custom_call.1} parent=1 // pred_fallthru
      _
    // Predicated region
    $region14: #{tpu_custom_call.1} parent=1 // pred_check
      _
    $region15: #{tpu_custom_call.1} parent=1 // pred_check_branch
      %45 = sbr.rel (0) target = $region17
    $region16: #{tpu_custom_call.1} parent=1 // pred_region
      _
    $region17: #{tpu_custom_call.1} parent=1 // pred_fallthru
      _
    // Predicated region
    $region18: #{tpu_custom_call.1} parent=1 // pred_check
      _
    $region19: #{tpu_custom_call.1} parent=1 // pred_check_branch
      %47 = sbr.rel (0) target = $region21
    $region20: #{tpu_custom_call.1} parent=1 // pred_region
      %s49 = ssub.s32 16384, 16384
      %50 = vsyncadd [#allocation6], %s49
      %s51 = sshll.u32 [#allocation5], 4
      %s52 = int_to_ptr.vmem [resolvable:$true] %s51
      %57 = dma.hbm_to_vmem [thread:$0]  %s4, 16384, %s52, [#allocation6], 256, 256, 16
    $region21: #{tpu_custom_call.1} parent=1 // pred_fallthru
      _
    // Predicated region
    $region22: #{tpu_custom_call.1} parent=1 // pred_check
      _
    $region23: #{tpu_custom_call.1} parent=1 // pred_check_branch
      %59 = sbr.rel (0) target = $region25
    $region24: #{tpu_custom_call.1} parent=1 // pred_region
      _
    $region25: #{tpu_custom_call.1} parent=1 // pred_fallthru
      _
    // Predicated region
    $region26: #{tpu_custom_call.1} parent=1 // pred_check
      _
    $region27: #{tpu_custom_call.1} parent=1 // pred_check_branch
      %61 = sbr.rel (0) target = $region29
    $region28: #{tpu_custom_call.1} parent=1 // pred_region
      %s63 = ssub.s32 16384, 16384
      %64 = vsyncadd [#allocation6], %s63
      %s65 = sshll.u32 [#allocation7], 4
      %s66 = int_to_ptr.vmem [resolvable:$true] %s65
      %71 = dma.hbm_to_vmem [thread:$0]  %s6, 16384, %s66, [#allocation6], 256, 256, 16
    $region29: #{tpu_custom_call.1} parent=1 // pred_fallthru
      _
    // Predicated region
    $region30: #{tpu_custom_call.1} parent=1 // pred_check
      _
    $region31: #{tpu_custom_call.1} parent=1 // pred_check_branch
      %73 = sbr.rel (0) target = $region33
    $region32: #{tpu_custom_call.1} parent=1 // pred_region
      _
    $region33: #{tpu_custom_call.1} parent=1 // pred_fallthru
      _
    // Predicated region
    $region34: #{tpu_custom_call.1} parent=1 // pred_check
      _
    $region35: #{tpu_custom_call.1} parent=1 // pred_check_branch
      %75 = sbr.rel (0) target = $region37
    $region36: #{tpu_custom_call.1} parent=1 // pred_region
      %s77 = ssub.s32 16384, 16384
      %78 = vsyncadd [#allocation9], %s77
      %s79 = sshll.u32 [#allocation8], 4
      %s80 = int_to_ptr.vmem [resolvable:$true] %s79
      %85 = dma.hbm_to_vmem [thread:$0]  %s8, 16384, %s80, [#allocation9], 256, 256, 16
    $region37: #{tpu_custom_call.1} parent=1 // pred_fallthru
      _
    // Predicated region
    $region38: #{tpu_custom_call.1} parent=1 // pred_check
      _
    $region39: #{tpu_custom_call.1} parent=1 // pred_check_branch
      %87 = sbr.rel (0) target = $region41
    $region40: #{tpu_custom_call.1} parent=1 // pred_region
      _
    $region41: #{tpu_custom_call.1} parent=1 // pred_fallthru
      _
    // Predicated region
    $region42: #{tpu_custom_call.1} parent=1 // pred_check
      _
    $region43: #{tpu_custom_call.1} parent=1 // pred_check_branch
      %89 = sbr.rel (0) target = $region45
    $region44: #{tpu_custom_call.1} parent=1 // pred_region
      %s91 = ssub.s32 16384, 16384
      %92 = vsyncadd [#allocation9], %s91
      %s93 = sshll.u32 [#allocation10], 4
      %s94 = int_to_ptr.vmem [resolvable:$true] %s93
      %99 = dma.hbm_to_vmem [thread:$0]  %s10, 16384, %s94, [#allocation9], 256, 256, 16
    $region45: #{tpu_custom_call.1} parent=1 // pred_fallthru
      _
    // Predicated region
    $region46: #{tpu_custom_call.1} parent=1 // pred_check
      _
    $region47: #{tpu_custom_call.1} parent=1 // pred_check_branch
      %101 = sbr.rel (0) target = $region49
    $region48: #{tpu_custom_call.1} parent=1 // pred_region
      _
    $region49: #{tpu_custom_call.1} parent=1 // pred_fallthru
      _
    // Predicated region
    $region50: #{tpu_custom_call.1} parent=1 // pred_check
      _
    $region51: #{tpu_custom_call.1} parent=1 // pred_check_branch
      %103 = sbr.rel (0) target = $region53
    $region52: #{tpu_custom_call.1} parent=1 // pred_region
      %s105 = ssub.s32 16384, 16384
      %106 = vsyncadd [#allocation12], %s105
      %s107 = sshll.u32 [#allocation11], 4
      %s108 = int_to_ptr.vmem [resolvable:$true] %s107
      %113 = dma.hbm_to_vmem [thread:$0]  %s12, 16384, %s108, [#allocation12], 256, 256, 16
    $region53: #{tpu_custom_call.1} parent=1 // pred_fallthru
      _
    // Predicated region
    $region54: #{tpu_custom_call.1} parent=1 // pred_check
      _
    $region55: #{tpu_custom_call.1} parent=1 // pred_check_branch
      %115 = sbr.rel (0) target = $region57
    $region56: #{tpu_custom_call.1} parent=1 // pred_region
      %s117 = ssub.s32 16384, 16384
      %118 = vsyncadd [#allocation12], %s117
      %s119 = sshll.u32 [#allocation13], 4
      %s120 = int_to_ptr.vmem [resolvable:$true] %s119
      %125 = dma.hbm_to_vmem [thread:$0]  %s13, 16384, %s120, [#allocation12], 256, 256, 16
    $region57: #{tpu_custom_call.1} parent=1 // pred_fallthru
      _
    // Predicated region
    $region58: #{tpu_custom_call.1} parent=1 // pred_check
      _
    $region59: #{tpu_custom_call.1} parent=1 // pred_check_branch
      %127 = sbr.rel (0) target = $region61
    $region60: #{tpu_custom_call.1} parent=1 // pred_region
      _
    $region61: #{tpu_custom_call.1} parent=1 // pred_fallthru
      _
    // Predicated region
    $region62: #{tpu_custom_call.1} parent=1 // pred_check
      _
    $region63: #{tpu_custom_call.1} parent=1 // pred_check_branch
      %129 = sbr.rel (0) target = $region65
    $region64: #{tpu_custom_call.1} parent=1 // pred_region
      %s131 = ssub.s32 8192, 8192
      %132 = vsyncadd [#allocation15], %s131
      %s133 = sshll.u32 [#allocation14], 4
      %s134 = int_to_ptr.vmem [resolvable:$true] %s133
      %139 = dma.hbm_to_vmem [thread:$0]  %s15, 8192, %s134, [#allocation15], 128, 128, 8
    $region65: #{tpu_custom_call.1} parent=1 // pred_fallthru
      _
    // Predicated region
    $region66: #{tpu_custom_call.1} parent=1 // pred_check
      _
    $region67: #{tpu_custom_call.1} parent=1 // pred_check_branch
      %141 = sbr.rel (0) target = $region69
    $region68: #{tpu_custom_call.1} parent=1 // pred_region
      _
    $region69: #{tpu_custom_call.1} parent=1 // pred_fallthru
      _
    // Predicated region
    $region70: #{tpu_custom_call.1} parent=1 // pred_check
      _
    $region71: #{tpu_custom_call.1} parent=1 // pred_check_branch
      %143 = sbr.rel (0) target = $region73
    $region72: #{tpu_custom_call.1} parent=1 // pred_region
      %s145 = ssub.s32 2048, 2048
      %146 = vsyncadd [#allocation15], %s145
      %s147 = sshll.u32 [#allocation16], 4
      %s148 = int_to_ptr.vmem [resolvable:$true] %s147
      %153 = dma.hbm_to_vmem [thread:$0]  %s17, 2048, %s148, [#allocation15], 64, 64, 4
    $region73: #{tpu_custom_call.1} parent=1 // pred_fallthru
      _
    // Predicated region
    $region74: #{tpu_custom_call.1} parent=1 // pred_check
      _
    $region75: #{tpu_custom_call.1} parent=1 // pred_check_branch
      %155 = sbr.rel (0) target = $region77
    $region76: #{tpu_custom_call.1} parent=1 // pred_region
      _
    $region77: #{tpu_custom_call.1} parent=1 // pred_fallthru
      _
    // Predicated region
    $region78: #{tpu_custom_call.1} parent=1 // pred_check
      _
    $region79: #{tpu_custom_call.1} parent=1 // pred_check_branch
      %157 = sbr.rel (0) target = $region81
    $region80: #{tpu_custom_call.1} parent=1 // pred_region
      %158 = dma.done [#allocation3], 256
    $region81: #{tpu_custom_call.1} parent=1 // pred_fallthru
      _
    // Predicated region
    $region82: #{tpu_custom_call.1} parent=1 // pred_check
      _
    $region83: #{tpu_custom_call.1} parent=1 // pred_check_branch
      %160 = sbr.rel (0) target = $region85
    $region84: #{tpu_custom_call.1} parent=1 // pred_region
      %161 = dma.done [#allocation6], 16384
    $region85: #{tpu_custom_call.1} parent=1 // pred_fallthru
      _
    // Predicated region
    $region86: #{tpu_custom_call.1} parent=1 // pred_check
      _
    $region87: #{tpu_custom_call.1} parent=1 // pred_check_branch
      %163 = sbr.rel (0) target = $region89
    $region88: #{tpu_custom_call.1} parent=1 // pred_region
      %164 = dma.done [#allocation6], 16384
    $region89: #{tpu_custom_call.1} parent=1 // pred_fallthru
      _
    // Predicated region
    $region90: #{tpu_custom_call.1} parent=1 // pred_check
      _
    $region91: #{tpu_custom_call.1} parent=1 // pred_check_branch
      %166 = sbr.rel (0) target = $region93
    $region92: #{tpu_custom_call.1} parent=1 // pred_region
      %167 = dma.done [#allocation9], 16384
    $region93: #{tpu_custom_call.1} parent=1 // pred_fallthru
      _
    // Predicated region
    $region94: #{tpu_custom_call.1} parent=1 // pred_check
      _
    $region95: #{tpu_custom_call.1} parent=1 // pred_check_branch
      %169 = sbr.rel (0) target = $region97
    $region96: #{tpu_custom_call.1} parent=1 // pred_region
      %170 = dma.done [#allocation9], 16384
    $region97: #{tpu_custom_call.1} parent=1 // pred_fallthru
      _
    // Predicated region
    $region98: #{tpu_custom_call.1} parent=1 // pred_check
      _
    $region99: #{tpu_custom_call.1} parent=1 // pred_check_branch
      %172 = sbr.rel (0) target = $region101
    $region100: #{tpu_custom_call.1} parent=1 // pred_region
      %173 = dma.done [#allocation12], 16384
    $region101: #{tpu_custom_call.1} parent=1 // pred_fallthru
      _
    // Predicated region
    $region102: #{tpu_custom_call.1} parent=1 // pred_check
      _
    $region103: #{tpu_custom_call.1} parent=1 // pred_check_branch
      %175 = sbr.rel (0) target = $region105
    $region104: #{tpu_custom_call.1} parent=1 // pred_region
      %176 = dma.done [#allocation12], 16384
    $region105: #{tpu_custom_call.1} parent=1 // pred_fallthru
      _
    // Predicated region
    $region106: #{tpu_custom_call.1} parent=1 // pred_check
      _
    $region107: #{tpu_custom_call.1} parent=1 // pred_check_branch
      %178 = sbr.rel (0) target = $region109
    $region108: #{tpu_custom_call.1} parent=1 // pred_region
      %179 = dma.done [#allocation15], 8192
    $region109: #{tpu_custom_call.1} parent=1 // pred_fallthru
      _
    // Predicated region
    $region110: #{tpu_custom_call.1} parent=1 // pred_check
      _
    $region111: #{tpu_custom_call.1} parent=1 // pred_check_branch
      %181 = sbr.rel (0) target = $region113
    $region112: #{tpu_custom_call.1} parent=1 // pred_region
      %182 = dma.done [#allocation15], 2048
    $region113: #{tpu_custom_call.1} parent=1 // pred_fallthru
      _
    %v184 = vld [vmem:[%s0] sm:$0xf]
    %v185 = vld [vmem:[%s2] sm:$0xff]
    %v186 = vld [vmem:[%s3] sm:$0xf]
    %v188 = vlaneseq
    %v189 = vshrl.u32 %v188, 7
    %v190 = vsub.s32 0, %v189
    %v191 = vrot.slane %v186, %v190
    %v192 = vlaneseq
    %v193 = vshrl.u32 %v192, 7
    %v194 = vsub.s32 1, %v193
    %v195 = vrot.slane %v186, %v194
    %v196 = vlaneseq
    %v197 = vshrl.u32 %v196, 7
    %v198 = vsub.s32 2, %v197
    %v199 = vrot.slane %v186, %v198
    %v200 = vlaneseq
    %v201 = vshrl.u32 %v200, 7
    %v202 = vsub.s32 3, %v201
    %v203 = vrot.slane %v186, %v202
    %v209 = vcombine.high %v185, %v185
    %v211 = vunpack.c.l.s4 1983009808
    %v212 = vunpack.c.0.s8 %v211
    %v213 = vlaneseq
    %v214 = vshrl.u32 %v213, 7
    %v215 = vsub.s32 %v212, %v214
    %v216 = vrot.slane %v185, %v215
    %v218 = vunpack.c.l.s4 1983009808
    %v219 = vunpack.c.0.s8 %v218
    %v220 = vlaneseq
    %v221 = vshrl.u32 %v220, 7
    %v222 = vsub.s32 %v219, %v221
    %v223 = vrot.slane %v209, %v222
    %v224 = vcombine.high %v216, %v216
    %v225 = vcombine.high %v223, %v223
    %vm226 = vcmask 31744
    %v228 = vsel %vm226, %v184, 0
    %vm230 = vcmask 1041408
    %v232 = vsel %vm230, %v216, 0
    %v235 = vsel %vm230, %v224, 0
    %v238 = vsel %vm230, %v223, 0
    %v241 = vsel %vm230, %v225, 0
    %243 = vmatprep.subr.bf16.mxu0 %v235
    %244 = vmatpush1.bf16.msra.mxu0 %v232
    %245 = vmatprep.subr.bf16.mxu0 0
    %246 = vmatpush1.bf16.msra.mxu0 0
    %247 = vmatprep.subr.bf16.mxu0 0
    %248 = vmatpush1.bf16.msra.mxu0 0
    %249 = vmatprep.subr.bf16.mxu0 0
    %250 = vmatpush1.bf16.msra.mxu0 0
    %251 = vmatprep.subr.bf16.mxu0 0
    %252 = vmatpush1.bf16.msra.mxu0 0
    %253 = vmatprep.subr.bf16.mxu0 0
    %254 = vmatpush1.bf16.msra.mxu0 0
    %255 = vmatprep.subr.bf16.mxu0 0
    %256 = vmatpush1.bf16.msra.mxu0 0
    %257 = vmatprep.subr.bf16.mxu0 0
    %258 = vmatpush1.bf16.msra.mxu0 0
    %259 = vmatprep.subr.bf16.mxu0 0
    %260 = vmatpush1.bf16.msra.mxu0 0
    %261 = vmatprep.subr.bf16.mxu0 0
    %262 = vmatpush1.bf16.msra.mxu0 0
    %263 = vmatprep.subr.bf16.mxu0 0
    %264 = vmatpush1.bf16.msra.mxu0 0
    %265 = vmatprep.subr.bf16.mxu0 0
    %266 = vmatpush1.bf16.msra.mxu0 0
    %267 = vmatprep.subr.bf16.mxu0 0
    %268 = vmatpush1.bf16.msra.mxu0 0
    %269 = vmatprep.subr.bf16.mxu0 0
    %270 = vmatpush1.bf16.msra.mxu0 0
    %271 = vmatprep.subr.bf16.mxu0 0
    %272 = vmatpush1.bf16.msra.mxu0 0
    %273 = vmatprep.subr.bf16.mxu0 0
    %274 = vmatpush1.bf16.msra.mxu0 0
    %275 = vmatprep.mubr.bf16.mxu0 0
    %276 = vmatmul.mubr.bf16.gmra.mrb[0].mxu0 %v228
    %v277 = vpop.f32.mrb[0].mxu0
    %v278 = vadd.f32 %v191, %v277
    %v279 = vpop.f32.mrb[0].mxu0
    %v280 = vadd.f32 %v195, %v279
    %v281 = vpop.f32.mrb[0].mxu0
    %v282 = vpop.f32.mrb[0].mxu0
    %283 = vdwg.mxu0
    %284 = vmatprep.subr.bf16.mxu0 %v241
    %285 = vmatpush1.bf16.msra.mxu0 %v238
    %286 = vmatprep.subr.bf16.mxu0 0
    %287 = vmatpush1.bf16.msra.mxu0 0
    %288 = vmatprep.subr.bf16.mxu0 0
    %289 = vmatpush1.bf16.msra.mxu0 0
    %290 = vmatprep.subr.bf16.mxu0 0
    %291 = vmatpush1.bf16.msra.mxu0 0
    %292 = vmatprep.subr.bf16.mxu0 0
    %293 = vmatpush1.bf16.msra.mxu0 0
    %294 = vmatprep.subr.bf16.mxu0 0
    %295 = vmatpush1.bf16.msra.mxu0 0
    %296 = vmatprep.subr.bf16.mxu0 0
    %297 = vmatpush1.bf16.msra.mxu0 0
    %298 = vmatprep.subr.bf16.mxu0 0
    %299 = vmatpush1.bf16.msra.mxu0 0
    %300 = vmatprep.subr.bf16.mxu0 0
    %301 = vmatpush1.bf16.msra.mxu0 0
    %302 = vmatprep.subr.bf16.mxu0 0
    %303 = vmatpush1.bf16.msra.mxu0 0
    %304 = vmatprep.subr.bf16.mxu0 0
    %305 = vmatpush1.bf16.msra.mxu0 0
    %306 = vmatprep.subr.bf16.mxu0 0
    %307 = vmatpush1.bf16.msra.mxu0 0
    %308 = vmatprep.subr.bf16.mxu0 0
    %309 = vmatpush1.bf16.msra.mxu0 0
    %310 = vmatprep.subr.bf16.mxu0 0
    %311 = vmatpush1.bf16.msra.mxu0 0
    %312 = vmatprep.subr.bf16.mxu0 0
    %313 = vmatpush1.bf16.msra.mxu0 0
    %314 = vmatprep.subr.bf16.mxu0 0
    %315 = vmatpush1.bf16.msra.mxu0 0
    %316 = vmatprep.mubr.bf16.mxu0 0
    %317 = vmatmul.mubr.bf16.gmra.mrb[0].mxu0 %v228
    %v318 = vpop.f32.mrb[0].mxu0
    %v319 = vadd.f32 %v199, %v318
    %v320 = vpop.f32.mrb[0].mxu0
    %v321 = vadd.f32 %v203, %v320
    %v322 = vpop.f32.mrb[0].mxu0
    %v323 = vpop.f32.mrb[0].mxu0
    %324 = vdwg.mxu0
    %v325 = vpack.c.bf16 %v278, %v278
    %v326 = vpack.c.bf16 %v280, %v280
    %v327 = vpack.c.bf16 %v319, %v319
    %v328 = vpack.c.bf16 %v321, %v321
    %v329 = vld [vmem:[#allocation5] sm:$0xff]
    %v330 = vld [vmem:[#allocation5 + $0x8] sm:$0xff]
    %v331 = vld [vmem:[#allocation5 + $0x10] sm:$0xff]
    %v332 = vld [vmem:[#allocation5 + $0x18] sm:$0xff]
    %v333 = vld [vmem:[#allocation5 + $0x20] sm:$0xff]
    %v334 = vld [vmem:[#allocation5 + $0x28] sm:$0xff]
    %v335 = vld [vmem:[#allocation5 + $0x30] sm:$0xff]
    %v336 = vld [vmem:[#allocation5 + $0x38] sm:$0xff]
    %v337 = vld [vmem:[#allocation5 + $0x40] sm:$0xff]
    %v338 = vld [vmem:[#allocation5 + $0x48] sm:$0xff]
    %v339 = vld [vmem:[#allocation5 + $0x50] sm:$0xff]
    %v340 = vld [vmem:[#allocation5 + $0x58] sm:$0xff]
    %v341 = vld [vmem:[#allocation5 + $0x60] sm:$0xff]
    %v342 = vld [vmem:[#allocation5 + $0x68] sm:$0xff]
    %v343 = vld [vmem:[#allocation5 + $0x70] sm:$0xff]
    %v344 = vld [vmem:[#allocation5 + $0x78] sm:$0xff]
    %v345 = vld [vmem:[#allocation5 + $0x80] sm:$0xff]
    %v346 = vld [vmem:[#allocation5 + $0x88] sm:$0xff]
    %v347 = vld [vmem:[#allocation5 + $0x90] sm:$0xff]
    %v348 = vld [vmem:[#allocation5 + $0x98] sm:$0xff]
    %v349 = vld [vmem:[#allocation5 + $0xa0] sm:$0xff]
    %v350 = vld [vmem:[#allocation5 + $0xa8] sm:$0xff]
    %v351 = vld [vmem:[#allocation5 + $0xb0] sm:$0xff]
    %v352 = vld [vmem:[#allocation5 + $0xb8] sm:$0xff]
    %v353 = vld [vmem:[#allocation5 + $0xc0] sm:$0xff]
    %v354 = vld [vmem:[#allocation5 + $0xc8] sm:$0xff]
    %v355 = vld [vmem:[#allocation5 + $0xd0] sm:$0xff]
    %v356 = vld [vmem:[#allocation5 + $0xd8] sm:$0xff]
    %v357 = vld [vmem:[#allocation5 + $0xe0] sm:$0xff]
    %v358 = vld [vmem:[#allocation5 + $0xe8] sm:$0xff]
    %v359 = vld [vmem:[#allocation5 + $0xf0] sm:$0xff]
    %v360 = vld [vmem:[#allocation5 + $0xf8] sm:$0xff]
    %v361 = vld [vmem:[#allocation5 + $0x100] sm:$0xff]
    %v362 = vld [vmem:[#allocation5 + $0x108] sm:$0xff]
    %v363 = vld [vmem:[#allocation5 + $0x110] sm:$0xff]
    %v364 = vld [vmem:[#allocation5 + $0x118] sm:$0xff]
    %v365 = vld [vmem:[#allocation5 + $0x120] sm:$0xff]
    %v366 = vld [vmem:[#allocation5 + $0x128] sm:$0xff]
    %v367 = vld [vmem:[#allocation5 + $0x130] sm:$0xff]
    %v368 = vld [vmem:[#allocation5 + $0x138] sm:$0xff]
    %v369 = vld [vmem:[#allocation5 + $0x140] sm:$0xff]
    %v370 = vld [vmem:[#allocation5 + $0x148] sm:$0xff]
    %v371 = vld [vmem:[#allocation5 + $0x150] sm:$0xff]
    %v372 = vld [vmem:[#allocation5 + $0x158] sm:$0xff]
    %v373 = vld [vmem:[#allocation5 + $0x160] sm:$0xff]
    %v374 = vld [vmem:[#allocation5 + $0x168] sm:$0xff]
    %v375 = vld [vmem:[#allocation5 + $0x170] sm:$0xff]
    %v376 = vld [vmem:[#allocation5 + $0x178] sm:$0xff]
    %v377 = vld [vmem:[#allocation5 + $0x180] sm:$0xff]
    %v378 = vld [vmem:[#allocation5 + $0x188] sm:$0xff]
    %v379 = vld [vmem:[#allocation5 + $0x190] sm:$0xff]
    %v380 = vld [vmem:[#allocation5 + $0x198] sm:$0xff]
    %v381 = vld [vmem:[#allocation5 + $0x1a0] sm:$0xff]
    %v382 = vld [vmem:[#allocation5 + $0x1a8] sm:$0xff]
    %v383 = vld [vmem:[#allocation5 + $0x1b0] sm:$0xff]
    %v384 = vld [vmem:[#allocation5 + $0x1b8] sm:$0xff]
    %v385 = vld [vmem:[#allocation5 + $0x1c0] sm:$0xff]
    %v386 = vld [vmem:[#allocation5 + $0x1c8] sm:$0xff]
    %v387 = vld [vmem:[#allocation5 + $0x1d0] sm:$0xff]
    %v388 = vld [vmem:[#allocation5 + $0x1d8] sm:$0xff]
    %v389 = vld [vmem:[#allocation5 + $0x1e0] sm:$0xff]
    %v390 = vld [vmem:[#allocation5 + $0x1e8] sm:$0xff]
    %v391 = vld [vmem:[#allocation5 + $0x1f0] sm:$0xff]
    %v392 = vld [vmem:[#allocation5 + $0x1f8] sm:$0xff]
    %v393 = vld [vmem:[#allocation5 + $0x200] sm:$0xff]
    %v394 = vld [vmem:[#allocation5 + $0x208] sm:$0xff]
    %v395 = vld [vmem:[#allocation5 + $0x210] sm:$0xff]
    %v396 = vld [vmem:[#allocation5 + $0x218] sm:$0xff]
    %v397 = vld [vmem:[#allocation5 + $0x220] sm:$0xff]
    %v398 = vld [vmem:[#allocation5 + $0x228] sm:$0xff]
    %v399 = vld [vmem:[#allocation5 + $0x230] sm:$0xff]
    %v400 = vld [vmem:[#allocation5 + $0x238] sm:$0xff]
    %v401 = vld [vmem:[#allocation5 + $0x240] sm:$0xff]
    %v402 = vld [vmem:[#allocation5 + $0x248] sm:$0xff]
    %v403 = vld [vmem:[#allocation5 + $0x250] sm:$0xff]
    %v404 = vld [vmem:[#allocation5 + $0x258] sm:$0xff]
    %v405 = vld [vmem:[#allocation5 + $0x260] sm:$0xff]
    %v406 = vld [vmem:[#allocation5 + $0x268] sm:$0xff]
    %v407 = vld [vmem:[#allocation5 + $0x270] sm:$0xff]
    %v408 = vld [vmem:[#allocation5 + $0x278] sm:$0xff]
    %v409 = vld [vmem:[#allocation5 + $0x280] sm:$0xff]
    %v410 = vld [vmem:[#allocation5 + $0x288] sm:$0xff]
    %v411 = vld [vmem:[#allocation5 + $0x290] sm:$0xff]
    %v412 = vld [vmem:[#allocation5 + $0x298] sm:$0xff]
    %v413 = vld [vmem:[#allocation5 + $0x2a0] sm:$0xff]
    %v414 = vld [vmem:[#allocation5 + $0x2a8] sm:$0xff]
    %v415 = vld [vmem:[#allocation5 + $0x2b0] sm:$0xff]
    %v416 = vld [vmem:[#allocation5 + $0x2b8] sm:$0xff]
    %v417 = vld [vmem:[#allocation5 + $0x2c0] sm:$0xff]
    %v418 = vld [vmem:[#allocation5 + $0x2c8] sm:$0xff]
    %v419 = vld [vmem:[#allocation5 + $0x2d0] sm:$0xff]
    %v420 = vld [vmem:[#allocation5 + $0x2d8] sm:$0xff]
    %v421 = vld [vmem:[#allocation5 + $0x2e0] sm:$0xff]
    %v422 = vld [vmem:[#allocation5 + $0x2e8] sm:$0xff]
    %v423 = vld [vmem:[#allocation5 + $0x2f0] sm:$0xff]
    %v424 = vld [vmem:[#allocation5 + $0x2f8] sm:$0xff]
    %v425 = vld [vmem:[#allocation5 + $0x300] sm:$0xff]
    %v426 = vld [vmem:[#allocation5 + $0x308] sm:$0xff]
    %v427 = vld [vmem:[#allocation5 + $0x310] sm:$0xff]
    %v428 = vld [vmem:[#allocation5 + $0x318] sm:$0xff]
    %v429 = vld [vmem:[#allocation5 + $0x320] sm:$0xff]
    %v430 = vld [vmem:[#allocation5 + $0x328] sm:$0xff]
    %v431 = vld [vmem:[#allocation5 + $0x330] sm:$0xff]
    %v432 = vld [vmem:[#allocation5 + $0x338] sm:$0xff]
    %v433 = vld [vmem:[#allocation5 + $0x340] sm:$0xff]
    %v434 = vld [vmem:[#allocation5 + $0x348] sm:$0xff]
    %v435 = vld [vmem:[#allocation5 + $0x350] sm:$0xff]
    %v436 = vld [vmem:[#allocation5 + $0x358] sm:$0xff]
    %v437 = vld [vmem:[#allocation5 + $0x360] sm:$0xff]
    %v438 = vld [vmem:[#allocation5 + $0x368] sm:$0xff]
    %v439 = vld [vmem:[#allocation5 + $0x370] sm:$0xff]
    %v440 = vld [vmem:[#allocation5 + $0x378] sm:$0xff]
    %v441 = vld [vmem:[#allocation5 + $0x380] sm:$0xff]
    %v442 = vld [vmem:[#allocation5 + $0x388] sm:$0xff]
    %v443 = vld [vmem:[#allocation5 + $0x390] sm:$0xff]
    %v444 = vld [vmem:[#allocation5 + $0x398] sm:$0xff]
    %v445 = vld [vmem:[#allocation5 + $0x3a0] sm:$0xff]
    %v446 = vld [vmem:[#allocation5 + $0x3a8] sm:$0xff]
    %v447 = vld [vmem:[#allocation5 + $0x3b0] sm:$0xff]
    %v448 = vld [vmem:[#allocation5 + $0x3b8] sm:$0xff]
    %v449 = vld [vmem:[#allocation5 + $0x3c0] sm:$0xff]
    %v450 = vld [vmem:[#allocation5 + $0x3c8] sm:$0xff]
    %v451 = vld [vmem:[#allocation5 + $0x3d0] sm:$0xff]
    %v452 = vld [vmem:[#allocation5 + $0x3d8] sm:$0xff]
    %v453 = vld [vmem:[#allocation5 + $0x3e0] sm:$0xff]
    %v454 = vld [vmem:[#allocation5 + $0x3e8] sm:$0xff]
    %v455 = vld [vmem:[#allocation5 + $0x3f0] sm:$0xff]
    %v456 = vld [vmem:[#allocation5 + $0x3f8] sm:$0xff]
    %v457 = vld [vmem:[%s5] sm:$0xf]
    %v459 = vlaneseq
    %v460 = vshrl.u32 %v459, 7
    %v461 = vsub.s32 0, %v460
    %v462 = vrot.slane %v457, %v461
    %v463 = vlaneseq
    %v464 = vshrl.u32 %v463, 7
    %v465 = vsub.s32 1, %v464
    %v466 = vrot.slane %v457, %v465
    %v467 = vlaneseq
    %v468 = vshrl.u32 %v467, 7
    %v469 = vsub.s32 2, %v468
    %v470 = vrot.slane %v457, %v469
    %v471 = vlaneseq
    %v472 = vshrl.u32 %v471, 7
    %v473 = vsub.s32 3, %v472
    %v474 = vrot.slane %v457, %v473
    %v607 = vunpack.c.l.b16 %v329
    %v608 = vunpack.c.h.b16 %v329
    %v609 = vunpack.c.l.b16 %v330
    %v610 = vunpack.c.h.b16 %v330
    %v611 = vunpack.c.l.b16 %v331
    %v612 = vunpack.c.h.b16 %v331
    %v613 = vunpack.c.l.b16 %v332
    %v614 = vunpack.c.h.b16 %v332
    %v615 = vunpack.c.l.b16 %v333
    %v616 = vunpack.c.h.b16 %v333
    %v617 = vunpack.c.l.b16 %v334
    %v618 = vunpack.c.h.b16 %v334
    %v619 = vunpack.c.l.b16 %v335
    %v620 = vunpack.c.h.b16 %v335
    %v621 = vunpack.c.l.b16 %v336
    %v622 = vunpack.c.h.b16 %v336
    %v623 = vunpack.c.l.b16 %v337
    %v624 = vunpack.c.h.b16 %v337
    %v625 = vunpack.c.l.b16 %v338
    %v626 = vunpack.c.h.b16 %v338
    %v627 = vunpack.c.l.b16 %v339
    %v628 = vunpack.c.h.b16 %v339
    %v629 = vunpack.c.l.b16 %v340
    %v630 = vunpack.c.h.b16 %v340
    %v631 = vunpack.c.l.b16 %v341
    %v632 = vunpack.c.h.b16 %v341
    %v633 = vunpack.c.l.b16 %v342
    %v634 = vunpack.c.h.b16 %v342
    %v635 = vunpack.c.l.b16 %v343
    %v636 = vunpack.c.h.b16 %v343
    %v637 = vunpack.c.l.b16 %v344
    %v638 = vunpack.c.h.b16 %v344
    %v639 = vunpack.c.l.b16 %v345
    %v640 = vunpack.c.h.b16 %v345
    %v641 = vunpack.c.l.b16 %v346
    %v642 = vunpack.c.h.b16 %v346
    %v643 = vunpack.c.l.b16 %v347
    %v644 = vunpack.c.h.b16 %v347
    %v645 = vunpack.c.l.b16 %v348
    %v646 = vunpack.c.h.b16 %v348
    %v647 = vunpack.c.l.b16 %v349
    %v648 = vunpack.c.h.b16 %v349
    %v649 = vunpack.c.l.b16 %v350
    %v650 = vunpack.c.h.b16 %v350
    %v651 = vunpack.c.l.b16 %v351
    %v652 = vunpack.c.h.b16 %v351
    %v653 = vunpack.c.l.b16 %v352
    %v654 = vunpack.c.h.b16 %v352
    %v655 = vunpack.c.l.b16 %v353
    %v656 = vunpack.c.h.b16 %v353
    %v657 = vunpack.c.l.b16 %v354
    %v658 = vunpack.c.h.b16 %v354
    %v659 = vunpack.c.l.b16 %v355
    %v660 = vunpack.c.h.b16 %v355
    %v661 = vunpack.c.l.b16 %v356
    %v662 = vunpack.c.h.b16 %v356
    %v663 = vunpack.c.l.b16 %v357
    %v664 = vunpack.c.h.b16 %v357
    %v665 = vunpack.c.l.b16 %v358
    %v666 = vunpack.c.h.b16 %v358
    %v667 = vunpack.c.l.b16 %v359
    %v668 = vunpack.c.h.b16 %v359
    %v669 = vunpack.c.l.b16 %v360
    %v670 = vunpack.c.h.b16 %v360
    %v671 = vunpack.c.l.b16 %v361
    %v672 = vunpack.c.h.b16 %v361
    %v673 = vunpack.c.l.b16 %v362
    %v674 = vunpack.c.h.b16 %v362
    %v675 = vunpack.c.l.b16 %v363
    %v676 = vunpack.c.h.b16 %v363
    %v677 = vunpack.c.l.b16 %v364
    %v678 = vunpack.c.h.b16 %v364
    %v679 = vunpack.c.l.b16 %v365
    %v680 = vunpack.c.h.b16 %v365
    %v681 = vunpack.c.l.b16 %v366
    %v682 = vunpack.c.h.b16 %v366
    %v683 = vunpack.c.l.b16 %v367
    %v684 = vunpack.c.h.b16 %v367
    %v685 = vunpack.c.l.b16 %v368
    %v686 = vunpack.c.h.b16 %v368
    %v687 = vunpack.c.l.b16 %v369
    %v688 = vunpack.c.h.b16 %v369
    %v689 = vunpack.c.l.b16 %v370
    %v690 = vunpack.c.h.b16 %v370
    %v691 = vunpack.c.l.b16 %v371
    %v692 = vunpack.c.h.b16 %v371
    %v693 = vunpack.c.l.b16 %v372
    %v694 = vunpack.c.h.b16 %v372
    %v695 = vunpack.c.l.b16 %v373
    %v696 = vunpack.c.h.b16 %v373
    %v697 = vunpack.c.l.b16 %v374
    %v698 = vunpack.c.h.b16 %v374
    %v699 = vunpack.c.l.b16 %v375
    %v700 = vunpack.c.h.b16 %v375
    %v701 = vunpack.c.l.b16 %v376
    %v702 = vunpack.c.h.b16 %v376
    %v703 = vunpack.c.l.b16 %v377
    %v704 = vunpack.c.h.b16 %v377
    %v705 = vunpack.c.l.b16 %v378
    %v706 = vunpack.c.h.b16 %v378
    %v707 = vunpack.c.l.b16 %v379
    %v708 = vunpack.c.h.b16 %v379
    %v709 = vunpack.c.l.b16 %v380
    %v710 = vunpack.c.h.b16 %v380
    %v711 = vunpack.c.l.b16 %v381
    %v712 = vunpack.c.h.b16 %v381
    %v713 = vunpack.c.l.b16 %v382
    %v714 = vunpack.c.h.b16 %v382
    %v715 = vunpack.c.l.b16 %v383
    %v716 = vunpack.c.h.b16 %v383
    %v717 = vunpack.c.l.b16 %v384
    %v718 = vunpack.c.h.b16 %v384
    %v719 = vunpack.c.l.b16 %v385
    %v720 = vunpack.c.h.b16 %v385
    %v721 = vunpack.c.l.b16 %v386
    %v722 = vunpack.c.h.b16 %v386
    %v723 = vunpack.c.l.b16 %v387
    %v724 = vunpack.c.h.b16 %v387
    %v725 = vunpack.c.l.b16 %v388
    %v726 = vunpack.c.h.b16 %v388
    %v727 = vunpack.c.l.b16 %v389
    %v728 = vunpack.c.h.b16 %v389
    %v729 = vunpack.c.l.b16 %v390
    %v730 = vunpack.c.h.b16 %v390
    %v731 = vunpack.c.l.b16 %v391
    %v732 = vunpack.c.h.b16 %v391
    %v733 = vunpack.c.l.b16 %v392
    %v734 = vunpack.c.h.b16 %v392
    %v735 = vunpack.c.l.b16 %v393
    %v736 = vunpack.c.h.b16 %v393
    %v737 = vunpack.c.l.b16 %v394
    %v738 = vunpack.c.h.b16 %v394
    %v739 = vunpack.c.l.b16 %v395
    %v740 = vunpack.c.h.b16 %v395
    %v741 = vunpack.c.l.b16 %v396
    %v742 = vunpack.c.h.b16 %v396
    %v743 = vunpack.c.l.b16 %v397
    %v744 = vunpack.c.h.b16 %v397
    %v745 = vunpack.c.l.b16 %v398
    %v746 = vunpack.c.h.b16 %v398
    %v747 = vunpack.c.l.b16 %v399
    %v748 = vunpack.c.h.b16 %v399
    %v749 = vunpack.c.l.b16 %v400
    %v750 = vunpack.c.h.b16 %v400
    %v751 = vunpack.c.l.b16 %v401
    %v752 = vunpack.c.h.b16 %v401
    %v753 = vunpack.c.l.b16 %v402
    %v754 = vunpack.c.h.b16 %v402
    %v755 = vunpack.c.l.b16 %v403
    %v756 = vunpack.c.h.b16 %v403
    %v757 = vunpack.c.l.b16 %v404
    %v758 = vunpack.c.h.b16 %v404
    %v759 = vunpack.c.l.b16 %v405
    %v760 = vunpack.c.h.b16 %v405
    %v761 = vunpack.c.l.b16 %v406
    %v762 = vunpack.c.h.b16 %v406
    %v763 = vunpack.c.l.b16 %v407
    %v764 = vunpack.c.h.b16 %v407
    %v765 = vunpack.c.l.b16 %v408
    %v766 = vunpack.c.h.b16 %v408
    %v767 = vunpack.c.l.b16 %v409
    %v768 = vunpack.c.h.b16 %v409
    %v769 = vunpack.c.l.b16 %v410
    %v770 = vunpack.c.h.b16 %v410
    %v771 = vunpack.c.l.b16 %v411
    %v772 = vunpack.c.h.b16 %v411
    %v773 = vunpack.c.l.b16 %v412
    %v774 = vunpack.c.h.b16 %v412
    %v775 = vunpack.c.l.b16 %v413
    %v776 = vunpack.c.h.b16 %v413
    %v777 = vunpack.c.l.b16 %v414
    %v778 = vunpack.c.h.b16 %v414
    %v779 = vunpack.c.l.b16 %v415
    %v780 = vunpack.c.h.b16 %v415
    %v781 = vunpack.c.l.b16 %v416
    %v782 = vunpack.c.h.b16 %v416
    %v783 = vunpack.c.l.b16 %v417
    %v784 = vunpack.c.h.b16 %v417
    %v785 = vunpack.c.l.b16 %v418
    %v786 = vunpack.c.h.b16 %v418
    %v787 = vunpack.c.l.b16 %v419
    %v788 = vunpack.c.h.b16 %v419
    %v789 = vunpack.c.l.b16 %v420
    %v790 = vunpack.c.h.b16 %v420
    %v791 = vunpack.c.l.b16 %v421
    %v792 = vunpack.c.h.b16 %v421
    %v793 = vunpack.c.l.b16 %v422
    %v794 = vunpack.c.h.b16 %v422
    %v795 = vunpack.c.l.b16 %v423
    %v796 = vunpack.c.h.b16 %v423
    %v797 = vunpack.c.l.b16 %v424
    %v798 = vunpack.c.h.b16 %v424
    %v799 = vunpack.c.l.b16 %v425
    %v800 = vunpack.c.h.b16 %v425
    %v801 = vunpack.c.l.b16 %v426
    %v802 = vunpack.c.h.b16 %v426
    %v803 = vunpack.c.l.b16 %v427
    %v804 = vunpack.c.h.b16 %v427
    %v805 = vunpack.c.l.b16 %v428
    %v806 = vunpack.c.h.b16 %v428
    %v807 = vunpack.c.l.b16 %v429
    %v808 = vunpack.c.h.b16 %v429
    %v809 = vunpack.c.l.b16 %v430
    %v810 = vunpack.c.h.b16 %v430
    %v811 = vunpack.c.l.b16 %v431
    %v812 = vunpack.c.h.b16 %v431
    %v813 = vunpack.c.l.b16 %v432
    %v814 = vunpack.c.h.b16 %v432
    %v815 = vunpack.c.l.b16 %v433
    %v816 = vunpack.c.h.b16 %v433
    %v817 = vunpack.c.l.b16 %v434
    %v818 = vunpack.c.h.b16 %v434
    %v819 = vunpack.c.l.b16 %v435
    %v820 = vunpack.c.h.b16 %v435
    %v821 = vunpack.c.l.b16 %v436
    %v822 = vunpack.c.h.b16 %v436
    %v823 = vunpack.c.l.b16 %v437
    %v824 = vunpack.c.h.b16 %v437
    %v825 = vunpack.c.l.b16 %v438
    %v826 = vunpack.c.h.b16 %v438
    %v827 = vunpack.c.l.b16 %v439
    %v828 = vunpack.c.h.b16 %v439
    %v829 = vunpack.c.l.b16 %v440
    %v830 = vunpack.c.h.b16 %v440
    %v831 = vunpack.c.l.b16 %v441
    %v832 = vunpack.c.h.b16 %v441
    %v833 = vunpack.c.l.b16 %v442
    %v834 = vunpack.c.h.b16 %v442
    %v835 = vunpack.c.l.b16 %v443
    %v836 = vunpack.c.h.b16 %v443
    %v837 = vunpack.c.l.b16 %v444
    %v838 = vunpack.c.h.b16 %v444
    %v839 = vunpack.c.l.b16 %v445
    %v840 = vunpack.c.h.b16 %v445
    %v841 = vunpack.c.l.b16 %v446
    %v842 = vunpack.c.h.b16 %v446
    %v843 = vunpack.c.l.b16 %v447
    %v844 = vunpack.c.h.b16 %v447
    %v845 = vunpack.c.l.b16 %v448
    %v846 = vunpack.c.h.b16 %v448
    %v847 = vunpack.c.l.b16 %v449
    %v848 = vunpack.c.h.b16 %v449
    %v849 = vunpack.c.l.b16 %v450
    %v850 = vunpack.c.h.b16 %v450
    %v851 = vunpack.c.l.b16 %v451
    %v852 = vunpack.c.h.b16 %v451
    %v853 = vunpack.c.l.b16 %v452
    %v854 = vunpack.c.h.b16 %v452
    %v855 = vunpack.c.l.b16 %v453
    %v856 = vunpack.c.h.b16 %v453
    %v857 = vunpack.c.l.b16 %v454
    %v858 = vunpack.c.h.b16 %v454
    %v859 = vunpack.c.l.b16 %v455
    %v860 = vunpack.c.h.b16 %v455
    %v861 = vunpack.c.l.b16 %v456
    %v862 = vunpack.c.h.b16 %v456
    %v863 = vpack.c.b16 %v611, %v607
    %v864 = vpack.c.b16 %v612, %v608
    %v865 = vpack.c.b16 %v613, %v609
    %v866 = vpack.c.b16 %v614, %v610
    %v867 = vpack.c.b16 %v619, %v615
    %v868 = vpack.c.b16 %v620, %v616
    %v869 = vpack.c.b16 %v621, %v617
    %v870 = vpack.c.b16 %v622, %v618
    %v871 = vpack.c.b16 %v627, %v623
    %v872 = vpack.c.b16 %v628, %v624
    %v873 = vpack.c.b16 %v629, %v625
    %v874 = vpack.c.b16 %v630, %v626
    %v875 = vpack.c.b16 %v635, %v631
    %v876 = vpack.c.b16 %v636, %v632
    %v877 = vpack.c.b16 %v637, %v633
    %v878 = vpack.c.b16 %v638, %v634
    %v879 = vpack.c.b16 %v643, %v639
    %v880 = vpack.c.b16 %v644, %v640
    %v881 = vpack.c.b16 %v645, %v641
    %v882 = vpack.c.b16 %v646, %v642
    %v883 = vpack.c.b16 %v651, %v647
    %v884 = vpack.c.b16 %v652, %v648
    %v885 = vpack.c.b16 %v653, %v649
    %v886 = vpack.c.b16 %v654, %v650
    %v887 = vpack.c.b16 %v659, %v655
    %v888 = vpack.c.b16 %v660, %v656
    %v889 = vpack.c.b16 %v661, %v657
    %v890 = vpack.c.b16 %v662, %v658
    %v891 = vpack.c.b16 %v667, %v663
    %v892 = vpack.c.b16 %v668, %v664
    %v893 = vpack.c.b16 %v669, %v665
    %v894 = vpack.c.b16 %v670, %v666
    %v895 = vpack.c.b16 %v675, %v671
    %v896 = vpack.c.b16 %v676, %v672
    %v897 = vpack.c.b16 %v677, %v673
    %v898 = vpack.c.b16 %v678, %v674
    %v899 = vpack.c.b16 %v683, %v679
    %v900 = vpack.c.b16 %v684, %v680
    %v901 = vpack.c.b16 %v685, %v681
    %v902 = vpack.c.b16 %v686, %v682
    %v903 = vpack.c.b16 %v691, %v687
    %v904 = vpack.c.b16 %v692, %v688
    %v905 = vpack.c.b16 %v693, %v689
    %v906 = vpack.c.b16 %v694, %v690
    %v907 = vpack.c.b16 %v699, %v695
    %v908 = vpack.c.b16 %v700, %v696
    %v909 = vpack.c.b16 %v701, %v697
    %v910 = vpack.c.b16 %v702, %v698
    %v911 = vpack.c.b16 %v707, %v703
    %v912 = vpack.c.b16 %v708, %v704
    %v913 = vpack.c.b16 %v709, %v705
    %v914 = vpack.c.b16 %v710, %v706
    %v915 = vpack.c.b16 %v715, %v711
    %v916 = vpack.c.b16 %v716, %v712
    %v917 = vpack.c.b16 %v717, %v713
    %v918 = vpack.c.b16 %v718, %v714
    %v919 = vpack.c.b16 %v723, %v719
    %v920 = vpack.c.b16 %v724, %v720
    %v921 = vpack.c.b16 %v725, %v721
    %v922 = vpack.c.b16 %v726, %v722
    %v923 = vpack.c.b16 %v731, %v727
    %v924 = vpack.c.b16 %v732, %v728
    %v925 = vpack.c.b16 %v733, %v729
    %v926 = vpack.c.b16 %v734, %v730
    %v927 = vpack.c.b16 %v739, %v735
    %v928 = vpack.c.b16 %v740, %v736
    %v929 = vpack.c.b16 %v741, %v737
    %v930 = vpack.c.b16 %v742, %v738
    %v931 = vpack.c.b16 %v747, %v743
    %v932 = vpack.c.b16 %v748, %v744
    %v933 = vpack.c.b16 %v749, %v745
    %v934 = vpack.c.b16 %v750, %v746
    %v935 = vpack.c.b16 %v755, %v751
    %v936 = vpack.c.b16 %v756, %v752
    %v937 = vpack.c.b16 %v757, %v753
    %v938 = vpack.c.b16 %v758, %v754
    %v939 = vpack.c.b16 %v763, %v759
    %v940 = vpack.c.b16 %v764, %v760
    %v941 = vpack.c.b16 %v765, %v761
    %v942 = vpack.c.b16 %v766, %v762
    %v943 = vpack.c.b16 %v771, %v767
    %v944 = vpack.c.b16 %v772, %v768
    %v945 = vpack.c.b16 %v773, %v769
    %v946 = vpack.c.b16 %v774, %v770
    %v947 = vpack.c.b16 %v779, %v775
    %v948 = vpack.c.b16 %v780, %v776
    %v949 = vpack.c.b16 %v781, %v777
    %v950 = vpack.c.b16 %v782, %v778
    %v951 = vpack.c.b16 %v787, %v783
    %v952 = vpack.c.b16 %v788, %v784
    %v953 = vpack.c.b16 %v789, %v785
    %v954 = vpack.c.b16 %v790, %v786
    %v955 = vpack.c.b16 %v795, %v791
    %v956 = vpack.c.b16 %v796, %v792
    %v957 = vpack.c.b16 %v797, %v793
    %v958 = vpack.c.b16 %v798, %v794
    %v959 = vpack.c.b16 %v803, %v799
    %v960 = vpack.c.b16 %v804, %v800
    %v961 = vpack.c.b16 %v805, %v801
    %v962 = vpack.c.b16 %v806, %v802
    %v963 = vpack.c.b16 %v811, %v807
    %v964 = vpack.c.b16 %v812, %v808
    %v965 = vpack.c.b16 %v813, %v809
    %v966 = vpack.c.b16 %v814, %v810
    %v967 = vpack.c.b16 %v819, %v815
    %v968 = vpack.c.b16 %v820, %v816
    %v969 = vpack.c.b16 %v821, %v817
    %v970 = vpack.c.b16 %v822, %v818
    %v971 = vpack.c.b16 %v827, %v823
    %v972 = vpack.c.b16 %v828, %v824
    %v973 = vpack.c.b16 %v829, %v825
    %v974 = vpack.c.b16 %v830, %v826
    %v975 = vpack.c.b16 %v835, %v831
    %v976 = vpack.c.b16 %v836, %v832
    %v977 = vpack.c.b16 %v837, %v833
    %v978 = vpack.c.b16 %v838, %v834
    %v979 = vpack.c.b16 %v843, %v839
    %v980 = vpack.c.b16 %v844, %v840
    %v981 = vpack.c.b16 %v845, %v841
    %v982 = vpack.c.b16 %v846, %v842
    %v983 = vpack.c.b16 %v851, %v847
    %v984 = vpack.c.b16 %v852, %v848
    %v985 = vpack.c.b16 %v853, %v849
    %v986 = vpack.c.b16 %v854, %v850
    %v987 = vpack.c.b16 %v859, %v855
    %v988 = vpack.c.b16 %v860, %v856
    %v989 = vpack.c.b16 %v861, %v857
    %v990 = vpack.c.b16 %v862, %v858
    %1119 = vmatprep.subr.bf16.mxu0 %v864
    %1120 = vmatpush1.bf16.msra.mxu0 %v863
    %1121 = vmatprep.subr.bf16.mxu0 %v868
    %1122 = vmatpush1.bf16.msra.mxu0 %v867
    %1123 = vmatprep.subr.bf16.mxu0 %v872
    %1124 = vmatpush1.bf16.msra.mxu0 %v871
    %1125 = vmatprep.subr.bf16.mxu0 %v876
    %1126 = vmatpush1.bf16.msra.mxu0 %v875
    %1127 = vmatprep.subr.bf16.mxu0 %v880
    %1128 = vmatpush1.bf16.msra.mxu0 %v879
    %1129 = vmatprep.subr.bf16.mxu0 %v884
    %1130 = vmatpush1.bf16.msra.mxu0 %v883
    %1131 = vmatprep.subr.bf16.mxu0 %v888
    %1132 = vmatpush1.bf16.msra.mxu0 %v887
    %1133 = vmatprep.subr.bf16.mxu0 %v892
    %1134 = vmatpush1.bf16.msra.mxu0 %v891
    %1135 = vmatprep.subr.bf16.mxu0 %v896
    %1136 = vmatpush1.bf16.msra.mxu0 %v895
    %1137 = vmatprep.subr.bf16.mxu0 %v900
    %1138 = vmatpush1.bf16.msra.mxu0 %v899
    %1139 = vmatprep.subr.bf16.mxu0 %v904
    %1140 = vmatpush1.bf16.msra.mxu0 %v903
    %1141 = vmatprep.subr.bf16.mxu0 %v908
    %1142 = vmatpush1.bf16.msra.mxu0 %v907
    %1143 = vmatprep.subr.bf16.mxu0 %v912
    %1144 = vmatpush1.bf16.msra.mxu0 %v911
    %1145 = vmatprep.subr.bf16.mxu0 %v916
    %1146 = vmatpush1.bf16.msra.mxu0 %v915
    %1147 = vmatprep.subr.bf16.mxu0 %v920
    %1148 = vmatpush1.bf16.msra.mxu0 %v919
    %1149 = vmatprep.subr.bf16.mxu0 %v924
    %1150 = vmatpush1.bf16.msra.mxu0 %v923
    %1151 = vmatprep.mubr.bf16.mxu0 %v326
    %1152 = vmatmul.mubr.bf16.gmra.mrb[0].mxu0 %v325
    %v1153 = vpop.f32.mrb[0].mxu0
    %v1154 = vadd.f32 %v462, %v1153
    %v1155 = vpop.f32.mrb[0].mxu0
    %v1156 = vadd.f32 %v466, %v1155
    %v1157 = vpop.f32.mrb[0].mxu0
    %v1158 = vpop.f32.mrb[0].mxu0
    %1159 = vdwg.mxu0
    %1160 = vmatprep.subr.bf16.mxu0 %v928
    %1161 = vmatpush1.bf16.msra.mxu0 %v927
    %1162 = vmatprep.subr.bf16.mxu0 %v932
    %1163 = vmatpush1.bf16.msra.mxu0 %v931
    %1164 = vmatprep.subr.bf16.mxu0 %v936
    %1165 = vmatpush1.bf16.msra.mxu0 %v935
    %1166 = vmatprep.subr.bf16.mxu0 %v940
    %1167 = vmatpush1.bf16.msra.mxu0 %v939
    %1168 = vmatprep.subr.bf16.mxu0 %v944
    %1169 = vmatpush1.bf16.msra.mxu0 %v943
    %1170 = vmatprep.subr.bf16.mxu0 %v948
    %1171 = vmatpush1.bf16.msra.mxu0 %v947
    %1172 = vmatprep.subr.bf16.mxu0 %v952
    %1173 = vmatpush1.bf16.msra.mxu0 %v951
    %1174 = vmatprep.subr.bf16.mxu0 %v956
    %1175 = vmatpush1.bf16.msra.mxu0 %v955
    %1176 = vmatprep.subr.bf16.mxu0 %v960
    %1177 = vmatpush1.bf16.msra.mxu0 %v959
    %1178 = vmatprep.subr.bf16.mxu0 %v964
    %1179 = vmatpush1.bf16.msra.mxu0 %v963
    %1180 = vmatprep.subr.bf16.mxu0 %v968
    %1181 = vmatpush1.bf16.msra.mxu0 %v967
    %1182 = vmatprep.subr.bf16.mxu0 %v972
    %1183 = vmatpush1.bf16.msra.mxu0 %v971
    %1184 = vmatprep.subr.bf16.mxu0 %v976
    %1185 = vmatpush1.bf16.msra.mxu0 %v975
    %1186 = vmatprep.subr.bf16.mxu0 %v980
    %1187 = vmatpush1.bf16.msra.mxu0 %v979
    %1188 = vmatprep.subr.bf16.mxu0 %v984
    %1189 = vmatpush1.bf16.msra.mxu0 %v983
    %1190 = vmatprep.subr.bf16.mxu0 %v988
    %1191 = vmatpush1.bf16.msra.mxu0 %v987
    %1192 = vmatprep.mubr.bf16.mxu0 %v328
    %1193 = vmatmul.mubr.bf16.gmra.mrb[0].mxu0 %v327
    %v1194 = vpop.f32.mrb[0].mxu0
    %v1195 = vadd.f32 %v1154, %v1194
    %v1196 = vpop.f32.mrb[0].mxu0
    %v1197 = vadd.f32 %v1156, %v1196
    %v1198 = vpop.f32.mrb[0].mxu0
    %v1199 = vpop.f32.mrb[0].mxu0
    %1200 = vdwg.mxu0
    %1201 = vmatprep.subr.bf16.mxu0 %v866
    %1202 = vmatpush1.bf16.msra.mxu0 %v865
    %1203 = vmatprep.subr.bf16.mxu0 %v870
    %1204 = vmatpush1.bf16.msra.mxu0 %v869
    %1205 = vmatprep.subr.bf16.mxu0 %v874
    %1206 = vmatpush1.bf16.msra.mxu0 %v873
    %1207 = vmatprep.subr.bf16.mxu0 %v878
    %1208 = vmatpush1.bf16.msra.mxu0 %v877
    %1209 = vmatprep.subr.bf16.mxu0 %v882
    %1210 = vmatpush1.bf16.msra.mxu0 %v881
    %1211 = vmatprep.subr.bf16.mxu0 %v886
    %1212 = vmatpush1.bf16.msra.mxu0 %v885
    %1213 = vmatprep.subr.bf16.mxu0 %v890
    %1214 = vmatpush1.bf16.msra.mxu0 %v889
    %1215 = vmatprep.subr.bf16.mxu0 %v894
    %1216 = vmatpush1.bf16.msra.mxu0 %v893
    %1217 = vmatprep.subr.bf16.mxu0 %v898
    %1218 = vmatpush1.bf16.msra.mxu0 %v897
    %1219 = vmatprep.subr.bf16.mxu0 %v902
    %1220 = vmatpush1.bf16.msra.mxu0 %v901
    %1221 = vmatprep.subr.bf16.mxu0 %v906
    %1222 = vmatpush1.bf16.msra.mxu0 %v905
    %1223 = vmatprep.subr.bf16.mxu0 %v910
    %1224 = vmatpush1.bf16.msra.mxu0 %v909
    %1225 = vmatprep.subr.bf16.mxu0 %v914
    %1226 = vmatpush1.bf16.msra.mxu0 %v913
    %1227 = vmatprep.subr.bf16.mxu0 %v918
    %1228 = vmatpush1.bf16.msra.mxu0 %v917
    %1229 = vmatprep.subr.bf16.mxu0 %v922
    %1230 = vmatpush1.bf16.msra.mxu0 %v921
    %1231 = vmatprep.subr.bf16.mxu0 %v926
    %1232 = vmatpush1.bf16.msra.mxu0 %v925
    %1233 = vmatprep.mubr.bf16.mxu0 %v326
    %1234 = vmatmul.mubr.bf16.gmra.mrb[0].mxu0 %v325
    %v1235 = vpop.f32.mrb[0].mxu0
    %v1236 = vadd.f32 %v470, %v1235
    %v1237 = vpop.f32.mrb[0].mxu0
    %v1238 = vadd.f32 %v474, %v1237
    %v1239 = vpop.f32.mrb[0].mxu0
    %v1240 = vpop.f32.mrb[0].mxu0
    %1241 = vdwg.mxu0
    %1242 = vmatprep.subr.bf16.mxu0 %v930
    %1243 = vmatpush1.bf16.msra.mxu0 %v929
    %1244 = vmatprep.subr.bf16.mxu0 %v934
    %1245 = vmatpush1.bf16.msra.mxu0 %v933
    %1246 = vmatprep.subr.bf16.mxu0 %v938
    %1247 = vmatpush1.bf16.msra.mxu0 %v937
    %1248 = vmatprep.subr.bf16.mxu0 %v942
    %1249 = vmatpush1.bf16.msra.mxu0 %v941
    %1250 = vmatprep.subr.bf16.mxu0 %v946
    %1251 = vmatpush1.bf16.msra.mxu0 %v945
    %1252 = vmatprep.subr.bf16.mxu0 %v950
    %1253 = vmatpush1.bf16.msra.mxu0 %v949
    %1254 = vmatprep.subr.bf16.mxu0 %v954
    %1255 = vmatpush1.bf16.msra.mxu0 %v953
    %1256 = vmatprep.subr.bf16.mxu0 %v958
    %1257 = vmatpush1.bf16.msra.mxu0 %v957
    %1258 = vmatprep.subr.bf16.mxu0 %v962
    %1259 = vmatpush1.bf16.msra.mxu0 %v961
    %1260 = vmatprep.subr.bf16.mxu0 %v966
    %1261 = vmatpush1.bf16.msra.mxu0 %v965
    %1262 = vmatprep.subr.bf16.mxu0 %v970
    %1263 = vmatpush1.bf16.msra.mxu0 %v969
    %1264 = vmatprep.subr.bf16.mxu0 %v974
    %1265 = vmatpush1.bf16.msra.mxu0 %v973
    %1266 = vmatprep.subr.bf16.mxu0 %v978
    %1267 = vmatpush1.bf16.msra.mxu0 %v977
    %1268 = vmatprep.subr.bf16.mxu0 %v982
    %1269 = vmatpush1.bf16.msra.mxu0 %v981
    %1270 = vmatprep.subr.bf16.mxu0 %v986
    %1271 = vmatpush1.bf16.msra.mxu0 %v985
    %1272 = vmatprep.subr.bf16.mxu0 %v990
    %1273 = vmatpush1.bf16.msra.mxu0 %v989
    %1274 = vmatprep.mubr.bf16.mxu0 %v328
    %1275 = vmatmul.mubr.bf16.gmra.mrb[0].mxu0 %v327
    %v1276 = vpop.f32.mrb[0].mxu0
    %v1277 = vadd.f32 %v1236, %v1276
    %v1278 = vpop.f32.mrb[0].mxu0
    %v1279 = vadd.f32 %v1238, %v1278
    %v1280 = vpop.f32.mrb[0].mxu0
    %v1281 = vpop.f32.mrb[0].mxu0
    %1282 = vdwg.mxu0
    %v1283 = vmax.f32 %v1195, 0.0
    %v1284 = vmax.f32 %v1197, 0.0
    %v1285 = vmax.f32 %v1277, 0.0
    %v1286 = vmax.f32 %v1279, 0.0
    %v1287 = vpack.c.bf16 %v1283, %v1283
    %v1288 = vpack.c.bf16 %v1284, %v1284
    %v1289 = vpack.c.bf16 %v1285, %v1285
    %v1290 = vpack.c.bf16 %v1286, %v1286
    %v1291 = vld [vmem:[#allocation7] sm:$0xff]
    %v1292 = vld [vmem:[#allocation7 + $0x8] sm:$0xff]
    %v1293 = vld [vmem:[#allocation7 + $0x10] sm:$0xff]
    %v1294 = vld [vmem:[#allocation7 + $0x18] sm:$0xff]
    %v1295 = vld [vmem:[#allocation7 + $0x20] sm:$0xff]
    %v1296 = vld [vmem:[#allocation7 + $0x28] sm:$0xff]
    %v1297 = vld [vmem:[#allocation7 + $0x30] sm:$0xff]
    %v1298 = vld [vmem:[#allocation7 + $0x38] sm:$0xff]
    %v1299 = vld [vmem:[#allocation7 + $0x40] sm:$0xff]
    %v1300 = vld [vmem:[#allocation7 + $0x48] sm:$0xff]
    %v1301 = vld [vmem:[#allocation7 + $0x50] sm:$0xff]
    %v1302 = vld [vmem:[#allocation7 + $0x58] sm:$0xff]
    %v1303 = vld [vmem:[#allocation7 + $0x60] sm:$0xff]
    %v1304 = vld [vmem:[#allocation7 + $0x68] sm:$0xff]
    %v1305 = vld [vmem:[#allocation7 + $0x70] sm:$0xff]
    %v1306 = vld [vmem:[#allocation7 + $0x78] sm:$0xff]
    %v1307 = vld [vmem:[#allocation7 + $0x80] sm:$0xff]
    %v1308 = vld [vmem:[#allocation7 + $0x88] sm:$0xff]
    %v1309 = vld [vmem:[#allocation7 + $0x90] sm:$0xff]
    %v1310 = vld [vmem:[#allocation7 + $0x98] sm:$0xff]
    %v1311 = vld [vmem:[#allocation7 + $0xa0] sm:$0xff]
    %v1312 = vld [vmem:[#allocation7 + $0xa8] sm:$0xff]
    %v1313 = vld [vmem:[#allocation7 + $0xb0] sm:$0xff]
    %v1314 = vld [vmem:[#allocation7 + $0xb8] sm:$0xff]
    %v1315 = vld [vmem:[#allocation7 + $0xc0] sm:$0xff]
    %v1316 = vld [vmem:[#allocation7 + $0xc8] sm:$0xff]
    %v1317 = vld [vmem:[#allocation7 + $0xd0] sm:$0xff]
    %v1318 = vld [vmem:[#allocation7 + $0xd8] sm:$0xff]
    %v1319 = vld [vmem:[#allocation7 + $0xe0] sm:$0xff]
    %v1320 = vld [vmem:[#allocation7 + $0xe8] sm:$0xff]
    %v1321 = vld [vmem:[#allocation7 + $0xf0] sm:$0xff]
    %v1322 = vld [vmem:[#allocation7 + $0xf8] sm:$0xff]
    %v1323 = vld [vmem:[#allocation7 + $0x100] sm:$0xff]
    %v1324 = vld [vmem:[#allocation7 + $0x108] sm:$0xff]
    %v1325 = vld [vmem:[#allocation7 + $0x110] sm:$0xff]
    %v1326 = vld [vmem:[#allocation7 + $0x118] sm:$0xff]
    %v1327 = vld [vmem:[#allocation7 + $0x120] sm:$0xff]
    %v1328 = vld [vmem:[#allocation7 + $0x128] sm:$0xff]
    %v1329 = vld [vmem:[#allocation7 + $0x130] sm:$0xff]
    %v1330 = vld [vmem:[#allocation7 + $0x138] sm:$0xff]
    %v1331 = vld [vmem:[#allocation7 + $0x140] sm:$0xff]
    %v1332 = vld [vmem:[#allocation7 + $0x148] sm:$0xff]
    %v1333 = vld [vmem:[#allocation7 + $0x150] sm:$0xff]
    %v1334 = vld [vmem:[#allocation7 + $0x158] sm:$0xff]
    %v1335 = vld [vmem:[#allocation7 + $0x160] sm:$0xff]
    %v1336 = vld [vmem:[#allocation7 + $0x168] sm:$0xff]
    %v1337 = vld [vmem:[#allocation7 + $0x170] sm:$0xff]
    %v1338 = vld [vmem:[#allocation7 + $0x178] sm:$0xff]
    %v1339 = vld [vmem:[#allocation7 + $0x180] sm:$0xff]
    %v1340 = vld [vmem:[#allocation7 + $0x188] sm:$0xff]
    %v1341 = vld [vmem:[#allocation7 + $0x190] sm:$0xff]
    %v1342 = vld [vmem:[#allocation7 + $0x198] sm:$0xff]
    %v1343 = vld [vmem:[#allocation7 + $0x1a0] sm:$0xff]
    %v1344 = vld [vmem:[#allocation7 + $0x1a8] sm:$0xff]
    %v1345 = vld [vmem:[#allocation7 + $0x1b0] sm:$0xff]
    %v1346 = vld [vmem:[#allocation7 + $0x1b8] sm:$0xff]
    %v1347 = vld [vmem:[#allocation7 + $0x1c0] sm:$0xff]
    %v1348 = vld [vmem:[#allocation7 + $0x1c8] sm:$0xff]
    %v1349 = vld [vmem:[#allocation7 + $0x1d0] sm:$0xff]
    %v1350 = vld [vmem:[#allocation7 + $0x1d8] sm:$0xff]
    %v1351 = vld [vmem:[#allocation7 + $0x1e0] sm:$0xff]
    %v1352 = vld [vmem:[#allocation7 + $0x1e8] sm:$0xff]
    %v1353 = vld [vmem:[#allocation7 + $0x1f0] sm:$0xff]
    %v1354 = vld [vmem:[#allocation7 + $0x1f8] sm:$0xff]
    %v1355 = vld [vmem:[#allocation7 + $0x200] sm:$0xff]
    %v1356 = vld [vmem:[#allocation7 + $0x208] sm:$0xff]
    %v1357 = vld [vmem:[#allocation7 + $0x210] sm:$0xff]
    %v1358 = vld [vmem:[#allocation7 + $0x218] sm:$0xff]
    %v1359 = vld [vmem:[#allocation7 + $0x220] sm:$0xff]
    %v1360 = vld [vmem:[#allocation7 + $0x228] sm:$0xff]
    %v1361 = vld [vmem:[#allocation7 + $0x230] sm:$0xff]
    %v1362 = vld [vmem:[#allocation7 + $0x238] sm:$0xff]
    %v1363 = vld [vmem:[#allocation7 + $0x240] sm:$0xff]
    %v1364 = vld [vmem:[#allocation7 + $0x248] sm:$0xff]
    %v1365 = vld [vmem:[#allocation7 + $0x250] sm:$0xff]
    %v1366 = vld [vmem:[#allocation7 + $0x258] sm:$0xff]
    %v1367 = vld [vmem:[#allocation7 + $0x260] sm:$0xff]
    %v1368 = vld [vmem:[#allocation7 + $0x268] sm:$0xff]
    %v1369 = vld [vmem:[#allocation7 + $0x270] sm:$0xff]
    %v1370 = vld [vmem:[#allocation7 + $0x278] sm:$0xff]
    %v1371 = vld [vmem:[#allocation7 + $0x280] sm:$0xff]
    %v1372 = vld [vmem:[#allocation7 + $0x288] sm:$0xff]
    %v1373 = vld [vmem:[#allocation7 + $0x290] sm:$0xff]
    %v1374 = vld [vmem:[#allocation7 + $0x298] sm:$0xff]
    %v1375 = vld [vmem:[#allocation7 + $0x2a0] sm:$0xff]
    %v1376 = vld [vmem:[#allocation7 + $0x2a8] sm:$0xff]
    %v1377 = vld [vmem:[#allocation7 + $0x2b0] sm:$0xff]
    %v1378 = vld [vmem:[#allocation7 + $0x2b8] sm:$0xff]
    %v1379 = vld [vmem:[#allocation7 + $0x2c0] sm:$0xff]
    %v1380 = vld [vmem:[#allocation7 + $0x2c8] sm:$0xff]
    %v1381 = vld [vmem:[#allocation7 + $0x2d0] sm:$0xff]
    %v1382 = vld [vmem:[#allocation7 + $0x2d8] sm:$0xff]
    %v1383 = vld [vmem:[#allocation7 + $0x2e0] sm:$0xff]
    %v1384 = vld [vmem:[#allocation7 + $0x2e8] sm:$0xff]
    %v1385 = vld [vmem:[#allocation7 + $0x2f0] sm:$0xff]
    %v1386 = vld [vmem:[#allocation7 + $0x2f8] sm:$0xff]
    %v1387 = vld [vmem:[#allocation7 + $0x300] sm:$0xff]
    %v1388 = vld [vmem:[#allocation7 + $0x308] sm:$0xff]
    %v1389 = vld [vmem:[#allocation7 + $0x310] sm:$0xff]
    %v1390 = vld [vmem:[#allocation7 + $0x318] sm:$0xff]
    %v1391 = vld [vmem:[#allocation7 + $0x320] sm:$0xff]
    %v1392 = vld [vmem:[#allocation7 + $0x328] sm:$0xff]
    %v1393 = vld [vmem:[#allocation7 + $0x330] sm:$0xff]
    %v1394 = vld [vmem:[#allocation7 + $0x338] sm:$0xff]
    %v1395 = vld [vmem:[#allocation7 + $0x340] sm:$0xff]
    %v1396 = vld [vmem:[#allocation7 + $0x348] sm:$0xff]
    %v1397 = vld [vmem:[#allocation7 + $0x350] sm:$0xff]
    %v1398 = vld [vmem:[#allocation7 + $0x358] sm:$0xff]
    %v1399 = vld [vmem:[#allocation7 + $0x360] sm:$0xff]
    %v1400 = vld [vmem:[#allocation7 + $0x368] sm:$0xff]
    %v1401 = vld [vmem:[#allocation7 + $0x370] sm:$0xff]
    %v1402 = vld [vmem:[#allocation7 + $0x378] sm:$0xff]
    %v1403 = vld [vmem:[#allocation7 + $0x380] sm:$0xff]
    %v1404 = vld [vmem:[#allocation7 + $0x388] sm:$0xff]
    %v1405 = vld [vmem:[#allocation7 + $0x390] sm:$0xff]
    %v1406 = vld [vmem:[#allocation7 + $0x398] sm:$0xff]
    %v1407 = vld [vmem:[#allocation7 + $0x3a0] sm:$0xff]
    %v1408 = vld [vmem:[#allocation7 + $0x3a8] sm:$0xff]
    %v1409 = vld [vmem:[#allocation7 + $0x3b0] sm:$0xff]
    %v1410 = vld [vmem:[#allocation7 + $0x3b8] sm:$0xff]
    %v1411 = vld [vmem:[#allocation7 + $0x3c0] sm:$0xff]
    %v1412 = vld [vmem:[#allocation7 + $0x3c8] sm:$0xff]
    %v1413 = vld [vmem:[#allocation7 + $0x3d0] sm:$0xff]
    %v1414 = vld [vmem:[#allocation7 + $0x3d8] sm:$0xff]
    %v1415 = vld [vmem:[#allocation7 + $0x3e0] sm:$0xff]
    %v1416 = vld [vmem:[#allocation7 + $0x3e8] sm:$0xff]
    %v1417 = vld [vmem:[#allocation7 + $0x3f0] sm:$0xff]
    %v1418 = vld [vmem:[#allocation7 + $0x3f8] sm:$0xff]
    %v1419 = vld [vmem:[%s7] sm:$0xf]
    %v1421 = vlaneseq
    %v1422 = vshrl.u32 %v1421, 7
    %v1423 = vsub.s32 0, %v1422
    %v1424 = vrot.slane %v1419, %v1423
    %v1425 = vlaneseq
    %v1426 = vshrl.u32 %v1425, 7
    %v1427 = vsub.s32 1, %v1426
    %v1428 = vrot.slane %v1419, %v1427
    %v1429 = vlaneseq
    %v1430 = vshrl.u32 %v1429, 7
    %v1431 = vsub.s32 2, %v1430
    %v1432 = vrot.slane %v1419, %v1431
    %v1433 = vlaneseq
    %v1434 = vshrl.u32 %v1433, 7
    %v1435 = vsub.s32 3, %v1434
    %v1436 = vrot.slane %v1419, %v1435
    %v1569 = vunpack.c.l.b16 %v1291
    %v1570 = vunpack.c.h.b16 %v1291
    %v1571 = vunpack.c.l.b16 %v1292
    %v1572 = vunpack.c.h.b16 %v1292
    %v1573 = vunpack.c.l.b16 %v1293
    %v1574 = vunpack.c.h.b16 %v1293
    %v1575 = vunpack.c.l.b16 %v1294
    %v1576 = vunpack.c.h.b16 %v1294
    %v1577 = vunpack.c.l.b16 %v1295
    %v1578 = vunpack.c.h.b16 %v1295
    %v1579 = vunpack.c.l.b16 %v1296
    %v1580 = vunpack.c.h.b16 %v1296
    %v1581 = vunpack.c.l.b16 %v1297
    %v1582 = vunpack.c.h.b16 %v1297
    %v1583 = vunpack.c.l.b16 %v1298
    %v1584 = vunpack.c.h.b16 %v1298
    %v1585 = vunpack.c.l.b16 %v1299
    %v1586 = vunpack.c.h.b16 %v1299
    %v1587 = vunpack.c.l.b16 %v1300
    %v1588 = vunpack.c.h.b16 %v1300
    %v1589 = vunpack.c.l.b16 %v1301
    %v1590 = vunpack.c.h.b16 %v1301
    %v1591 = vunpack.c.l.b16 %v1302
    %v1592 = vunpack.c.h.b16 %v1302
    %v1593 = vunpack.c.l.b16 %v1303
    %v1594 = vunpack.c.h.b16 %v1303
    %v1595 = vunpack.c.l.b16 %v1304
    %v1596 = vunpack.c.h.b16 %v1304
    %v1597 = vunpack.c.l.b16 %v1305
    %v1598 = vunpack.c.h.b16 %v1305
    %v1599 = vunpack.c.l.b16 %v1306
    %v1600 = vunpack.c.h.b16 %v1306
    %v1601 = vunpack.c.l.b16 %v1307
    %v1602 = vunpack.c.h.b16 %v1307
    %v1603 = vunpack.c.l.b16 %v1308
    %v1604 = vunpack.c.h.b16 %v1308
    %v1605 = vunpack.c.l.b16 %v1309
    %v1606 = vunpack.c.h.b16 %v1309
    %v1607 = vunpack.c.l.b16 %v1310
    %v1608 = vunpack.c.h.b16 %v1310
    %v1609 = vunpack.c.l.b16 %v1311
    %v1610 = vunpack.c.h.b16 %v1311
    %v1611 = vunpack.c.l.b16 %v1312
    %v1612 = vunpack.c.h.b16 %v1312
    %v1613 = vunpack.c.l.b16 %v1313
    %v1614 = vunpack.c.h.b16 %v1313
    %v1615 = vunpack.c.l.b16 %v1314
    %v1616 = vunpack.c.h.b16 %v1314
    %v1617 = vunpack.c.l.b16 %v1315
    %v1618 = vunpack.c.h.b16 %v1315
    %v1619 = vunpack.c.l.b16 %v1316
    %v1620 = vunpack.c.h.b16 %v1316
    %v1621 = vunpack.c.l.b16 %v1317
    %v1622 = vunpack.c.h.b16 %v1317
    %v1623 = vunpack.c.l.b16 %v1318
    %v1624 = vunpack.c.h.b16 %v1318
    %v1625 = vunpack.c.l.b16 %v1319
    %v1626 = vunpack.c.h.b16 %v1319
    %v1627 = vunpack.c.l.b16 %v1320
    %v1628 = vunpack.c.h.b16 %v1320
    %v1629 = vunpack.c.l.b16 %v1321
    %v1630 = vunpack.c.h.b16 %v1321
    %v1631 = vunpack.c.l.b16 %v1322
    %v1632 = vunpack.c.h.b16 %v1322
    %v1633 = vunpack.c.l.b16 %v1323
    %v1634 = vunpack.c.h.b16 %v1323
    %v1635 = vunpack.c.l.b16 %v1324
    %v1636 = vunpack.c.h.b16 %v1324
    %v1637 = vunpack.c.l.b16 %v1325
    %v1638 = vunpack.c.h.b16 %v1325
    %v1639 = vunpack.c.l.b16 %v1326
    %v1640 = vunpack.c.h.b16 %v1326
    %v1641 = vunpack.c.l.b16 %v1327
    %v1642 = vunpack.c.h.b16 %v1327
    %v1643 = vunpack.c.l.b16 %v1328
    %v1644 = vunpack.c.h.b16 %v1328
    %v1645 = vunpack.c.l.b16 %v1329
    %v1646 = vunpack.c.h.b16 %v1329
    %v1647 = vunpack.c.l.b16 %v1330
    %v1648 = vunpack.c.h.b16 %v1330
    %v1649 = vunpack.c.l.b16 %v1331
    %v1650 = vunpack.c.h.b16 %v1331
    %v1651 = vunpack.c.l.b16 %v1332
    %v1652 = vunpack.c.h.b16 %v1332
    %v1653 = vunpack.c.l.b16 %v1333
    %v1654 = vunpack.c.h.b16 %v1333
    %v1655 = vunpack.c.l.b16 %v1334
    %v1656 = vunpack.c.h.b16 %v1334
    %v1657 = vunpack.c.l.b16 %v1335
    %v1658 = vunpack.c.h.b16 %v1335
    %v1659 = vunpack.c.l.b16 %v1336
    %v1660 = vunpack.c.h.b16 %v1336
    %v1661 = vunpack.c.l.b16 %v1337
    %v1662 = vunpack.c.h.b16 %v1337
    %v1663 = vunpack.c.l.b16 %v1338
    %v1664 = vunpack.c.h.b16 %v1338
    %v1665 = vunpack.c.l.b16 %v1339
    %v1666 = vunpack.c.h.b16 %v1339
    %v1667 = vunpack.c.l.b16 %v1340
    %v1668 = vunpack.c.h.b16 %v1340
    %v1669 = vunpack.c.l.b16 %v1341
    %v1670 = vunpack.c.h.b16 %v1341
    %v1671 = vunpack.c.l.b16 %v1342
    %v1672 = vunpack.c.h.b16 %v1342
    %v1673 = vunpack.c.l.b16 %v1343
    %v1674 = vunpack.c.h.b16 %v1343
    %v1675 = vunpack.c.l.b16 %v1344
    %v1676 = vunpack.c.h.b16 %v1344
    %v1677 = vunpack.c.l.b16 %v1345
    %v1678 = vunpack.c.h.b16 %v1345
    %v1679 = vunpack.c.l.b16 %v1346
    %v1680 = vunpack.c.h.b16 %v1346
    %v1681 = vunpack.c.l.b16 %v1347
    %v1682 = vunpack.c.h.b16 %v1347
    %v1683 = vunpack.c.l.b16 %v1348
    %v1684 = vunpack.c.h.b16 %v1348
    %v1685 = vunpack.c.l.b16 %v1349
    %v1686 = vunpack.c.h.b16 %v1349
    %v1687 = vunpack.c.l.b16 %v1350
    %v1688 = vunpack.c.h.b16 %v1350
    %v1689 = vunpack.c.l.b16 %v1351
    %v1690 = vunpack.c.h.b16 %v1351
    %v1691 = vunpack.c.l.b16 %v1352
    %v1692 = vunpack.c.h.b16 %v1352
    %v1693 = vunpack.c.l.b16 %v1353
    %v1694 = vunpack.c.h.b16 %v1353
    %v1695 = vunpack.c.l.b16 %v1354
    %v1696 = vunpack.c.h.b16 %v1354
    %v1697 = vunpack.c.l.b16 %v1355
    %v1698 = vunpack.c.h.b16 %v1355
    %v1699 = vunpack.c.l.b16 %v1356
    %v1700 = vunpack.c.h.b16 %v1356
    %v1701 = vunpack.c.l.b16 %v1357
    %v1702 = vunpack.c.h.b16 %v1357
    %v1703 = vunpack.c.l.b16 %v1358
    %v1704 = vunpack.c.h.b16 %v1358
    %v1705 = vunpack.c.l.b16 %v1359
    %v1706 = vunpack.c.h.b16 %v1359
    %v1707 = vunpack.c.l.b16 %v1360
    %v1708 = vunpack.c.h.b16 %v1360
    %v1709 = vunpack.c.l.b16 %v1361
    %v1710 = vunpack.c.h.b16 %v1361
    %v1711 = vunpack.c.l.b16 %v1362
    %v1712 = vunpack.c.h.b16 %v1362
    %v1713 = vunpack.c.l.b16 %v1363
    %v1714 = vunpack.c.h.b16 %v1363
    %v1715 = vunpack.c.l.b16 %v1364
    %v1716 = vunpack.c.h.b16 %v1364
    %v1717 = vunpack.c.l.b16 %v1365
    %v1718 = vunpack.c.h.b16 %v1365
    %v1719 = vunpack.c.l.b16 %v1366
    %v1720 = vunpack.c.h.b16 %v1366
    %v1721 = vunpack.c.l.b16 %v1367
    %v1722 = vunpack.c.h.b16 %v1367
    %v1723 = vunpack.c.l.b16 %v1368
    %v1724 = vunpack.c.h.b16 %v1368
    %v1725 = vunpack.c.l.b16 %v1369
    %v1726 = vunpack.c.h.b16 %v1369
    %v1727 = vunpack.c.l.b16 %v1370
    %v1728 = vunpack.c.h.b16 %v1370
    %v1729 = vunpack.c.l.b16 %v1371
    %v1730 = vunpack.c.h.b16 %v1371
    %v1731 = vunpack.c.l.b16 %v1372
    %v1732 = vunpack.c.h.b16 %v1372
    %v1733 = vunpack.c.l.b16 %v1373
    %v1734 = vunpack.c.h.b16 %v1373
    %v1735 = vunpack.c.l.b16 %v1374
    %v1736 = vunpack.c.h.b16 %v1374
    %v1737 = vunpack.c.l.b16 %v1375
    %v1738 = vunpack.c.h.b16 %v1375
    %v1739 = vunpack.c.l.b16 %v1376
    %v1740 = vunpack.c.h.b16 %v1376
    %v1741 = vunpack.c.l.b16 %v1377
    %v1742 = vunpack.c.h.b16 %v1377
    %v1743 = vunpack.c.l.b16 %v1378
    %v1744 = vunpack.c.h.b16 %v1378
    %v1745 = vunpack.c.l.b16 %v1379
    %v1746 = vunpack.c.h.b16 %v1379
    %v1747 = vunpack.c.l.b16 %v1380
    %v1748 = vunpack.c.h.b16 %v1380
    %v1749 = vunpack.c.l.b16 %v1381
    %v1750 = vunpack.c.h.b16 %v1381
    %v1751 = vunpack.c.l.b16 %v1382
    %v1752 = vunpack.c.h.b16 %v1382
    %v1753 = vunpack.c.l.b16 %v1383
    %v1754 = vunpack.c.h.b16 %v1383
    %v1755 = vunpack.c.l.b16 %v1384
    %v1756 = vunpack.c.h.b16 %v1384
    %v1757 = vunpack.c.l.b16 %v1385
    %v1758 = vunpack.c.h.b16 %v1385
    %v1759 = vunpack.c.l.b16 %v1386
    %v1760 = vunpack.c.h.b16 %v1386
    %v1761 = vunpack.c.l.b16 %v1387
    %v1762 = vunpack.c.h.b16 %v1387
    %v1763 = vunpack.c.l.b16 %v1388
    %v1764 = vunpack.c.h.b16 %v1388
    %v1765 = vunpack.c.l.b16 %v1389
    %v1766 = vunpack.c.h.b16 %v1389
    %v1767 = vunpack.c.l.b16 %v1390
    %v1768 = vunpack.c.h.b16 %v1390
    %v1769 = vunpack.c.l.b16 %v1391
    %v1770 = vunpack.c.h.b16 %v1391
    %v1771 = vunpack.c.l.b16 %v1392
    %v1772 = vunpack.c.h.b16 %v1392
    %v1773 = vunpack.c.l.b16 %v1393
    %v1774 = vunpack.c.h.b16 %v1393
    %v1775 = vunpack.c.l.b16 %v1394
    %v1776 = vunpack.c.h.b16 %v1394
    %v1777 = vunpack.c.l.b16 %v1395
    %v1778 = vunpack.c.h.b16 %v1395
    %v1779 = vunpack.c.l.b16 %v1396
    %v1780 = vunpack.c.h.b16 %v1396
    %v1781 = vunpack.c.l.b16 %v1397
    %v1782 = vunpack.c.h.b16 %v1397
    %v1783 = vunpack.c.l.b16 %v1398
    %v1784 = vunpack.c.h.b16 %v1398
    %v1785 = vunpack.c.l.b16 %v1399
    %v1786 = vunpack.c.h.b16 %v1399
    %v1787 = vunpack.c.l.b16 %v1400
    %v1788 = vunpack.c.h.b16 %v1400
    %v1789 = vunpack.c.l.b16 %v1401
    %v1790 = vunpack.c.h.b16 %v1401
    %v1791 = vunpack.c.l.b16 %v1402
    %v1792 = vunpack.c.h.b16 %v1402
    %v1793 = vunpack.c.l.b16 %v1403
    %v1794 = vunpack.c.h.b16 %v1403
    %v1795 = vunpack.c.l.b16 %v1404
    %v1796 = vunpack.c.h.b16 %v1404
    %v1797 = vunpack.c.l.b16 %v1405
    %v1798 = vunpack.c.h.b16 %v1405
    %v1799 = vunpack.c.l.b16 %v1406
    %v1800 = vunpack.c.h.b16 %v1406
    %v1801 = vunpack.c.l.b16 %v1407
    %v1802 = vunpack.c.h.b16 %v1407
    %v1803 = vunpack.c.l.b16 %v1408
    %v1804 = vunpack.c.h.b16 %v1408
    %v1805 = vunpack.c.l.b16 %v1409
    %v1806 = vunpack.c.h.b16 %v1409
    %v1807 = vunpack.c.l.b16 %v1410
    %v1808 = vunpack.c.h.b16 %v1410
    %v1809 = vunpack.c.l.b16 %v1411
    %v1810 = vunpack.c.h.b16 %v1411
    %v1811 = vunpack.c.l.b16 %v1412
    %v1812 = vunpack.c.h.b16 %v1412
    %v1813 = vunpack.c.l.b16 %v1413
    %v1814 = vunpack.c.h.b16 %v1413
    %v1815 = vunpack.c.l.b16 %v1414
    %v1816 = vunpack.c.h.b16 %v1414
    %v1817 = vunpack.c.l.b16 %v1415
    %v1818 = vunpack.c.h.b16 %v1415
    %v1819 = vunpack.c.l.b16 %v1416
    %v1820 = vunpack.c.h.b16 %v1416
    %v1821 = vunpack.c.l.b16 %v1417
    %v1822 = vunpack.c.h.b16 %v1417
    %v1823 = vunpack.c.l.b16 %v1418
    %v1824 = vunpack.c.h.b16 %v1418
    %v1825 = vpack.c.b16 %v1573, %v1569
    %v1826 = vpack.c.b16 %v1574, %v1570
    %v1827 = vpack.c.b16 %v1575, %v1571
    %v1828 = vpack.c.b16 %v1576, %v1572
    %v1829 = vpack.c.b16 %v1581, %v1577
    %v1830 = vpack.c.b16 %v1582, %v1578
    %v1831 = vpack.c.b16 %v1583, %v1579
    %v1832 = vpack.c.b16 %v1584, %v1580
    %v1833 = vpack.c.b16 %v1589, %v1585
    %v1834 = vpack.c.b16 %v1590, %v1586
    %v1835 = vpack.c.b16 %v1591, %v1587
    %v1836 = vpack.c.b16 %v1592, %v1588
    %v1837 = vpack.c.b16 %v1597, %v1593
    %v1838 = vpack.c.b16 %v1598, %v1594
    %v1839 = vpack.c.b16 %v1599, %v1595
    %v1840 = vpack.c.b16 %v1600, %v1596
    %v1841 = vpack.c.b16 %v1605, %v1601
    %v1842 = vpack.c.b16 %v1606, %v1602
    %v1843 = vpack.c.b16 %v1607, %v1603
    %v1844 = vpack.c.b16 %v1608, %v1604
    %v1845 = vpack.c.b16 %v1613, %v1609
    %v1846 = vpack.c.b16 %v1614, %v1610
    %v1847 = vpack.c.b16 %v1615, %v1611
    %v1848 = vpack.c.b16 %v1616, %v1612
    %v1849 = vpack.c.b16 %v1621, %v1617
    %v1850 = vpack.c.b16 %v1622, %v1618
    %v1851 = vpack.c.b16 %v1623, %v1619
    %v1852 = vpack.c.b16 %v1624, %v1620
    %v1853 = vpack.c.b16 %v1629, %v1625
    %v1854 = vpack.c.b16 %v1630, %v1626
    %v1855 = vpack.c.b16 %v1631, %v1627
    %v1856 = vpack.c.b16 %v1632, %v1628
    %v1857 = vpack.c.b16 %v1637, %v1633
    %v1858 = vpack.c.b16 %v1638, %v1634
    %v1859 = vpack.c.b16 %v1639, %v1635
    %v1860 = vpack.c.b16 %v1640, %v1636
    %v1861 = vpack.c.b16 %v1645, %v1641
    %v1862 = vpack.c.b16 %v1646, %v1642
    %v1863 = vpack.c.b16 %v1647, %v1643
    %v1864 = vpack.c.b16 %v1648, %v1644
    %v1865 = vpack.c.b16 %v1653, %v1649
    %v1866 = vpack.c.b16 %v1654, %v1650
    %v1867 = vpack.c.b16 %v1655, %v1651
    %v1868 = vpack.c.b16 %v1656, %v1652
    %v1869 = vpack.c.b16 %v1661, %v1657
    %v1870 = vpack.c.b16 %v1662, %v1658
    %v1871 = vpack.c.b16 %v1663, %v1659
    %v1872 = vpack.c.b16 %v1664, %v1660
    %v1873 = vpack.c.b16 %v1669, %v1665
    %v1874 = vpack.c.b16 %v1670, %v1666
    %v1875 = vpack.c.b16 %v1671, %v1667
    %v1876 = vpack.c.b16 %v1672, %v1668
    %v1877 = vpack.c.b16 %v1677, %v1673
    %v1878 = vpack.c.b16 %v1678, %v1674
    %v1879 = vpack.c.b16 %v1679, %v1675
    %v1880 = vpack.c.b16 %v1680, %v1676
    %v1881 = vpack.c.b16 %v1685, %v1681
    %v1882 = vpack.c.b16 %v1686, %v1682
    %v1883 = vpack.c.b16 %v1687, %v1683
    %v1884 = vpack.c.b16 %v1688, %v1684
    %v1885 = vpack.c.b16 %v1693, %v1689
    %v1886 = vpack.c.b16 %v1694, %v1690
    %v1887 = vpack.c.b16 %v1695, %v1691
    %v1888 = vpack.c.b16 %v1696, %v1692
    %v1889 = vpack.c.b16 %v1701, %v1697
    %v1890 = vpack.c.b16 %v1702, %v1698
    %v1891 = vpack.c.b16 %v1703, %v1699
    %v1892 = vpack.c.b16 %v1704, %v1700
    %v1893 = vpack.c.b16 %v1709, %v1705
    %v1894 = vpack.c.b16 %v1710, %v1706
    %v1895 = vpack.c.b16 %v1711, %v1707
    %v1896 = vpack.c.b16 %v1712, %v1708
    %v1897 = vpack.c.b16 %v1717, %v1713
    %v1898 = vpack.c.b16 %v1718, %v1714
    %v1899 = vpack.c.b16 %v1719, %v1715
    %v1900 = vpack.c.b16 %v1720, %v1716
    %v1901 = vpack.c.b16 %v1725, %v1721
    %v1902 = vpack.c.b16 %v1726, %v1722
    %v1903 = vpack.c.b16 %v1727, %v1723
    %v1904 = vpack.c.b16 %v1728, %v1724
    %v1905 = vpack.c.b16 %v1733, %v1729
    %v1906 = vpack.c.b16 %v1734, %v1730
    %v1907 = vpack.c.b16 %v1735, %v1731
    %v1908 = vpack.c.b16 %v1736, %v1732
    %v1909 = vpack.c.b16 %v1741, %v1737
    %v1910 = vpack.c.b16 %v1742, %v1738
    %v1911 = vpack.c.b16 %v1743, %v1739
    %v1912 = vpack.c.b16 %v1744, %v1740
    %v1913 = vpack.c.b16 %v1749, %v1745
    %v1914 = vpack.c.b16 %v1750, %v1746
    %v1915 = vpack.c.b16 %v1751, %v1747
    %v1916 = vpack.c.b16 %v1752, %v1748
    %v1917 = vpack.c.b16 %v1757, %v1753
    %v1918 = vpack.c.b16 %v1758, %v1754
    %v1919 = vpack.c.b16 %v1759, %v1755
    %v1920 = vpack.c.b16 %v1760, %v1756
    %v1921 = vpack.c.b16 %v1765, %v1761
    %v1922 = vpack.c.b16 %v1766, %v1762
    %v1923 = vpack.c.b16 %v1767, %v1763
    %v1924 = vpack.c.b16 %v1768, %v1764
    %v1925 = vpack.c.b16 %v1773, %v1769
    %v1926 = vpack.c.b16 %v1774, %v1770
    %v1927 = vpack.c.b16 %v1775, %v1771
    %v1928 = vpack.c.b16 %v1776, %v1772
    %v1929 = vpack.c.b16 %v1781, %v1777
    %v1930 = vpack.c.b16 %v1782, %v1778
    %v1931 = vpack.c.b16 %v1783, %v1779
    %v1932 = vpack.c.b16 %v1784, %v1780
    %v1933 = vpack.c.b16 %v1789, %v1785
    %v1934 = vpack.c.b16 %v1790, %v1786
    %v1935 = vpack.c.b16 %v1791, %v1787
    %v1936 = vpack.c.b16 %v1792, %v1788
    %v1937 = vpack.c.b16 %v1797, %v1793
    %v1938 = vpack.c.b16 %v1798, %v1794
    %v1939 = vpack.c.b16 %v1799, %v1795
    %v1940 = vpack.c.b16 %v1800, %v1796
    %v1941 = vpack.c.b16 %v1805, %v1801
    %v1942 = vpack.c.b16 %v1806, %v1802
    %v1943 = vpack.c.b16 %v1807, %v1803
    %v1944 = vpack.c.b16 %v1808, %v1804
    %v1945 = vpack.c.b16 %v1813, %v1809
    %v1946 = vpack.c.b16 %v1814, %v1810
    %v1947 = vpack.c.b16 %v1815, %v1811
    %v1948 = vpack.c.b16 %v1816, %v1812
    %v1949 = vpack.c.b16 %v1821, %v1817
    %v1950 = vpack.c.b16 %v1822, %v1818
    %v1951 = vpack.c.b16 %v1823, %v1819
    %v1952 = vpack.c.b16 %v1824, %v1820
    %2081 = vmatprep.subr.bf16.mxu0 %v1826
    %2082 = vmatpush1.bf16.msra.mxu0 %v1825
    %2083 = vmatprep.subr.bf16.mxu0 %v1830
    %2084 = vmatpush1.bf16.msra.mxu0 %v1829
    %2085 = vmatprep.subr.bf16.mxu0 %v1834
    %2086 = vmatpush1.bf16.msra.mxu0 %v1833
    %2087 = vmatprep.subr.bf16.mxu0 %v1838
    %2088 = vmatpush1.bf16.msra.mxu0 %v1837
    %2089 = vmatprep.subr.bf16.mxu0 %v1842
    %2090 = vmatpush1.bf16.msra.mxu0 %v1841
    %2091 = vmatprep.subr.bf16.mxu0 %v1846
    %2092 = vmatpush1.bf16.msra.mxu0 %v1845
    %2093 = vmatprep.subr.bf16.mxu0 %v1850
    %2094 = vmatpush1.bf16.msra.mxu0 %v1849
    %2095 = vmatprep.subr.bf16.mxu0 %v1854
    %2096 = vmatpush1.bf16.msra.mxu0 %v1853
    %2097 = vmatprep.subr.bf16.mxu0 %v1858
    %2098 = vmatpush1.bf16.msra.mxu0 %v1857
    %2099 = vmatprep.subr.bf16.mxu0 %v1862
    %2100 = vmatpush1.bf16.msra.mxu0 %v1861
    %2101 = vmatprep.subr.bf16.mxu0 %v1866
    %2102 = vmatpush1.bf16.msra.mxu0 %v1865
    %2103 = vmatprep.subr.bf16.mxu0 %v1870
    %2104 = vmatpush1.bf16.msra.mxu0 %v1869
    %2105 = vmatprep.subr.bf16.mxu0 %v1874
    %2106 = vmatpush1.bf16.msra.mxu0 %v1873
    %2107 = vmatprep.subr.bf16.mxu0 %v1878
    %2108 = vmatpush1.bf16.msra.mxu0 %v1877
    %2109 = vmatprep.subr.bf16.mxu0 %v1882
    %2110 = vmatpush1.bf16.msra.mxu0 %v1881
    %2111 = vmatprep.subr.bf16.mxu0 %v1886
    %2112 = vmatpush1.bf16.msra.mxu0 %v1885
    %2113 = vmatprep.mubr.bf16.mxu0 %v1288
    %2114 = vmatmul.mubr.bf16.gmra.mrb[0].mxu0 %v1287
    %v2115 = vpop.f32.mrb[0].mxu0
    %v2116 = vadd.f32 %v1424, %v2115
    %v2117 = vpop.f32.mrb[0].mxu0
    %v2118 = vadd.f32 %v1428, %v2117
    %v2119 = vpop.f32.mrb[0].mxu0
    %v2120 = vpop.f32.mrb[0].mxu0
    %2121 = vdwg.mxu0
    %2122 = vmatprep.subr.bf16.mxu0 %v1890
    %2123 = vmatpush1.bf16.msra.mxu0 %v1889
    %2124 = vmatprep.subr.bf16.mxu0 %v1894
    %2125 = vmatpush1.bf16.msra.mxu0 %v1893
    %2126 = vmatprep.subr.bf16.mxu0 %v1898
    %2127 = vmatpush1.bf16.msra.mxu0 %v1897
    %2128 = vmatprep.subr.bf16.mxu0 %v1902
    %2129 = vmatpush1.bf16.msra.mxu0 %v1901
    %2130 = vmatprep.subr.bf16.mxu0 %v1906
    %2131 = vmatpush1.bf16.msra.mxu0 %v1905
    %2132 = vmatprep.subr.bf16.mxu0 %v1910
    %2133 = vmatpush1.bf16.msra.mxu0 %v1909
    %2134 = vmatprep.subr.bf16.mxu0 %v1914
    %2135 = vmatpush1.bf16.msra.mxu0 %v1913
    %2136 = vmatprep.subr.bf16.mxu0 %v1918
    %2137 = vmatpush1.bf16.msra.mxu0 %v1917
    %2138 = vmatprep.subr.bf16.mxu0 %v1922
    %2139 = vmatpush1.bf16.msra.mxu0 %v1921
    %2140 = vmatprep.subr.bf16.mxu0 %v1926
    %2141 = vmatpush1.bf16.msra.mxu0 %v1925
    %2142 = vmatprep.subr.bf16.mxu0 %v1930
    %2143 = vmatpush1.bf16.msra.mxu0 %v1929
    %2144 = vmatprep.subr.bf16.mxu0 %v1934
    %2145 = vmatpush1.bf16.msra.mxu0 %v1933
    %2146 = vmatprep.subr.bf16.mxu0 %v1938
    %2147 = vmatpush1.bf16.msra.mxu0 %v1937
    %2148 = vmatprep.subr.bf16.mxu0 %v1942
    %2149 = vmatpush1.bf16.msra.mxu0 %v1941
    %2150 = vmatprep.subr.bf16.mxu0 %v1946
    %2151 = vmatpush1.bf16.msra.mxu0 %v1945
    %2152 = vmatprep.subr.bf16.mxu0 %v1950
    %2153 = vmatpush1.bf16.msra.mxu0 %v1949
    %2154 = vmatprep.mubr.bf16.mxu0 %v1290
    %2155 = vmatmul.mubr.bf16.gmra.mrb[0].mxu0 %v1289
    %v2156 = vpop.f32.mrb[0].mxu0
    %v2157 = vadd.f32 %v2116, %v2156
    %v2158 = vpop.f32.mrb[0].mxu0
    %v2159 = vadd.f32 %v2118, %v2158
    %v2160 = vpop.f32.mrb[0].mxu0
    %v2161 = vpop.f32.mrb[0].mxu0
    %2162 = vdwg.mxu0
    %2163 = vmatprep.subr.bf16.mxu0 %v1828
    %2164 = vmatpush1.bf16.msra.mxu0 %v1827
    %2165 = vmatprep.subr.bf16.mxu0 %v1832
    %2166 = vmatpush1.bf16.msra.mxu0 %v1831
    %2167 = vmatprep.subr.bf16.mxu0 %v1836
    %2168 = vmatpush1.bf16.msra.mxu0 %v1835
    %2169 = vmatprep.subr.bf16.mxu0 %v1840
    %2170 = vmatpush1.bf16.msra.mxu0 %v1839
    %2171 = vmatprep.subr.bf16.mxu0 %v1844
    %2172 = vmatpush1.bf16.msra.mxu0 %v1843
    %2173 = vmatprep.subr.bf16.mxu0 %v1848
    %2174 = vmatpush1.bf16.msra.mxu0 %v1847
    %2175 = vmatprep.subr.bf16.mxu0 %v1852
    %2176 = vmatpush1.bf16.msra.mxu0 %v1851
    %2177 = vmatprep.subr.bf16.mxu0 %v1856
    %2178 = vmatpush1.bf16.msra.mxu0 %v1855
    %2179 = vmatprep.subr.bf16.mxu0 %v1860
    %2180 = vmatpush1.bf16.msra.mxu0 %v1859
    %2181 = vmatprep.subr.bf16.mxu0 %v1864
    %2182 = vmatpush1.bf16.msra.mxu0 %v1863
    %2183 = vmatprep.subr.bf16.mxu0 %v1868
    %2184 = vmatpush1.bf16.msra.mxu0 %v1867
    %2185 = vmatprep.subr.bf16.mxu0 %v1872
    %2186 = vmatpush1.bf16.msra.mxu0 %v1871
    %2187 = vmatprep.subr.bf16.mxu0 %v1876
    %2188 = vmatpush1.bf16.msra.mxu0 %v1875
    %2189 = vmatprep.subr.bf16.mxu0 %v1880
    %2190 = vmatpush1.bf16.msra.mxu0 %v1879
    %2191 = vmatprep.subr.bf16.mxu0 %v1884
    %2192 = vmatpush1.bf16.msra.mxu0 %v1883
    %2193 = vmatprep.subr.bf16.mxu0 %v1888
    %2194 = vmatpush1.bf16.msra.mxu0 %v1887
    %2195 = vmatprep.mubr.bf16.mxu0 %v1288
    %2196 = vmatmul.mubr.bf16.gmra.mrb[0].mxu0 %v1287
    %v2197 = vpop.f32.mrb[0].mxu0
    %v2198 = vadd.f32 %v1432, %v2197
    %v2199 = vpop.f32.mrb[0].mxu0
    %v2200 = vadd.f32 %v1436, %v2199
    %v2201 = vpop.f32.mrb[0].mxu0
    %v2202 = vpop.f32.mrb[0].mxu0
    %2203 = vdwg.mxu0
    %2204 = vmatprep.subr.bf16.mxu0 %v1892
    %2205 = vmatpush1.bf16.msra.mxu0 %v1891
    %2206 = vmatprep.subr.bf16.mxu0 %v1896
    %2207 = vmatpush1.bf16.msra.mxu0 %v1895
    %2208 = vmatprep.subr.bf16.mxu0 %v1900
    %2209 = vmatpush1.bf16.msra.mxu0 %v1899
    %2210 = vmatprep.subr.bf16.mxu0 %v1904
    %2211 = vmatpush1.bf16.msra.mxu0 %v1903
    %2212 = vmatprep.subr.bf16.mxu0 %v1908
    %2213 = vmatpush1.bf16.msra.mxu0 %v1907
    %2214 = vmatprep.subr.bf16.mxu0 %v1912
    %2215 = vmatpush1.bf16.msra.mxu0 %v1911
    %2216 = vmatprep.subr.bf16.mxu0 %v1916
    %2217 = vmatpush1.bf16.msra.mxu0 %v1915
    %2218 = vmatprep.subr.bf16.mxu0 %v1920
    %2219 = vmatpush1.bf16.msra.mxu0 %v1919
    %2220 = vmatprep.subr.bf16.mxu0 %v1924
    %2221 = vmatpush1.bf16.msra.mxu0 %v1923
    %2222 = vmatprep.subr.bf16.mxu0 %v1928
    %2223 = vmatpush1.bf16.msra.mxu0 %v1927
    %2224 = vmatprep.subr.bf16.mxu0 %v1932
    %2225 = vmatpush1.bf16.msra.mxu0 %v1931
    %2226 = vmatprep.subr.bf16.mxu0 %v1936
    %2227 = vmatpush1.bf16.msra.mxu0 %v1935
    %2228 = vmatprep.subr.bf16.mxu0 %v1940
    %2229 = vmatpush1.bf16.msra.mxu0 %v1939
    %2230 = vmatprep.subr.bf16.mxu0 %v1944
    %2231 = vmatpush1.bf16.msra.mxu0 %v1943
    %2232 = vmatprep.subr.bf16.mxu0 %v1948
    %2233 = vmatpush1.bf16.msra.mxu0 %v1947
    %2234 = vmatprep.subr.bf16.mxu0 %v1952
    %2235 = vmatpush1.bf16.msra.mxu0 %v1951
    %2236 = vmatprep.mubr.bf16.mxu0 %v1290
    %2237 = vmatmul.mubr.bf16.gmra.mrb[0].mxu0 %v1289
    %v2238 = vpop.f32.mrb[0].mxu0
    %v2239 = vadd.f32 %v2198, %v2238
    %v2240 = vpop.f32.mrb[0].mxu0
    %v2241 = vadd.f32 %v2200, %v2240
    %v2242 = vpop.f32.mrb[0].mxu0
    %v2243 = vpop.f32.mrb[0].mxu0
    %2244 = vdwg.mxu0
    %v2245 = vld [vmem:[#allocation2] sm:$0xff]
    %v2246 = vld [vmem:[#allocation2 + $0x8] sm:$0xff]
    %v2247 = vld [vmem:[#allocation8] sm:$0xff]
    %v2248 = vld [vmem:[#allocation8 + $0x8] sm:$0xff]
    %v2249 = vld [vmem:[#allocation8 + $0x10] sm:$0xff]
    %v2250 = vld [vmem:[#allocation8 + $0x18] sm:$0xff]
    %v2251 = vld [vmem:[#allocation8 + $0x20] sm:$0xff]
    %v2252 = vld [vmem:[#allocation8 + $0x28] sm:$0xff]
    %v2253 = vld [vmem:[#allocation8 + $0x30] sm:$0xff]
    %v2254 = vld [vmem:[#allocation8 + $0x38] sm:$0xff]
    %v2255 = vld [vmem:[#allocation8 + $0x40] sm:$0xff]
    %v2256 = vld [vmem:[#allocation8 + $0x48] sm:$0xff]
    %v2257 = vld [vmem:[#allocation8 + $0x50] sm:$0xff]
    %v2258 = vld [vmem:[#allocation8 + $0x58] sm:$0xff]
    %v2259 = vld [vmem:[#allocation8 + $0x60] sm:$0xff]
    %v2260 = vld [vmem:[#allocation8 + $0x68] sm:$0xff]
    %v2261 = vld [vmem:[#allocation8 + $0x70] sm:$0xff]
    %v2262 = vld [vmem:[#allocation8 + $0x78] sm:$0xff]
    %v2263 = vld [vmem:[#allocation8 + $0x80] sm:$0xff]
    %v2264 = vld [vmem:[#allocation8 + $0x88] sm:$0xff]
    %v2265 = vld [vmem:[#allocation8 + $0x90] sm:$0xff]
    %v2266 = vld [vmem:[#allocation8 + $0x98] sm:$0xff]
    %v2267 = vld [vmem:[#allocation8 + $0xa0] sm:$0xff]
    %v2268 = vld [vmem:[#allocation8 + $0xa8] sm:$0xff]
    %v2269 = vld [vmem:[#allocation8 + $0xb0] sm:$0xff]
    %v2270 = vld [vmem:[#allocation8 + $0xb8] sm:$0xff]
    %v2271 = vld [vmem:[#allocation8 + $0xc0] sm:$0xff]
    %v2272 = vld [vmem:[#allocation8 + $0xc8] sm:$0xff]
    %v2273 = vld [vmem:[#allocation8 + $0xd0] sm:$0xff]
    %v2274 = vld [vmem:[#allocation8 + $0xd8] sm:$0xff]
    %v2275 = vld [vmem:[#allocation8 + $0xe0] sm:$0xff]
    %v2276 = vld [vmem:[#allocation8 + $0xe8] sm:$0xff]
    %v2277 = vld [vmem:[#allocation8 + $0xf0] sm:$0xff]
    %v2278 = vld [vmem:[#allocation8 + $0xf8] sm:$0xff]
    %v2279 = vld [vmem:[#allocation8 + $0x100] sm:$0xff]
    %v2280 = vld [vmem:[#allocation8 + $0x108] sm:$0xff]
    %v2281 = vld [vmem:[#allocation8 + $0x110] sm:$0xff]
    %v2282 = vld [vmem:[#allocation8 + $0x118] sm:$0xff]
    %v2283 = vld [vmem:[#allocation8 + $0x120] sm:$0xff]
    %v2284 = vld [vmem:[#allocation8 + $0x128] sm:$0xff]
    %v2285 = vld [vmem:[#allocation8 + $0x130] sm:$0xff]
    %v2286 = vld [vmem:[#allocation8 + $0x138] sm:$0xff]
    %v2287 = vld [vmem:[#allocation8 + $0x140] sm:$0xff]
    %v2288 = vld [vmem:[#allocation8 + $0x148] sm:$0xff]
    %v2289 = vld [vmem:[#allocation8 + $0x150] sm:$0xff]
    %v2290 = vld [vmem:[#allocation8 + $0x158] sm:$0xff]
    %v2291 = vld [vmem:[#allocation8 + $0x160] sm:$0xff]
    %v2292 = vld [vmem:[#allocation8 + $0x168] sm:$0xff]
    %v2293 = vld [vmem:[#allocation8 + $0x170] sm:$0xff]
    %v2294 = vld [vmem:[#allocation8 + $0x178] sm:$0xff]
    %v2295 = vld [vmem:[#allocation8 + $0x180] sm:$0xff]
    %v2296 = vld [vmem:[#allocation8 + $0x188] sm:$0xff]
    %v2297 = vld [vmem:[#allocation8 + $0x190] sm:$0xff]
    %v2298 = vld [vmem:[#allocation8 + $0x198] sm:$0xff]
    %v2299 = vld [vmem:[#allocation8 + $0x1a0] sm:$0xff]
    %v2300 = vld [vmem:[#allocation8 + $0x1a8] sm:$0xff]
    %v2301 = vld [vmem:[#allocation8 + $0x1b0] sm:$0xff]
    %v2302 = vld [vmem:[#allocation8 + $0x1b8] sm:$0xff]
    %v2303 = vld [vmem:[#allocation8 + $0x1c0] sm:$0xff]
    %v2304 = vld [vmem:[#allocation8 + $0x1c8] sm:$0xff]
    %v2305 = vld [vmem:[#allocation8 + $0x1d0] sm:$0xff]
    %v2306 = vld [vmem:[#allocation8 + $0x1d8] sm:$0xff]
    %v2307 = vld [vmem:[#allocation8 + $0x1e0] sm:$0xff]
    %v2308 = vld [vmem:[#allocation8 + $0x1e8] sm:$0xff]
    %v2309 = vld [vmem:[#allocation8 + $0x1f0] sm:$0xff]
    %v2310 = vld [vmem:[#allocation8 + $0x1f8] sm:$0xff]
    %v2311 = vld [vmem:[#allocation8 + $0x200] sm:$0xff]
    %v2312 = vld [vmem:[#allocation8 + $0x208] sm:$0xff]
    %v2313 = vld [vmem:[#allocation8 + $0x210] sm:$0xff]
    %v2314 = vld [vmem:[#allocation8 + $0x218] sm:$0xff]
    %v2315 = vld [vmem:[#allocation8 + $0x220] sm:$0xff]
    %v2316 = vld [vmem:[#allocation8 + $0x228] sm:$0xff]
    %v2317 = vld [vmem:[#allocation8 + $0x230] sm:$0xff]
    %v2318 = vld [vmem:[#allocation8 + $0x238] sm:$0xff]
    %v2319 = vld [vmem:[#allocation8 + $0x240] sm:$0xff]
    %v2320 = vld [vmem:[#allocation8 + $0x248] sm:$0xff]
    %v2321 = vld [vmem:[#allocation8 + $0x250] sm:$0xff]
    %v2322 = vld [vmem:[#allocation8 + $0x258] sm:$0xff]
    %v2323 = vld [vmem:[#allocation8 + $0x260] sm:$0xff]
    %v2324 = vld [vmem:[#allocation8 + $0x268] sm:$0xff]
    %v2325 = vld [vmem:[#allocation8 + $0x270] sm:$0xff]
    %v2326 = vld [vmem:[#allocation8 + $0x278] sm:$0xff]
    %v2327 = vld [vmem:[#allocation8 + $0x280] sm:$0xff]
    %v2328 = vld [vmem:[#allocation8 + $0x288] sm:$0xff]
    %v2329 = vld [vmem:[#allocation8 + $0x290] sm:$0xff]
    %v2330 = vld [vmem:[#allocation8 + $0x298] sm:$0xff]
    %v2331 = vld [vmem:[#allocation8 + $0x2a0] sm:$0xff]
    %v2332 = vld [vmem:[#allocation8 + $0x2a8] sm:$0xff]
    %v2333 = vld [vmem:[#allocation8 + $0x2b0] sm:$0xff]
    %v2334 = vld [vmem:[#allocation8 + $0x2b8] sm:$0xff]
    %v2335 = vld [vmem:[#allocation8 + $0x2c0] sm:$0xff]
    %v2336 = vld [vmem:[#allocation8 + $0x2c8] sm:$0xff]
    %v2337 = vld [vmem:[#allocation8 + $0x2d0] sm:$0xff]
    %v2338 = vld [vmem:[#allocation8 + $0x2d8] sm:$0xff]
    %v2339 = vld [vmem:[#allocation8 + $0x2e0] sm:$0xff]
    %v2340 = vld [vmem:[#allocation8 + $0x2e8] sm:$0xff]
    %v2341 = vld [vmem:[#allocation8 + $0x2f0] sm:$0xff]
    %v2342 = vld [vmem:[#allocation8 + $0x2f8] sm:$0xff]
    %v2343 = vld [vmem:[#allocation8 + $0x300] sm:$0xff]
    %v2344 = vld [vmem:[#allocation8 + $0x308] sm:$0xff]
    %v2345 = vld [vmem:[#allocation8 + $0x310] sm:$0xff]
    %v2346 = vld [vmem:[#allocation8 + $0x318] sm:$0xff]
    %v2347 = vld [vmem:[#allocation8 + $0x320] sm:$0xff]
    %v2348 = vld [vmem:[#allocation8 + $0x328] sm:$0xff]
    %v2349 = vld [vmem:[#allocation8 + $0x330] sm:$0xff]
    %v2350 = vld [vmem:[#allocation8 + $0x338] sm:$0xff]
    %v2351 = vld [vmem:[#allocation8 + $0x340] sm:$0xff]
    %v2352 = vld [vmem:[#allocation8 + $0x348] sm:$0xff]
    %v2353 = vld [vmem:[#allocation8 + $0x350] sm:$0xff]
    %v2354 = vld [vmem:[#allocation8 + $0x358] sm:$0xff]
    %v2355 = vld [vmem:[#allocation8 + $0x360] sm:$0xff]
    %v2356 = vld [vmem:[#allocation8 + $0x368] sm:$0xff]
    %v2357 = vld [vmem:[#allocation8 + $0x370] sm:$0xff]
    %v2358 = vld [vmem:[#allocation8 + $0x378] sm:$0xff]
    %v2359 = vld [vmem:[#allocation8 + $0x380] sm:$0xff]
    %v2360 = vld [vmem:[#allocation8 + $0x388] sm:$0xff]
    %v2361 = vld [vmem:[#allocation8 + $0x390] sm:$0xff]
    %v2362 = vld [vmem:[#allocation8 + $0x398] sm:$0xff]
    %v2363 = vld [vmem:[#allocation8 + $0x3a0] sm:$0xff]
    %v2364 = vld [vmem:[#allocation8 + $0x3a8] sm:$0xff]
    %v2365 = vld [vmem:[#allocation8 + $0x3b0] sm:$0xff]
    %v2366 = vld [vmem:[#allocation8 + $0x3b8] sm:$0xff]
    %v2367 = vld [vmem:[#allocation8 + $0x3c0] sm:$0xff]
    %v2368 = vld [vmem:[#allocation8 + $0x3c8] sm:$0xff]
    %v2369 = vld [vmem:[#allocation8 + $0x3d0] sm:$0xff]
    %v2370 = vld [vmem:[#allocation8 + $0x3d8] sm:$0xff]
    %v2371 = vld [vmem:[#allocation8 + $0x3e0] sm:$0xff]
    %v2372 = vld [vmem:[#allocation8 + $0x3e8] sm:$0xff]
    %v2373 = vld [vmem:[#allocation8 + $0x3f0] sm:$0xff]
    %v2374 = vld [vmem:[#allocation8 + $0x3f8] sm:$0xff]
    %v2375 = vld [vmem:[%s9] sm:$0xf]
    %v2377 = vlaneseq
    %v2378 = vshrl.u32 %v2377, 7
    %v2379 = vsub.s32 0, %v2378
    %v2380 = vrot.slane %v2375, %v2379
    %v2381 = vlaneseq
    %v2382 = vshrl.u32 %v2381, 7
    %v2383 = vsub.s32 1, %v2382
    %v2384 = vrot.slane %v2375, %v2383
    %v2385 = vlaneseq
    %v2386 = vshrl.u32 %v2385, 7
    %v2387 = vsub.s32 2, %v2386
    %v2388 = vrot.slane %v2375, %v2387
    %v2389 = vlaneseq
    %v2390 = vshrl.u32 %v2389, 7
    %v2391 = vsub.s32 3, %v2390
    %v2392 = vrot.slane %v2375, %v2391
    %v2399 = vunpack.c.l.b16 %v2245
    %v2400 = vunpack.c.h.b16 %v2245
    %v2401 = vunpack.c.l.b16 %v2246
    %v2402 = vunpack.c.h.b16 %v2246
    %v2403 = vpack.c.b16 %v2399, %v2399
    %v2404 = vpack.c.b16 %v2400, %v2400
    %v2405 = vpack.c.b16 %v2401, %v2401
    %v2406 = vpack.c.b16 %v2402, %v2402
    %v2539 = vunpack.c.l.b16 %v2247
    %v2540 = vunpack.c.h.b16 %v2247
    %v2541 = vunpack.c.l.b16 %v2248
    %v2542 = vunpack.c.h.b16 %v2248
    %v2543 = vunpack.c.l.b16 %v2249
    %v2544 = vunpack.c.h.b16 %v2249
    %v2545 = vunpack.c.l.b16 %v2250
    %v2546 = vunpack.c.h.b16 %v2250
    %v2547 = vunpack.c.l.b16 %v2251
    %v2548 = vunpack.c.h.b16 %v2251
    %v2549 = vunpack.c.l.b16 %v2252
    %v2550 = vunpack.c.h.b16 %v2252
    %v2551 = vunpack.c.l.b16 %v2253
    %v2552 = vunpack.c.h.b16 %v2253
    %v2553 = vunpack.c.l.b16 %v2254
    %v2554 = vunpack.c.h.b16 %v2254
    %v2555 = vunpack.c.l.b16 %v2255
    %v2556 = vunpack.c.h.b16 %v2255
    %v2557 = vunpack.c.l.b16 %v2256
    %v2558 = vunpack.c.h.b16 %v2256
    %v2559 = vunpack.c.l.b16 %v2257
    %v2560 = vunpack.c.h.b16 %v2257
    %v2561 = vunpack.c.l.b16 %v2258
    %v2562 = vunpack.c.h.b16 %v2258
    %v2563 = vunpack.c.l.b16 %v2259
    %v2564 = vunpack.c.h.b16 %v2259
    %v2565 = vunpack.c.l.b16 %v2260
    %v2566 = vunpack.c.h.b16 %v2260
    %v2567 = vunpack.c.l.b16 %v2261
    %v2568 = vunpack.c.h.b16 %v2261
    %v2569 = vunpack.c.l.b16 %v2262
    %v2570 = vunpack.c.h.b16 %v2262
    %v2571 = vunpack.c.l.b16 %v2263
    %v2572 = vunpack.c.h.b16 %v2263
    %v2573 = vunpack.c.l.b16 %v2264
    %v2574 = vunpack.c.h.b16 %v2264
    %v2575 = vunpack.c.l.b16 %v2265
    %v2576 = vunpack.c.h.b16 %v2265
    %v2577 = vunpack.c.l.b16 %v2266
    %v2578 = vunpack.c.h.b16 %v2266
    %v2579 = vunpack.c.l.b16 %v2267
    %v2580 = vunpack.c.h.b16 %v2267
    %v2581 = vunpack.c.l.b16 %v2268
    %v2582 = vunpack.c.h.b16 %v2268
    %v2583 = vunpack.c.l.b16 %v2269
    %v2584 = vunpack.c.h.b16 %v2269
    %v2585 = vunpack.c.l.b16 %v2270
    %v2586 = vunpack.c.h.b16 %v2270
    %v2587 = vunpack.c.l.b16 %v2271
    %v2588 = vunpack.c.h.b16 %v2271
    %v2589 = vunpack.c.l.b16 %v2272
    %v2590 = vunpack.c.h.b16 %v2272
    %v2591 = vunpack.c.l.b16 %v2273
    %v2592 = vunpack.c.h.b16 %v2273
    %v2593 = vunpack.c.l.b16 %v2274
    %v2594 = vunpack.c.h.b16 %v2274
    %v2595 = vunpack.c.l.b16 %v2275
    %v2596 = vunpack.c.h.b16 %v2275
    %v2597 = vunpack.c.l.b16 %v2276
    %v2598 = vunpack.c.h.b16 %v2276
    %v2599 = vunpack.c.l.b16 %v2277
    %v2600 = vunpack.c.h.b16 %v2277
    %v2601 = vunpack.c.l.b16 %v2278
    %v2602 = vunpack.c.h.b16 %v2278
    %v2603 = vunpack.c.l.b16 %v2279
    %v2604 = vunpack.c.h.b16 %v2279
    %v2605 = vunpack.c.l.b16 %v2280
    %v2606 = vunpack.c.h.b16 %v2280
    %v2607 = vunpack.c.l.b16 %v2281
    %v2608 = vunpack.c.h.b16 %v2281
    %v2609 = vunpack.c.l.b16 %v2282
    %v2610 = vunpack.c.h.b16 %v2282
    %v2611 = vunpack.c.l.b16 %v2283
    %v2612 = vunpack.c.h.b16 %v2283
    %v2613 = vunpack.c.l.b16 %v2284
    %v2614 = vunpack.c.h.b16 %v2284
    %v2615 = vunpack.c.l.b16 %v2285
    %v2616 = vunpack.c.h.b16 %v2285
    %v2617 = vunpack.c.l.b16 %v2286
    %v2618 = vunpack.c.h.b16 %v2286
    %v2619 = vunpack.c.l.b16 %v2287
    %v2620 = vunpack.c.h.b16 %v2287
    %v2621 = vunpack.c.l.b16 %v2288
    %v2622 = vunpack.c.h.b16 %v2288
    %v2623 = vunpack.c.l.b16 %v2289
    %v2624 = vunpack.c.h.b16 %v2289
    %v2625 = vunpack.c.l.b16 %v2290
    %v2626 = vunpack.c.h.b16 %v2290
    %v2627 = vunpack.c.l.b16 %v2291
    %v2628 = vunpack.c.h.b16 %v2291
    %v2629 = vunpack.c.l.b16 %v2292
    %v2630 = vunpack.c.h.b16 %v2292
    %v2631 = vunpack.c.l.b16 %v2293
    %v2632 = vunpack.c.h.b16 %v2293
    %v2633 = vunpack.c.l.b16 %v2294
    %v2634 = vunpack.c.h.b16 %v2294
    %v2635 = vunpack.c.l.b16 %v2295
    %v2636 = vunpack.c.h.b16 %v2295
    %v2637 = vunpack.c.l.b16 %v2296
    %v2638 = vunpack.c.h.b16 %v2296
    %v2639 = vunpack.c.l.b16 %v2297
    %v2640 = vunpack.c.h.b16 %v2297
    %v2641 = vunpack.c.l.b16 %v2298
    %v2642 = vunpack.c.h.b16 %v2298
    %v2643 = vunpack.c.l.b16 %v2299
    %v2644 = vunpack.c.h.b16 %v2299
    %v2645 = vunpack.c.l.b16 %v2300
    %v2646 = vunpack.c.h.b16 %v2300
    %v2647 = vunpack.c.l.b16 %v2301
    %v2648 = vunpack.c.h.b16 %v2301
    %v2649 = vunpack.c.l.b16 %v2302
    %v2650 = vunpack.c.h.b16 %v2302
    %v2651 = vunpack.c.l.b16 %v2303
    %v2652 = vunpack.c.h.b16 %v2303
    %v2653 = vunpack.c.l.b16 %v2304
    %v2654 = vunpack.c.h.b16 %v2304
    %v2655 = vunpack.c.l.b16 %v2305
    %v2656 = vunpack.c.h.b16 %v2305
    %v2657 = vunpack.c.l.b16 %v2306
    %v2658 = vunpack.c.h.b16 %v2306
    %v2659 = vunpack.c.l.b16 %v2307
    %v2660 = vunpack.c.h.b16 %v2307
    %v2661 = vunpack.c.l.b16 %v2308
    %v2662 = vunpack.c.h.b16 %v2308
    %v2663 = vunpack.c.l.b16 %v2309
    %v2664 = vunpack.c.h.b16 %v2309
    %v2665 = vunpack.c.l.b16 %v2310
    %v2666 = vunpack.c.h.b16 %v2310
    %v2667 = vunpack.c.l.b16 %v2311
    %v2668 = vunpack.c.h.b16 %v2311
    %v2669 = vunpack.c.l.b16 %v2312
    %v2670 = vunpack.c.h.b16 %v2312
    %v2671 = vunpack.c.l.b16 %v2313
    %v2672 = vunpack.c.h.b16 %v2313
    %v2673 = vunpack.c.l.b16 %v2314
    %v2674 = vunpack.c.h.b16 %v2314
    %v2675 = vunpack.c.l.b16 %v2315
    %v2676 = vunpack.c.h.b16 %v2315
    %v2677 = vunpack.c.l.b16 %v2316
    %v2678 = vunpack.c.h.b16 %v2316
    %v2679 = vunpack.c.l.b16 %v2317
    %v2680 = vunpack.c.h.b16 %v2317
    %v2681 = vunpack.c.l.b16 %v2318
    %v2682 = vunpack.c.h.b16 %v2318
    %v2683 = vunpack.c.l.b16 %v2319
    %v2684 = vunpack.c.h.b16 %v2319
    %v2685 = vunpack.c.l.b16 %v2320
    %v2686 = vunpack.c.h.b16 %v2320
    %v2687 = vunpack.c.l.b16 %v2321
    %v2688 = vunpack.c.h.b16 %v2321
    %v2689 = vunpack.c.l.b16 %v2322
    %v2690 = vunpack.c.h.b16 %v2322
    %v2691 = vunpack.c.l.b16 %v2323
    %v2692 = vunpack.c.h.b16 %v2323
    %v2693 = vunpack.c.l.b16 %v2324
    %v2694 = vunpack.c.h.b16 %v2324
    %v2695 = vunpack.c.l.b16 %v2325
    %v2696 = vunpack.c.h.b16 %v2325
    %v2697 = vunpack.c.l.b16 %v2326
    %v2698 = vunpack.c.h.b16 %v2326
    %v2699 = vunpack.c.l.b16 %v2327
    %v2700 = vunpack.c.h.b16 %v2327
    %v2701 = vunpack.c.l.b16 %v2328
    %v2702 = vunpack.c.h.b16 %v2328
    %v2703 = vunpack.c.l.b16 %v2329
    %v2704 = vunpack.c.h.b16 %v2329
    %v2705 = vunpack.c.l.b16 %v2330
    %v2706 = vunpack.c.h.b16 %v2330
    %v2707 = vunpack.c.l.b16 %v2331
    %v2708 = vunpack.c.h.b16 %v2331
    %v2709 = vunpack.c.l.b16 %v2332
    %v2710 = vunpack.c.h.b16 %v2332
    %v2711 = vunpack.c.l.b16 %v2333
    %v2712 = vunpack.c.h.b16 %v2333
    %v2713 = vunpack.c.l.b16 %v2334
    %v2714 = vunpack.c.h.b16 %v2334
    %v2715 = vunpack.c.l.b16 %v2335
    %v2716 = vunpack.c.h.b16 %v2335
    %v2717 = vunpack.c.l.b16 %v2336
    %v2718 = vunpack.c.h.b16 %v2336
    %v2719 = vunpack.c.l.b16 %v2337
    %v2720 = vunpack.c.h.b16 %v2337
    %v2721 = vunpack.c.l.b16 %v2338
    %v2722 = vunpack.c.h.b16 %v2338
    %v2723 = vunpack.c.l.b16 %v2339
    %v2724 = vunpack.c.h.b16 %v2339
    %v2725 = vunpack.c.l.b16 %v2340
    %v2726 = vunpack.c.h.b16 %v2340
    %v2727 = vunpack.c.l.b16 %v2341
    %v2728 = vunpack.c.h.b16 %v2341
    %v2729 = vunpack.c.l.b16 %v2342
    %v2730 = vunpack.c.h.b16 %v2342
    %v2731 = vunpack.c.l.b16 %v2343
    %v2732 = vunpack.c.h.b16 %v2343
    %v2733 = vunpack.c.l.b16 %v2344
    %v2734 = vunpack.c.h.b16 %v2344
    %v2735 = vunpack.c.l.b16 %v2345
    %v2736 = vunpack.c.h.b16 %v2345
    %v2737 = vunpack.c.l.b16 %v2346
    %v2738 = vunpack.c.h.b16 %v2346
    %v2739 = vunpack.c.l.b16 %v2347
    %v2740 = vunpack.c.h.b16 %v2347
    %v2741 = vunpack.c.l.b16 %v2348
    %v2742 = vunpack.c.h.b16 %v2348
    %v2743 = vunpack.c.l.b16 %v2349
    %v2744 = vunpack.c.h.b16 %v2349
    %v2745 = vunpack.c.l.b16 %v2350
    %v2746 = vunpack.c.h.b16 %v2350
    %v2747 = vunpack.c.l.b16 %v2351
    %v2748 = vunpack.c.h.b16 %v2351
    %v2749 = vunpack.c.l.b16 %v2352
    %v2750 = vunpack.c.h.b16 %v2352
    %v2751 = vunpack.c.l.b16 %v2353
    %v2752 = vunpack.c.h.b16 %v2353
    %v2753 = vunpack.c.l.b16 %v2354
    %v2754 = vunpack.c.h.b16 %v2354
    %v2755 = vunpack.c.l.b16 %v2355
    %v2756 = vunpack.c.h.b16 %v2355
    %v2757 = vunpack.c.l.b16 %v2356
    %v2758 = vunpack.c.h.b16 %v2356
    %v2759 = vunpack.c.l.b16 %v2357
    %v2760 = vunpack.c.h.b16 %v2357
    %v2761 = vunpack.c.l.b16 %v2358
    %v2762 = vunpack.c.h.b16 %v2358
    %v2763 = vunpack.c.l.b16 %v2359
    %v2764 = vunpack.c.h.b16 %v2359
    %v2765 = vunpack.c.l.b16 %v2360
    %v2766 = vunpack.c.h.b16 %v2360
    %v2767 = vunpack.c.l.b16 %v2361
    %v2768 = vunpack.c.h.b16 %v2361
    %v2769 = vunpack.c.l.b16 %v2362
    %v2770 = vunpack.c.h.b16 %v2362
    %v2771 = vunpack.c.l.b16 %v2363
    %v2772 = vunpack.c.h.b16 %v2363
    %v2773 = vunpack.c.l.b16 %v2364
    %v2774 = vunpack.c.h.b16 %v2364
    %v2775 = vunpack.c.l.b16 %v2365
    %v2776 = vunpack.c.h.b16 %v2365
    %v2777 = vunpack.c.l.b16 %v2366
    %v2778 = vunpack.c.h.b16 %v2366
    %v2779 = vunpack.c.l.b16 %v2367
    %v2780 = vunpack.c.h.b16 %v2367
    %v2781 = vunpack.c.l.b16 %v2368
    %v2782 = vunpack.c.h.b16 %v2368
    %v2783 = vunpack.c.l.b16 %v2369
    %v2784 = vunpack.c.h.b16 %v2369
    %v2785 = vunpack.c.l.b16 %v2370
    %v2786 = vunpack.c.h.b16 %v2370
    %v2787 = vunpack.c.l.b16 %v2371
    %v2788 = vunpack.c.h.b16 %v2371
    %v2789 = vunpack.c.l.b16 %v2372
    %v2790 = vunpack.c.h.b16 %v2372
    %v2791 = vunpack.c.l.b16 %v2373
    %v2792 = vunpack.c.h.b16 %v2373
    %v2793 = vunpack.c.l.b16 %v2374
    %v2794 = vunpack.c.h.b16 %v2374
    %v2795 = vpack.c.b16 %v2543, %v2539
    %v2796 = vpack.c.b16 %v2544, %v2540
    %v2797 = vpack.c.b16 %v2545, %v2541
    %v2798 = vpack.c.b16 %v2546, %v2542
    %v2799 = vpack.c.b16 %v2551, %v2547
    %v2800 = vpack.c.b16 %v2552, %v2548
    %v2801 = vpack.c.b16 %v2553, %v2549
    %v2802 = vpack.c.b16 %v2554, %v2550
    %v2803 = vpack.c.b16 %v2559, %v2555
    %v2804 = vpack.c.b16 %v2560, %v2556
    %v2805 = vpack.c.b16 %v2561, %v2557
    %v2806 = vpack.c.b16 %v2562, %v2558
    %v2807 = vpack.c.b16 %v2567, %v2563
    %v2808 = vpack.c.b16 %v2568, %v2564
    %v2809 = vpack.c.b16 %v2569, %v2565
    %v2810 = vpack.c.b16 %v2570, %v2566
    %v2811 = vpack.c.b16 %v2575, %v2571
    %v2812 = vpack.c.b16 %v2576, %v2572
    %v2813 = vpack.c.b16 %v2577, %v2573
    %v2814 = vpack.c.b16 %v2578, %v2574
    %v2815 = vpack.c.b16 %v2583, %v2579
    %v2816 = vpack.c.b16 %v2584, %v2580
    %v2817 = vpack.c.b16 %v2585, %v2581
    %v2818 = vpack.c.b16 %v2586, %v2582
    %v2819 = vpack.c.b16 %v2591, %v2587
    %v2820 = vpack.c.b16 %v2592, %v2588
    %v2821 = vpack.c.b16 %v2593, %v2589
    %v2822 = vpack.c.b16 %v2594, %v2590
    %v2823 = vpack.c.b16 %v2599, %v2595
    %v2824 = vpack.c.b16 %v2600, %v2596
    %v2825 = vpack.c.b16 %v2601, %v2597
    %v2826 = vpack.c.b16 %v2602, %v2598
    %v2827 = vpack.c.b16 %v2607, %v2603
    %v2828 = vpack.c.b16 %v2608, %v2604
    %v2829 = vpack.c.b16 %v2609, %v2605
    %v2830 = vpack.c.b16 %v2610, %v2606
    %v2831 = vpack.c.b16 %v2615, %v2611
    %v2832 = vpack.c.b16 %v2616, %v2612
    %v2833 = vpack.c.b16 %v2617, %v2613
    %v2834 = vpack.c.b16 %v2618, %v2614
    %v2835 = vpack.c.b16 %v2623, %v2619
    %v2836 = vpack.c.b16 %v2624, %v2620
    %v2837 = vpack.c.b16 %v2625, %v2621
    %v2838 = vpack.c.b16 %v2626, %v2622
    %v2839 = vpack.c.b16 %v2631, %v2627
    %v2840 = vpack.c.b16 %v2632, %v2628
    %v2841 = vpack.c.b16 %v2633, %v2629
    %v2842 = vpack.c.b16 %v2634, %v2630
    %v2843 = vpack.c.b16 %v2639, %v2635
    %v2844 = vpack.c.b16 %v2640, %v2636
    %v2845 = vpack.c.b16 %v2641, %v2637
    %v2846 = vpack.c.b16 %v2642, %v2638
    %v2847 = vpack.c.b16 %v2647, %v2643
    %v2848 = vpack.c.b16 %v2648, %v2644
    %v2849 = vpack.c.b16 %v2649, %v2645
    %v2850 = vpack.c.b16 %v2650, %v2646
    %v2851 = vpack.c.b16 %v2655, %v2651
    %v2852 = vpack.c.b16 %v2656, %v2652
    %v2853 = vpack.c.b16 %v2657, %v2653
    %v2854 = vpack.c.b16 %v2658, %v2654
    %v2855 = vpack.c.b16 %v2663, %v2659
    %v2856 = vpack.c.b16 %v2664, %v2660
    %v2857 = vpack.c.b16 %v2665, %v2661
    %v2858 = vpack.c.b16 %v2666, %v2662
    %v2859 = vpack.c.b16 %v2671, %v2667
    %v2860 = vpack.c.b16 %v2672, %v2668
    %v2861 = vpack.c.b16 %v2673, %v2669
    %v2862 = vpack.c.b16 %v2674, %v2670
    %v2863 = vpack.c.b16 %v2679, %v2675
    %v2864 = vpack.c.b16 %v2680, %v2676
    %v2865 = vpack.c.b16 %v2681, %v2677
    %v2866 = vpack.c.b16 %v2682, %v2678
    %v2867 = vpack.c.b16 %v2687, %v2683
    %v2868 = vpack.c.b16 %v2688, %v2684
    %v2869 = vpack.c.b16 %v2689, %v2685
    %v2870 = vpack.c.b16 %v2690, %v2686
    %v2871 = vpack.c.b16 %v2695, %v2691
    %v2872 = vpack.c.b16 %v2696, %v2692
    %v2873 = vpack.c.b16 %v2697, %v2693
    %v2874 = vpack.c.b16 %v2698, %v2694
    %v2875 = vpack.c.b16 %v2703, %v2699
    %v2876 = vpack.c.b16 %v2704, %v2700
    %v2877 = vpack.c.b16 %v2705, %v2701
    %v2878 = vpack.c.b16 %v2706, %v2702
    %v2879 = vpack.c.b16 %v2711, %v2707
    %v2880 = vpack.c.b16 %v2712, %v2708
    %v2881 = vpack.c.b16 %v2713, %v2709
    %v2882 = vpack.c.b16 %v2714, %v2710
    %v2883 = vpack.c.b16 %v2719, %v2715
    %v2884 = vpack.c.b16 %v2720, %v2716
    %v2885 = vpack.c.b16 %v2721, %v2717
    %v2886 = vpack.c.b16 %v2722, %v2718
    %v2887 = vpack.c.b16 %v2727, %v2723
    %v2888 = vpack.c.b16 %v2728, %v2724
    %v2889 = vpack.c.b16 %v2729, %v2725
    %v2890 = vpack.c.b16 %v2730, %v2726
    %v2891 = vpack.c.b16 %v2735, %v2731
    %v2892 = vpack.c.b16 %v2736, %v2732
    %v2893 = vpack.c.b16 %v2737, %v2733
    %v2894 = vpack.c.b16 %v2738, %v2734
    %v2895 = vpack.c.b16 %v2743, %v2739
    %v2896 = vpack.c.b16 %v2744, %v2740
    %v2897 = vpack.c.b16 %v2745, %v2741
    %v2898 = vpack.c.b16 %v2746, %v2742
    %v2899 = vpack.c.b16 %v2751, %v2747
    %v2900 = vpack.c.b16 %v2752, %v2748
    %v2901 = vpack.c.b16 %v2753, %v2749
    %v2902 = vpack.c.b16 %v2754, %v2750
    %v2903 = vpack.c.b16 %v2759, %v2755
    %v2904 = vpack.c.b16 %v2760, %v2756
    %v2905 = vpack.c.b16 %v2761, %v2757
    %v2906 = vpack.c.b16 %v2762, %v2758
    %v2907 = vpack.c.b16 %v2767, %v2763
    %v2908 = vpack.c.b16 %v2768, %v2764
    %v2909 = vpack.c.b16 %v2769, %v2765
    %v2910 = vpack.c.b16 %v2770, %v2766
    %v2911 = vpack.c.b16 %v2775, %v2771
    %v2912 = vpack.c.b16 %v2776, %v2772
    %v2913 = vpack.c.b16 %v2777, %v2773
    %v2914 = vpack.c.b16 %v2778, %v2774
    %v2915 = vpack.c.b16 %v2783, %v2779
    %v2916 = vpack.c.b16 %v2784, %v2780
    %v2917 = vpack.c.b16 %v2785, %v2781
    %v2918 = vpack.c.b16 %v2786, %v2782
    %v2919 = vpack.c.b16 %v2791, %v2787
    %v2920 = vpack.c.b16 %v2792, %v2788
    %v2921 = vpack.c.b16 %v2793, %v2789
    %v2922 = vpack.c.b16 %v2794, %v2790
    %3051 = vmatprep.subr.bf16.mxu0 %v2796
    %3052 = vmatpush1.bf16.msra.mxu0 %v2795
    %3053 = vmatprep.subr.bf16.mxu0 %v2800
    %3054 = vmatpush1.bf16.msra.mxu0 %v2799
    %3055 = vmatprep.subr.bf16.mxu0 %v2804
    %3056 = vmatpush1.bf16.msra.mxu0 %v2803
    %3057 = vmatprep.subr.bf16.mxu0 %v2808
    %3058 = vmatpush1.bf16.msra.mxu0 %v2807
    %3059 = vmatprep.subr.bf16.mxu0 %v2812
    %3060 = vmatpush1.bf16.msra.mxu0 %v2811
    %3061 = vmatprep.subr.bf16.mxu0 %v2816
    %3062 = vmatpush1.bf16.msra.mxu0 %v2815
    %3063 = vmatprep.subr.bf16.mxu0 %v2820
    %3064 = vmatpush1.bf16.msra.mxu0 %v2819
    %3065 = vmatprep.subr.bf16.mxu0 %v2824
    %3066 = vmatpush1.bf16.msra.mxu0 %v2823
    %3067 = vmatprep.subr.bf16.mxu0 %v2828
    %3068 = vmatpush1.bf16.msra.mxu0 %v2827
    %3069 = vmatprep.subr.bf16.mxu0 %v2832
    %3070 = vmatpush1.bf16.msra.mxu0 %v2831
    %3071 = vmatprep.subr.bf16.mxu0 %v2836
    %3072 = vmatpush1.bf16.msra.mxu0 %v2835
    %3073 = vmatprep.subr.bf16.mxu0 %v2840
    %3074 = vmatpush1.bf16.msra.mxu0 %v2839
    %3075 = vmatprep.subr.bf16.mxu0 %v2844
    %3076 = vmatpush1.bf16.msra.mxu0 %v2843
    %3077 = vmatprep.subr.bf16.mxu0 %v2848
    %3078 = vmatpush1.bf16.msra.mxu0 %v2847
    %3079 = vmatprep.subr.bf16.mxu0 %v2852
    %3080 = vmatpush1.bf16.msra.mxu0 %v2851
    %3081 = vmatprep.subr.bf16.mxu0 %v2856
    %3082 = vmatpush1.bf16.msra.mxu0 %v2855
    %3083 = vmatprep.mubr.bf16.mxu0 %v2404
    %3084 = vmatmul.mubr.bf16.gmra.mrb[0].mxu0 %v2403
    %v3085 = vpop.f32.mrb[0].mxu0
    %v3086 = vadd.f32 %v2380, %v3085
    %v3087 = vpop.f32.mrb[0].mxu0
    %v3088 = vadd.f32 %v2384, %v3087
    %v3089 = vpop.f32.mrb[0].mxu0
    %v3090 = vpop.f32.mrb[0].mxu0
    %3091 = vdwg.mxu0
    %3092 = vmatprep.subr.bf16.mxu0 %v2860
    %3093 = vmatpush1.bf16.msra.mxu0 %v2859
    %3094 = vmatprep.subr.bf16.mxu0 %v2864
    %3095 = vmatpush1.bf16.msra.mxu0 %v2863
    %3096 = vmatprep.subr.bf16.mxu0 %v2868
    %3097 = vmatpush1.bf16.msra.mxu0 %v2867
    %3098 = vmatprep.subr.bf16.mxu0 %v2872
    %3099 = vmatpush1.bf16.msra.mxu0 %v2871
    %3100 = vmatprep.subr.bf16.mxu0 %v2876
    %3101 = vmatpush1.bf16.msra.mxu0 %v2875
    %3102 = vmatprep.subr.bf16.mxu0 %v2880
    %3103 = vmatpush1.bf16.msra.mxu0 %v2879
    %3104 = vmatprep.subr.bf16.mxu0 %v2884
    %3105 = vmatpush1.bf16.msra.mxu0 %v2883
    %3106 = vmatprep.subr.bf16.mxu0 %v2888
    %3107 = vmatpush1.bf16.msra.mxu0 %v2887
    %3108 = vmatprep.subr.bf16.mxu0 %v2892
    %3109 = vmatpush1.bf16.msra.mxu0 %v2891
    %3110 = vmatprep.subr.bf16.mxu0 %v2896
    %3111 = vmatpush1.bf16.msra.mxu0 %v2895
    %3112 = vmatprep.subr.bf16.mxu0 %v2900
    %3113 = vmatpush1.bf16.msra.mxu0 %v2899
    %3114 = vmatprep.subr.bf16.mxu0 %v2904
    %3115 = vmatpush1.bf16.msra.mxu0 %v2903
    %3116 = vmatprep.subr.bf16.mxu0 %v2908
    %3117 = vmatpush1.bf16.msra.mxu0 %v2907
    %3118 = vmatprep.subr.bf16.mxu0 %v2912
    %3119 = vmatpush1.bf16.msra.mxu0 %v2911
    %3120 = vmatprep.subr.bf16.mxu0 %v2916
    %3121 = vmatpush1.bf16.msra.mxu0 %v2915
    %3122 = vmatprep.subr.bf16.mxu0 %v2920
    %3123 = vmatpush1.bf16.msra.mxu0 %v2919
    %3124 = vmatprep.mubr.bf16.mxu0 %v2406
    %3125 = vmatmul.mubr.bf16.gmra.mrb[0].mxu0 %v2405
    %v3126 = vpop.f32.mrb[0].mxu0
    %v3127 = vadd.f32 %v3086, %v3126
    %v3128 = vpop.f32.mrb[0].mxu0
    %v3129 = vadd.f32 %v3088, %v3128
    %v3130 = vpop.f32.mrb[0].mxu0
    %v3131 = vpop.f32.mrb[0].mxu0
    %3132 = vdwg.mxu0
    %3133 = vmatprep.subr.bf16.mxu0 %v2798
    %3134 = vmatpush1.bf16.msra.mxu0 %v2797
    %3135 = vmatprep.subr.bf16.mxu0 %v2802
    %3136 = vmatpush1.bf16.msra.mxu0 %v2801
    %3137 = vmatprep.subr.bf16.mxu0 %v2806
    %3138 = vmatpush1.bf16.msra.mxu0 %v2805
    %3139 = vmatprep.subr.bf16.mxu0 %v2810
    %3140 = vmatpush1.bf16.msra.mxu0 %v2809
    %3141 = vmatprep.subr.bf16.mxu0 %v2814
    %3142 = vmatpush1.bf16.msra.mxu0 %v2813
    %3143 = vmatprep.subr.bf16.mxu0 %v2818
    %3144 = vmatpush1.bf16.msra.mxu0 %v2817
    %3145 = vmatprep.subr.bf16.mxu0 %v2822
    %3146 = vmatpush1.bf16.msra.mxu0 %v2821
    %3147 = vmatprep.subr.bf16.mxu0 %v2826
    %3148 = vmatpush1.bf16.msra.mxu0 %v2825
    %3149 = vmatprep.subr.bf16.mxu0 %v2830
    %3150 = vmatpush1.bf16.msra.mxu0 %v2829
    %3151 = vmatprep.subr.bf16.mxu0 %v2834
    %3152 = vmatpush1.bf16.msra.mxu0 %v2833
    %3153 = vmatprep.subr.bf16.mxu0 %v2838
    %3154 = vmatpush1.bf16.msra.mxu0 %v2837
    %3155 = vmatprep.subr.bf16.mxu0 %v2842
    %3156 = vmatpush1.bf16.msra.mxu0 %v2841
    %3157 = vmatprep.subr.bf16.mxu0 %v2846
    %3158 = vmatpush1.bf16.msra.mxu0 %v2845
    %3159 = vmatprep.subr.bf16.mxu0 %v2850
    %3160 = vmatpush1.bf16.msra.mxu0 %v2849
    %3161 = vmatprep.subr.bf16.mxu0 %v2854
    %3162 = vmatpush1.bf16.msra.mxu0 %v2853
    %3163 = vmatprep.subr.bf16.mxu0 %v2858
    %3164 = vmatpush1.bf16.msra.mxu0 %v2857
    %3165 = vmatprep.mubr.bf16.mxu0 %v2404
    %3166 = vmatmul.mubr.bf16.gmra.mrb[0].mxu0 %v2403
    %v3167 = vpop.f32.mrb[0].mxu0
    %v3168 = vadd.f32 %v2388, %v3167
    %v3169 = vpop.f32.mrb[0].mxu0
    %v3170 = vadd.f32 %v2392, %v3169
    %v3171 = vpop.f32.mrb[0].mxu0
    %v3172 = vpop.f32.mrb[0].mxu0
    %3173 = vdwg.mxu0
    %3174 = vmatprep.subr.bf16.mxu0 %v2862
    %3175 = vmatpush1.bf16.msra.mxu0 %v2861
    %3176 = vmatprep.subr.bf16.mxu0 %v2866
    %3177 = vmatpush1.bf16.msra.mxu0 %v2865
    %3178 = vmatprep.subr.bf16.mxu0 %v2870
    %3179 = vmatpush1.bf16.msra.mxu0 %v2869
    %3180 = vmatprep.subr.bf16.mxu0 %v2874
    %3181 = vmatpush1.bf16.msra.mxu0 %v2873
    %3182 = vmatprep.subr.bf16.mxu0 %v2878
    %3183 = vmatpush1.bf16.msra.mxu0 %v2877
    %3184 = vmatprep.subr.bf16.mxu0 %v2882
    %3185 = vmatpush1.bf16.msra.mxu0 %v2881
    %3186 = vmatprep.subr.bf16.mxu0 %v2886
    %3187 = vmatpush1.bf16.msra.mxu0 %v2885
    %3188 = vmatprep.subr.bf16.mxu0 %v2890
    %3189 = vmatpush1.bf16.msra.mxu0 %v2889
    %3190 = vmatprep.subr.bf16.mxu0 %v2894
    %3191 = vmatpush1.bf16.msra.mxu0 %v2893
    %3192 = vmatprep.subr.bf16.mxu0 %v2898
    %3193 = vmatpush1.bf16.msra.mxu0 %v2897
    %3194 = vmatprep.subr.bf16.mxu0 %v2902
    %3195 = vmatpush1.bf16.msra.mxu0 %v2901
    %3196 = vmatprep.subr.bf16.mxu0 %v2906
    %3197 = vmatpush1.bf16.msra.mxu0 %v2905
    %3198 = vmatprep.subr.bf16.mxu0 %v2910
    %3199 = vmatpush1.bf16.msra.mxu0 %v2909
    %3200 = vmatprep.subr.bf16.mxu0 %v2914
    %3201 = vmatpush1.bf16.msra.mxu0 %v2913
    %3202 = vmatprep.subr.bf16.mxu0 %v2918
    %3203 = vmatpush1.bf16.msra.mxu0 %v2917
    %3204 = vmatprep.subr.bf16.mxu0 %v2922
    %3205 = vmatpush1.bf16.msra.mxu0 %v2921
    %3206 = vmatprep.mubr.bf16.mxu0 %v2406
    %3207 = vmatmul.mubr.bf16.gmra.mrb[0].mxu0 %v2405
    %v3208 = vpop.f32.mrb[0].mxu0
    %v3209 = vadd.f32 %v3168, %v3208
    %v3210 = vpop.f32.mrb[0].mxu0
    %v3211 = vadd.f32 %v3170, %v3210
    %v3212 = vpop.f32.mrb[0].mxu0
    %v3213 = vpop.f32.mrb[0].mxu0
    %3214 = vdwg.mxu0
    %v3215 = vmax.f32 %v3127, 0.0
    %v3216 = vmax.f32 %v3129, 0.0
    %v3217 = vmax.f32 %v3209, 0.0
    %v3218 = vmax.f32 %v3211, 0.0
    %v3219 = vpack.c.bf16 %v3215, %v3215
    %v3220 = vpack.c.bf16 %v3216, %v3216
    %v3221 = vpack.c.bf16 %v3217, %v3217
    %v3222 = vpack.c.bf16 %v3218, %v3218
    %v3223 = vld [vmem:[#allocation10] sm:$0xff]
    %v3224 = vld [vmem:[#allocation10 + $0x8] sm:$0xff]
    %v3225 = vld [vmem:[#allocation10 + $0x10] sm:$0xff]
    %v3226 = vld [vmem:[#allocation10 + $0x18] sm:$0xff]
    %v3227 = vld [vmem:[#allocation10 + $0x20] sm:$0xff]
    %v3228 = vld [vmem:[#allocation10 + $0x28] sm:$0xff]
    %v3229 = vld [vmem:[#allocation10 + $0x30] sm:$0xff]
    %v3230 = vld [vmem:[#allocation10 + $0x38] sm:$0xff]
    %v3231 = vld [vmem:[#allocation10 + $0x40] sm:$0xff]
    %v3232 = vld [vmem:[#allocation10 + $0x48] sm:$0xff]
    %v3233 = vld [vmem:[#allocation10 + $0x50] sm:$0xff]
    %v3234 = vld [vmem:[#allocation10 + $0x58] sm:$0xff]
    %v3235 = vld [vmem:[#allocation10 + $0x60] sm:$0xff]
    %v3236 = vld [vmem:[#allocation10 + $0x68] sm:$0xff]
    %v3237 = vld [vmem:[#allocation10 + $0x70] sm:$0xff]
    %v3238 = vld [vmem:[#allocation10 + $0x78] sm:$0xff]
    %v3239 = vld [vmem:[#allocation10 + $0x80] sm:$0xff]
    %v3240 = vld [vmem:[#allocation10 + $0x88] sm:$0xff]
    %v3241 = vld [vmem:[#allocation10 + $0x90] sm:$0xff]
    %v3242 = vld [vmem:[#allocation10 + $0x98] sm:$0xff]
    %v3243 = vld [vmem:[#allocation10 + $0xa0] sm:$0xff]
    %v3244 = vld [vmem:[#allocation10 + $0xa8] sm:$0xff]
    %v3245 = vld [vmem:[#allocation10 + $0xb0] sm:$0xff]
    %v3246 = vld [vmem:[#allocation10 + $0xb8] sm:$0xff]
    %v3247 = vld [vmem:[#allocation10 + $0xc0] sm:$0xff]
    %v3248 = vld [vmem:[#allocation10 + $0xc8] sm:$0xff]
    %v3249 = vld [vmem:[#allocation10 + $0xd0] sm:$0xff]
    %v3250 = vld [vmem:[#allocation10 + $0xd8] sm:$0xff]
    %v3251 = vld [vmem:[#allocation10 + $0xe0] sm:$0xff]
    %v3252 = vld [vmem:[#allocation10 + $0xe8] sm:$0xff]
    %v3253 = vld [vmem:[#allocation10 + $0xf0] sm:$0xff]
    %v3254 = vld [vmem:[#allocation10 + $0xf8] sm:$0xff]
    %v3255 = vld [vmem:[#allocation10 + $0x100] sm:$0xff]
    %v3256 = vld [vmem:[#allocation10 + $0x108] sm:$0xff]
    %v3257 = vld [vmem:[#allocation10 + $0x110] sm:$0xff]
    %v3258 = vld [vmem:[#allocation10 + $0x118] sm:$0xff]
    %v3259 = vld [vmem:[#allocation10 + $0x120] sm:$0xff]
    %v3260 = vld [vmem:[#allocation10 + $0x128] sm:$0xff]
    %v3261 = vld [vmem:[#allocation10 + $0x130] sm:$0xff]
    %v3262 = vld [vmem:[#allocation10 + $0x138] sm:$0xff]
    %v3263 = vld [vmem:[#allocation10 + $0x140] sm:$0xff]
    %v3264 = vld [vmem:[#allocation10 + $0x148] sm:$0xff]
    %v3265 = vld [vmem:[#allocation10 + $0x150] sm:$0xff]
    %v3266 = vld [vmem:[#allocation10 + $0x158] sm:$0xff]
    %v3267 = vld [vmem:[#allocation10 + $0x160] sm:$0xff]
    %v3268 = vld [vmem:[#allocation10 + $0x168] sm:$0xff]
    %v3269 = vld [vmem:[#allocation10 + $0x170] sm:$0xff]
    %v3270 = vld [vmem:[#allocation10 + $0x178] sm:$0xff]
    %v3271 = vld [vmem:[#allocation10 + $0x180] sm:$0xff]
    %v3272 = vld [vmem:[#allocation10 + $0x188] sm:$0xff]
    %v3273 = vld [vmem:[#allocation10 + $0x190] sm:$0xff]
    %v3274 = vld [vmem:[#allocation10 + $0x198] sm:$0xff]
    %v3275 = vld [vmem:[#allocation10 + $0x1a0] sm:$0xff]
    %v3276 = vld [vmem:[#allocation10 + $0x1a8] sm:$0xff]
    %v3277 = vld [vmem:[#allocation10 + $0x1b0] sm:$0xff]
    %v3278 = vld [vmem:[#allocation10 + $0x1b8] sm:$0xff]
    %v3279 = vld [vmem:[#allocation10 + $0x1c0] sm:$0xff]
    %v3280 = vld [vmem:[#allocation10 + $0x1c8] sm:$0xff]
    %v3281 = vld [vmem:[#allocation10 + $0x1d0] sm:$0xff]
    %v3282 = vld [vmem:[#allocation10 + $0x1d8] sm:$0xff]
    %v3283 = vld [vmem:[#allocation10 + $0x1e0] sm:$0xff]
    %v3284 = vld [vmem:[#allocation10 + $0x1e8] sm:$0xff]
    %v3285 = vld [vmem:[#allocation10 + $0x1f0] sm:$0xff]
    %v3286 = vld [vmem:[#allocation10 + $0x1f8] sm:$0xff]
    %v3287 = vld [vmem:[#allocation10 + $0x200] sm:$0xff]
    %v3288 = vld [vmem:[#allocation10 + $0x208] sm:$0xff]
    %v3289 = vld [vmem:[#allocation10 + $0x210] sm:$0xff]
    %v3290 = vld [vmem:[#allocation10 + $0x218] sm:$0xff]
    %v3291 = vld [vmem:[#allocation10 + $0x220] sm:$0xff]
    %v3292 = vld [vmem:[#allocation10 + $0x228] sm:$0xff]
    %v3293 = vld [vmem:[#allocation10 + $0x230] sm:$0xff]
    %v3294 = vld [vmem:[#allocation10 + $0x238] sm:$0xff]
    %v3295 = vld [vmem:[#allocation10 + $0x240] sm:$0xff]
    %v3296 = vld [vmem:[#allocation10 + $0x248] sm:$0xff]
    %v3297 = vld [vmem:[#allocation10 + $0x250] sm:$0xff]
    %v3298 = vld [vmem:[#allocation10 + $0x258] sm:$0xff]
    %v3299 = vld [vmem:[#allocation10 + $0x260] sm:$0xff]
    %v3300 = vld [vmem:[#allocation10 + $0x268] sm:$0xff]
    %v3301 = vld [vmem:[#allocation10 + $0x270] sm:$0xff]
    %v3302 = vld [vmem:[#allocation10 + $0x278] sm:$0xff]
    %v3303 = vld [vmem:[#allocation10 + $0x280] sm:$0xff]
    %v3304 = vld [vmem:[#allocation10 + $0x288] sm:$0xff]
    %v3305 = vld [vmem:[#allocation10 + $0x290] sm:$0xff]
    %v3306 = vld [vmem:[#allocation10 + $0x298] sm:$0xff]
    %v3307 = vld [vmem:[#allocation10 + $0x2a0] sm:$0xff]
    %v3308 = vld [vmem:[#allocation10 + $0x2a8] sm:$0xff]
    %v3309 = vld [vmem:[#allocation10 + $0x2b0] sm:$0xff]
    %v3310 = vld [vmem:[#allocation10 + $0x2b8] sm:$0xff]
    %v3311 = vld [vmem:[#allocation10 + $0x2c0] sm:$0xff]
    %v3312 = vld [vmem:[#allocation10 + $0x2c8] sm:$0xff]
    %v3313 = vld [vmem:[#allocation10 + $0x2d0] sm:$0xff]
    %v3314 = vld [vmem:[#allocation10 + $0x2d8] sm:$0xff]
    %v3315 = vld [vmem:[#allocation10 + $0x2e0] sm:$0xff]
    %v3316 = vld [vmem:[#allocation10 + $0x2e8] sm:$0xff]
    %v3317 = vld [vmem:[#allocation10 + $0x2f0] sm:$0xff]
    %v3318 = vld [vmem:[#allocation10 + $0x2f8] sm:$0xff]
    %v3319 = vld [vmem:[#allocation10 + $0x300] sm:$0xff]
    %v3320 = vld [vmem:[#allocation10 + $0x308] sm:$0xff]
    %v3321 = vld [vmem:[#allocation10 + $0x310] sm:$0xff]
    %v3322 = vld [vmem:[#allocation10 + $0x318] sm:$0xff]
    %v3323 = vld [vmem:[#allocation10 + $0x320] sm:$0xff]
    %v3324 = vld [vmem:[#allocation10 + $0x328] sm:$0xff]
    %v3325 = vld [vmem:[#allocation10 + $0x330] sm:$0xff]
    %v3326 = vld [vmem:[#allocation10 + $0x338] sm:$0xff]
    %v3327 = vld [vmem:[#allocation10 + $0x340] sm:$0xff]
    %v3328 = vld [vmem:[#allocation10 + $0x348] sm:$0xff]
    %v3329 = vld [vmem:[#allocation10 + $0x350] sm:$0xff]
    %v3330 = vld [vmem:[#allocation10 + $0x358] sm:$0xff]
    %v3331 = vld [vmem:[#allocation10 + $0x360] sm:$0xff]
    %v3332 = vld [vmem:[#allocation10 + $0x368] sm:$0xff]
    %v3333 = vld [vmem:[#allocation10 + $0x370] sm:$0xff]
    %v3334 = vld [vmem:[#allocation10 + $0x378] sm:$0xff]
    %v3335 = vld [vmem:[#allocation10 + $0x380] sm:$0xff]
    %v3336 = vld [vmem:[#allocation10 + $0x388] sm:$0xff]
    %v3337 = vld [vmem:[#allocation10 + $0x390] sm:$0xff]
    %v3338 = vld [vmem:[#allocation10 + $0x398] sm:$0xff]
    %v3339 = vld [vmem:[#allocation10 + $0x3a0] sm:$0xff]
    %v3340 = vld [vmem:[#allocation10 + $0x3a8] sm:$0xff]
    %v3341 = vld [vmem:[#allocation10 + $0x3b0] sm:$0xff]
    %v3342 = vld [vmem:[#allocation10 + $0x3b8] sm:$0xff]
    %v3343 = vld [vmem:[#allocation10 + $0x3c0] sm:$0xff]
    %v3344 = vld [vmem:[#allocation10 + $0x3c8] sm:$0xff]
    %v3345 = vld [vmem:[#allocation10 + $0x3d0] sm:$0xff]
    %v3346 = vld [vmem:[#allocation10 + $0x3d8] sm:$0xff]
    %v3347 = vld [vmem:[#allocation10 + $0x3e0] sm:$0xff]
    %v3348 = vld [vmem:[#allocation10 + $0x3e8] sm:$0xff]
    %v3349 = vld [vmem:[#allocation10 + $0x3f0] sm:$0xff]
    %v3350 = vld [vmem:[#allocation10 + $0x3f8] sm:$0xff]
    %v3351 = vld [vmem:[%s11] sm:$0xf]
    %v3353 = vlaneseq
    %v3354 = vshrl.u32 %v3353, 7
    %v3355 = vsub.s32 0, %v3354
    %v3356 = vrot.slane %v3351, %v3355
    %v3357 = vlaneseq
    %v3358 = vshrl.u32 %v3357, 7
    %v3359 = vsub.s32 1, %v3358
    %v3360 = vrot.slane %v3351, %v3359
    %v3361 = vlaneseq
    %v3362 = vshrl.u32 %v3361, 7
    %v3363 = vsub.s32 2, %v3362
    %v3364 = vrot.slane %v3351, %v3363
    %v3365 = vlaneseq
    %v3366 = vshrl.u32 %v3365, 7
    %v3367 = vsub.s32 3, %v3366
    %v3368 = vrot.slane %v3351, %v3367
    %v3501 = vunpack.c.l.b16 %v3223
    %v3502 = vunpack.c.h.b16 %v3223
    %v3503 = vunpack.c.l.b16 %v3224
    %v3504 = vunpack.c.h.b16 %v3224
    %v3505 = vunpack.c.l.b16 %v3225
    %v3506 = vunpack.c.h.b16 %v3225
    %v3507 = vunpack.c.l.b16 %v3226
    %v3508 = vunpack.c.h.b16 %v3226
    %v3509 = vunpack.c.l.b16 %v3227
    %v3510 = vunpack.c.h.b16 %v3227
    %v3511 = vunpack.c.l.b16 %v3228
    %v3512 = vunpack.c.h.b16 %v3228
    %v3513 = vunpack.c.l.b16 %v3229
    %v3514 = vunpack.c.h.b16 %v3229
    %v3515 = vunpack.c.l.b16 %v3230
    %v3516 = vunpack.c.h.b16 %v3230
    %v3517 = vunpack.c.l.b16 %v3231
    %v3518 = vunpack.c.h.b16 %v3231
    %v3519 = vunpack.c.l.b16 %v3232
    %v3520 = vunpack.c.h.b16 %v3232
    %v3521 = vunpack.c.l.b16 %v3233
    %v3522 = vunpack.c.h.b16 %v3233
    %v3523 = vunpack.c.l.b16 %v3234
    %v3524 = vunpack.c.h.b16 %v3234
    %v3525 = vunpack.c.l.b16 %v3235
    %v3526 = vunpack.c.h.b16 %v3235
    %v3527 = vunpack.c.l.b16 %v3236
    %v3528 = vunpack.c.h.b16 %v3236
    %v3529 = vunpack.c.l.b16 %v3237
    %v3530 = vunpack.c.h.b16 %v3237
    %v3531 = vunpack.c.l.b16 %v3238
    %v3532 = vunpack.c.h.b16 %v3238
    %v3533 = vunpack.c.l.b16 %v3239
    %v3534 = vunpack.c.h.b16 %v3239
    %v3535 = vunpack.c.l.b16 %v3240
    %v3536 = vunpack.c.h.b16 %v3240
    %v3537 = vunpack.c.l.b16 %v3241
    %v3538 = vunpack.c.h.b16 %v3241
    %v3539 = vunpack.c.l.b16 %v3242
    %v3540 = vunpack.c.h.b16 %v3242
    %v3541 = vunpack.c.l.b16 %v3243
    %v3542 = vunpack.c.h.b16 %v3243
    %v3543 = vunpack.c.l.b16 %v3244
    %v3544 = vunpack.c.h.b16 %v3244
    %v3545 = vunpack.c.l.b16 %v3245
    %v3546 = vunpack.c.h.b16 %v3245
    %v3547 = vunpack.c.l.b16 %v3246
    %v3548 = vunpack.c.h.b16 %v3246
    %v3549 = vunpack.c.l.b16 %v3247
    %v3550 = vunpack.c.h.b16 %v3247
    %v3551 = vunpack.c.l.b16 %v3248
    %v3552 = vunpack.c.h.b16 %v3248
    %v3553 = vunpack.c.l.b16 %v3249
    %v3554 = vunpack.c.h.b16 %v3249
    %v3555 = vunpack.c.l.b16 %v3250
    %v3556 = vunpack.c.h.b16 %v3250
    %v3557 = vunpack.c.l.b16 %v3251
    %v3558 = vunpack.c.h.b16 %v3251
    %v3559 = vunpack.c.l.b16 %v3252
    %v3560 = vunpack.c.h.b16 %v3252
    %v3561 = vunpack.c.l.b16 %v3253
    %v3562 = vunpack.c.h.b16 %v3253
    %v3563 = vunpack.c.l.b16 %v3254
    %v3564 = vunpack.c.h.b16 %v3254
    %v3565 = vunpack.c.l.b16 %v3255
    %v3566 = vunpack.c.h.b16 %v3255
    %v3567 = vunpack.c.l.b16 %v3256
    %v3568 = vunpack.c.h.b16 %v3256
    %v3569 = vunpack.c.l.b16 %v3257
    %v3570 = vunpack.c.h.b16 %v3257
    %v3571 = vunpack.c.l.b16 %v3258
    %v3572 = vunpack.c.h.b16 %v3258
    %v3573 = vunpack.c.l.b16 %v3259
    %v3574 = vunpack.c.h.b16 %v3259
    %v3575 = vunpack.c.l.b16 %v3260
    %v3576 = vunpack.c.h.b16 %v3260
    %v3577 = vunpack.c.l.b16 %v3261
    %v3578 = vunpack.c.h.b16 %v3261
    %v3579 = vunpack.c.l.b16 %v3262
    %v3580 = vunpack.c.h.b16 %v3262
    %v3581 = vunpack.c.l.b16 %v3263
    %v3582 = vunpack.c.h.b16 %v3263
    %v3583 = vunpack.c.l.b16 %v3264
    %v3584 = vunpack.c.h.b16 %v3264
    %v3585 = vunpack.c.l.b16 %v3265
    %v3586 = vunpack.c.h.b16 %v3265
    %v3587 = vunpack.c.l.b16 %v3266
    %v3588 = vunpack.c.h.b16 %v3266
    %v3589 = vunpack.c.l.b16 %v3267
    %v3590 = vunpack.c.h.b16 %v3267
    %v3591 = vunpack.c.l.b16 %v3268
    %v3592 = vunpack.c.h.b16 %v3268
    %v3593 = vunpack.c.l.b16 %v3269
    %v3594 = vunpack.c.h.b16 %v3269
    %v3595 = vunpack.c.l.b16 %v3270
    %v3596 = vunpack.c.h.b16 %v3270
    %v3597 = vunpack.c.l.b16 %v3271
    %v3598 = vunpack.c.h.b16 %v3271
    %v3599 = vunpack.c.l.b16 %v3272
    %v3600 = vunpack.c.h.b16 %v3272
    %v3601 = vunpack.c.l.b16 %v3273
    %v3602 = vunpack.c.h.b16 %v3273
    %v3603 = vunpack.c.l.b16 %v3274
    %v3604 = vunpack.c.h.b16 %v3274
    %v3605 = vunpack.c.l.b16 %v3275
    %v3606 = vunpack.c.h.b16 %v3275
    %v3607 = vunpack.c.l.b16 %v3276
    %v3608 = vunpack.c.h.b16 %v3276
    %v3609 = vunpack.c.l.b16 %v3277
    %v3610 = vunpack.c.h.b16 %v3277
    %v3611 = vunpack.c.l.b16 %v3278
    %v3612 = vunpack.c.h.b16 %v3278
    %v3613 = vunpack.c.l.b16 %v3279
    %v3614 = vunpack.c.h.b16 %v3279
    %v3615 = vunpack.c.l.b16 %v3280
    %v3616 = vunpack.c.h.b16 %v3280
    %v3617 = vunpack.c.l.b16 %v3281
    %v3618 = vunpack.c.h.b16 %v3281
    %v3619 = vunpack.c.l.b16 %v3282
    %v3620 = vunpack.c.h.b16 %v3282
    %v3621 = vunpack.c.l.b16 %v3283
    %v3622 = vunpack.c.h.b16 %v3283
    %v3623 = vunpack.c.l.b16 %v3284
    %v3624 = vunpack.c.h.b16 %v3284
    %v3625 = vunpack.c.l.b16 %v3285
    %v3626 = vunpack.c.h.b16 %v3285
    %v3627 = vunpack.c.l.b16 %v3286
    %v3628 = vunpack.c.h.b16 %v3286
    %v3629 = vunpack.c.l.b16 %v3287
    %v3630 = vunpack.c.h.b16 %v3287
    %v3631 = vunpack.c.l.b16 %v3288
    %v3632 = vunpack.c.h.b16 %v3288
    %v3633 = vunpack.c.l.b16 %v3289
    %v3634 = vunpack.c.h.b16 %v3289
    %v3635 = vunpack.c.l.b16 %v3290
    %v3636 = vunpack.c.h.b16 %v3290
    %v3637 = vunpack.c.l.b16 %v3291
    %v3638 = vunpack.c.h.b16 %v3291
    %v3639 = vunpack.c.l.b16 %v3292
    %v3640 = vunpack.c.h.b16 %v3292
    %v3641 = vunpack.c.l.b16 %v3293
    %v3642 = vunpack.c.h.b16 %v3293
    %v3643 = vunpack.c.l.b16 %v3294
    %v3644 = vunpack.c.h.b16 %v3294
    %v3645 = vunpack.c.l.b16 %v3295
    %v3646 = vunpack.c.h.b16 %v3295
    %v3647 = vunpack.c.l.b16 %v3296
    %v3648 = vunpack.c.h.b16 %v3296
    %v3649 = vunpack.c.l.b16 %v3297
    %v3650 = vunpack.c.h.b16 %v3297
    %v3651 = vunpack.c.l.b16 %v3298
    %v3652 = vunpack.c.h.b16 %v3298
    %v3653 = vunpack.c.l.b16 %v3299
    %v3654 = vunpack.c.h.b16 %v3299
    %v3655 = vunpack.c.l.b16 %v3300
    %v3656 = vunpack.c.h.b16 %v3300
    %v3657 = vunpack.c.l.b16 %v3301
    %v3658 = vunpack.c.h.b16 %v3301
    %v3659 = vunpack.c.l.b16 %v3302
    %v3660 = vunpack.c.h.b16 %v3302
    %v3661 = vunpack.c.l.b16 %v3303
    %v3662 = vunpack.c.h.b16 %v3303
    %v3663 = vunpack.c.l.b16 %v3304
    %v3664 = vunpack.c.h.b16 %v3304
    %v3665 = vunpack.c.l.b16 %v3305
    %v3666 = vunpack.c.h.b16 %v3305
    %v3667 = vunpack.c.l.b16 %v3306
    %v3668 = vunpack.c.h.b16 %v3306
    %v3669 = vunpack.c.l.b16 %v3307
    %v3670 = vunpack.c.h.b16 %v3307
    %v3671 = vunpack.c.l.b16 %v3308
    %v3672 = vunpack.c.h.b16 %v3308
    %v3673 = vunpack.c.l.b16 %v3309
    %v3674 = vunpack.c.h.b16 %v3309
    %v3675 = vunpack.c.l.b16 %v3310
    %v3676 = vunpack.c.h.b16 %v3310
    %v3677 = vunpack.c.l.b16 %v3311
    %v3678 = vunpack.c.h.b16 %v3311
    %v3679 = vunpack.c.l.b16 %v3312
    %v3680 = vunpack.c.h.b16 %v3312
    %v3681 = vunpack.c.l.b16 %v3313
    %v3682 = vunpack.c.h.b16 %v3313
    %v3683 = vunpack.c.l.b16 %v3314
    %v3684 = vunpack.c.h.b16 %v3314
    %v3685 = vunpack.c.l.b16 %v3315
    %v3686 = vunpack.c.h.b16 %v3315
    %v3687 = vunpack.c.l.b16 %v3316
    %v3688 = vunpack.c.h.b16 %v3316
    %v3689 = vunpack.c.l.b16 %v3317
    %v3690 = vunpack.c.h.b16 %v3317
    %v3691 = vunpack.c.l.b16 %v3318
    %v3692 = vunpack.c.h.b16 %v3318
    %v3693 = vunpack.c.l.b16 %v3319
    %v3694 = vunpack.c.h.b16 %v3319
    %v3695 = vunpack.c.l.b16 %v3320
    %v3696 = vunpack.c.h.b16 %v3320
    %v3697 = vunpack.c.l.b16 %v3321
    %v3698 = vunpack.c.h.b16 %v3321
    %v3699 = vunpack.c.l.b16 %v3322
    %v3700 = vunpack.c.h.b16 %v3322
    %v3701 = vunpack.c.l.b16 %v3323
    %v3702 = vunpack.c.h.b16 %v3323
    %v3703 = vunpack.c.l.b16 %v3324
    %v3704 = vunpack.c.h.b16 %v3324
    %v3705 = vunpack.c.l.b16 %v3325
    %v3706 = vunpack.c.h.b16 %v3325
    %v3707 = vunpack.c.l.b16 %v3326
    %v3708 = vunpack.c.h.b16 %v3326
    %v3709 = vunpack.c.l.b16 %v3327
    %v3710 = vunpack.c.h.b16 %v3327
    %v3711 = vunpack.c.l.b16 %v3328
    %v3712 = vunpack.c.h.b16 %v3328
    %v3713 = vunpack.c.l.b16 %v3329
    %v3714 = vunpack.c.h.b16 %v3329
    %v3715 = vunpack.c.l.b16 %v3330
    %v3716 = vunpack.c.h.b16 %v3330
    %v3717 = vunpack.c.l.b16 %v3331
    %v3718 = vunpack.c.h.b16 %v3331
    %v3719 = vunpack.c.l.b16 %v3332
    %v3720 = vunpack.c.h.b16 %v3332
    %v3721 = vunpack.c.l.b16 %v3333
    %v3722 = vunpack.c.h.b16 %v3333
    %v3723 = vunpack.c.l.b16 %v3334
    %v3724 = vunpack.c.h.b16 %v3334
    %v3725 = vunpack.c.l.b16 %v3335
    %v3726 = vunpack.c.h.b16 %v3335
    %v3727 = vunpack.c.l.b16 %v3336
    %v3728 = vunpack.c.h.b16 %v3336
    %v3729 = vunpack.c.l.b16 %v3337
    %v3730 = vunpack.c.h.b16 %v3337
    %v3731 = vunpack.c.l.b16 %v3338
    %v3732 = vunpack.c.h.b16 %v3338
    %v3733 = vunpack.c.l.b16 %v3339
    %v3734 = vunpack.c.h.b16 %v3339
    %v3735 = vunpack.c.l.b16 %v3340
    %v3736 = vunpack.c.h.b16 %v3340
    %v3737 = vunpack.c.l.b16 %v3341
    %v3738 = vunpack.c.h.b16 %v3341
    %v3739 = vunpack.c.l.b16 %v3342
    %v3740 = vunpack.c.h.b16 %v3342
    %v3741 = vunpack.c.l.b16 %v3343
    %v3742 = vunpack.c.h.b16 %v3343
    %v3743 = vunpack.c.l.b16 %v3344
    %v3744 = vunpack.c.h.b16 %v3344
    %v3745 = vunpack.c.l.b16 %v3345
    %v3746 = vunpack.c.h.b16 %v3345
    %v3747 = vunpack.c.l.b16 %v3346
    %v3748 = vunpack.c.h.b16 %v3346
    %v3749 = vunpack.c.l.b16 %v3347
    %v3750 = vunpack.c.h.b16 %v3347
    %v3751 = vunpack.c.l.b16 %v3348
    %v3752 = vunpack.c.h.b16 %v3348
    %v3753 = vunpack.c.l.b16 %v3349
    %v3754 = vunpack.c.h.b16 %v3349
    %v3755 = vunpack.c.l.b16 %v3350
    %v3756 = vunpack.c.h.b16 %v3350
    %v3757 = vpack.c.b16 %v3505, %v3501
    %v3758 = vpack.c.b16 %v3506, %v3502
    %v3759 = vpack.c.b16 %v3507, %v3503
    %v3760 = vpack.c.b16 %v3508, %v3504
    %v3761 = vpack.c.b16 %v3513, %v3509
    %v3762 = vpack.c.b16 %v3514, %v3510
    %v3763 = vpack.c.b16 %v3515, %v3511
    %v3764 = vpack.c.b16 %v3516, %v3512
    %v3765 = vpack.c.b16 %v3521, %v3517
    %v3766 = vpack.c.b16 %v3522, %v3518
    %v3767 = vpack.c.b16 %v3523, %v3519
    %v3768 = vpack.c.b16 %v3524, %v3520
    %v3769 = vpack.c.b16 %v3529, %v3525
    %v3770 = vpack.c.b16 %v3530, %v3526
    %v3771 = vpack.c.b16 %v3531, %v3527
    %v3772 = vpack.c.b16 %v3532, %v3528
    %v3773 = vpack.c.b16 %v3537, %v3533
    %v3774 = vpack.c.b16 %v3538, %v3534
    %v3775 = vpack.c.b16 %v3539, %v3535
    %v3776 = vpack.c.b16 %v3540, %v3536
    %v3777 = vpack.c.b16 %v3545, %v3541
    %v3778 = vpack.c.b16 %v3546, %v3542
    %v3779 = vpack.c.b16 %v3547, %v3543
    %v3780 = vpack.c.b16 %v3548, %v3544
    %v3781 = vpack.c.b16 %v3553, %v3549
    %v3782 = vpack.c.b16 %v3554, %v3550
    %v3783 = vpack.c.b16 %v3555, %v3551
    %v3784 = vpack.c.b16 %v3556, %v3552
    %v3785 = vpack.c.b16 %v3561, %v3557
    %v3786 = vpack.c.b16 %v3562, %v3558
    %v3787 = vpack.c.b16 %v3563, %v3559
    %v3788 = vpack.c.b16 %v3564, %v3560
    %v3789 = vpack.c.b16 %v3569, %v3565
    %v3790 = vpack.c.b16 %v3570, %v3566
    %v3791 = vpack.c.b16 %v3571, %v3567
    %v3792 = vpack.c.b16 %v3572, %v3568
    %v3793 = vpack.c.b16 %v3577, %v3573
    %v3794 = vpack.c.b16 %v3578, %v3574
    %v3795 = vpack.c.b16 %v3579, %v3575
    %v3796 = vpack.c.b16 %v3580, %v3576
    %v3797 = vpack.c.b16 %v3585, %v3581
    %v3798 = vpack.c.b16 %v3586, %v3582
    %v3799 = vpack.c.b16 %v3587, %v3583
    %v3800 = vpack.c.b16 %v3588, %v3584
    %v3801 = vpack.c.b16 %v3593, %v3589
    %v3802 = vpack.c.b16 %v3594, %v3590
    %v3803 = vpack.c.b16 %v3595, %v3591
    %v3804 = vpack.c.b16 %v3596, %v3592
    %v3805 = vpack.c.b16 %v3601, %v3597
    %v3806 = vpack.c.b16 %v3602, %v3598
    %v3807 = vpack.c.b16 %v3603, %v3599
    %v3808 = vpack.c.b16 %v3604, %v3600
    %v3809 = vpack.c.b16 %v3609, %v3605
    %v3810 = vpack.c.b16 %v3610, %v3606
    %v3811 = vpack.c.b16 %v3611, %v3607
    %v3812 = vpack.c.b16 %v3612, %v3608
    %v3813 = vpack.c.b16 %v3617, %v3613
    %v3814 = vpack.c.b16 %v3618, %v3614
    %v3815 = vpack.c.b16 %v3619, %v3615
    %v3816 = vpack.c.b16 %v3620, %v3616
    %v3817 = vpack.c.b16 %v3625, %v3621
    %v3818 = vpack.c.b16 %v3626, %v3622
    %v3819 = vpack.c.b16 %v3627, %v3623
    %v3820 = vpack.c.b16 %v3628, %v3624
    %v3821 = vpack.c.b16 %v3633, %v3629
    %v3822 = vpack.c.b16 %v3634, %v3630
    %v3823 = vpack.c.b16 %v3635, %v3631
    %v3824 = vpack.c.b16 %v3636, %v3632
    %v3825 = vpack.c.b16 %v3641, %v3637
    %v3826 = vpack.c.b16 %v3642, %v3638
    %v3827 = vpack.c.b16 %v3643, %v3639
    %v3828 = vpack.c.b16 %v3644, %v3640
    %v3829 = vpack.c.b16 %v3649, %v3645
    %v3830 = vpack.c.b16 %v3650, %v3646
    %v3831 = vpack.c.b16 %v3651, %v3647
    %v3832 = vpack.c.b16 %v3652, %v3648
    %v3833 = vpack.c.b16 %v3657, %v3653
    %v3834 = vpack.c.b16 %v3658, %v3654
    %v3835 = vpack.c.b16 %v3659, %v3655
    %v3836 = vpack.c.b16 %v3660, %v3656
    %v3837 = vpack.c.b16 %v3665, %v3661
    %v3838 = vpack.c.b16 %v3666, %v3662
    %v3839 = vpack.c.b16 %v3667, %v3663
    %v3840 = vpack.c.b16 %v3668, %v3664
    %v3841 = vpack.c.b16 %v3673, %v3669
    %v3842 = vpack.c.b16 %v3674, %v3670
    %v3843 = vpack.c.b16 %v3675, %v3671
    %v3844 = vpack.c.b16 %v3676, %v3672
    %v3845 = vpack.c.b16 %v3681, %v3677
    %v3846 = vpack.c.b16 %v3682, %v3678
    %v3847 = vpack.c.b16 %v3683, %v3679
    %v3848 = vpack.c.b16 %v3684, %v3680
    %v3849 = vpack.c.b16 %v3689, %v3685
    %v3850 = vpack.c.b16 %v3690, %v3686
    %v3851 = vpack.c.b16 %v3691, %v3687
    %v3852 = vpack.c.b16 %v3692, %v3688
    %v3853 = vpack.c.b16 %v3697, %v3693
    %v3854 = vpack.c.b16 %v3698, %v3694
    %v3855 = vpack.c.b16 %v3699, %v3695
    %v3856 = vpack.c.b16 %v3700, %v3696
    %v3857 = vpack.c.b16 %v3705, %v3701
    %v3858 = vpack.c.b16 %v3706, %v3702
    %v3859 = vpack.c.b16 %v3707, %v3703
    %v3860 = vpack.c.b16 %v3708, %v3704
    %v3861 = vpack.c.b16 %v3713, %v3709
    %v3862 = vpack.c.b16 %v3714, %v3710
    %v3863 = vpack.c.b16 %v3715, %v3711
    %v3864 = vpack.c.b16 %v3716, %v3712
    %v3865 = vpack.c.b16 %v3721, %v3717
    %v3866 = vpack.c.b16 %v3722, %v3718
    %v3867 = vpack.c.b16 %v3723, %v3719
    %v3868 = vpack.c.b16 %v3724, %v3720
    %v3869 = vpack.c.b16 %v3729, %v3725
    %v3870 = vpack.c.b16 %v3730, %v3726
    %v3871 = vpack.c.b16 %v3731, %v3727
    %v3872 = vpack.c.b16 %v3732, %v3728
    %v3873 = vpack.c.b16 %v3737, %v3733
    %v3874 = vpack.c.b16 %v3738, %v3734
    %v3875 = vpack.c.b16 %v3739, %v3735
    %v3876 = vpack.c.b16 %v3740, %v3736
    %v3877 = vpack.c.b16 %v3745, %v3741
    %v3878 = vpack.c.b16 %v3746, %v3742
    %v3879 = vpack.c.b16 %v3747, %v3743
    %v3880 = vpack.c.b16 %v3748, %v3744
    %v3881 = vpack.c.b16 %v3753, %v3749
    %v3882 = vpack.c.b16 %v3754, %v3750
    %v3883 = vpack.c.b16 %v3755, %v3751
    %v3884 = vpack.c.b16 %v3756, %v3752
    %4013 = vmatprep.subr.bf16.mxu0 %v3758
    %4014 = vmatpush1.bf16.msra.mxu0 %v3757
    %4015 = vmatprep.subr.bf16.mxu0 %v3762
    %4016 = vmatpush1.bf16.msra.mxu0 %v3761
    %4017 = vmatprep.subr.bf16.mxu0 %v3766
    %4018 = vmatpush1.bf16.msra.mxu0 %v3765
    %4019 = vmatprep.subr.bf16.mxu0 %v3770
    %4020 = vmatpush1.bf16.msra.mxu0 %v3769
    %4021 = vmatprep.subr.bf16.mxu0 %v3774
    %4022 = vmatpush1.bf16.msra.mxu0 %v3773
    %4023 = vmatprep.subr.bf16.mxu0 %v3778
    %4024 = vmatpush1.bf16.msra.mxu0 %v3777
    %4025 = vmatprep.subr.bf16.mxu0 %v3782
    %4026 = vmatpush1.bf16.msra.mxu0 %v3781
    %4027 = vmatprep.subr.bf16.mxu0 %v3786
    %4028 = vmatpush1.bf16.msra.mxu0 %v3785
    %4029 = vmatprep.subr.bf16.mxu0 %v3790
    %4030 = vmatpush1.bf16.msra.mxu0 %v3789
    %4031 = vmatprep.subr.bf16.mxu0 %v3794
    %4032 = vmatpush1.bf16.msra.mxu0 %v3793
    %4033 = vmatprep.subr.bf16.mxu0 %v3798
    %4034 = vmatpush1.bf16.msra.mxu0 %v3797
    %4035 = vmatprep.subr.bf16.mxu0 %v3802
    %4036 = vmatpush1.bf16.msra.mxu0 %v3801
    %4037 = vmatprep.subr.bf16.mxu0 %v3806
    %4038 = vmatpush1.bf16.msra.mxu0 %v3805
    %4039 = vmatprep.subr.bf16.mxu0 %v3810
    %4040 = vmatpush1.bf16.msra.mxu0 %v3809
    %4041 = vmatprep.subr.bf16.mxu0 %v3814
    %4042 = vmatpush1.bf16.msra.mxu0 %v3813
    %4043 = vmatprep.subr.bf16.mxu0 %v3818
    %4044 = vmatpush1.bf16.msra.mxu0 %v3817
    %4045 = vmatprep.mubr.bf16.mxu0 %v3220
    %4046 = vmatmul.mubr.bf16.gmra.mrb[0].mxu0 %v3219
    %v4047 = vpop.f32.mrb[0].mxu0
    %v4048 = vadd.f32 %v3356, %v4047
    %v4049 = vpop.f32.mrb[0].mxu0
    %v4050 = vadd.f32 %v3360, %v4049
    %v4051 = vpop.f32.mrb[0].mxu0
    %v4052 = vpop.f32.mrb[0].mxu0
    %4053 = vdwg.mxu0
    %4054 = vmatprep.subr.bf16.mxu0 %v3822
    %4055 = vmatpush1.bf16.msra.mxu0 %v3821
    %4056 = vmatprep.subr.bf16.mxu0 %v3826
    %4057 = vmatpush1.bf16.msra.mxu0 %v3825
    %4058 = vmatprep.subr.bf16.mxu0 %v3830
    %4059 = vmatpush1.bf16.msra.mxu0 %v3829
    %4060 = vmatprep.subr.bf16.mxu0 %v3834
    %4061 = vmatpush1.bf16.msra.mxu0 %v3833
    %4062 = vmatprep.subr.bf16.mxu0 %v3838
    %4063 = vmatpush1.bf16.msra.mxu0 %v3837
    %4064 = vmatprep.subr.bf16.mxu0 %v3842
    %4065 = vmatpush1.bf16.msra.mxu0 %v3841
    %4066 = vmatprep.subr.bf16.mxu0 %v3846
    %4067 = vmatpush1.bf16.msra.mxu0 %v3845
    %4068 = vmatprep.subr.bf16.mxu0 %v3850
    %4069 = vmatpush1.bf16.msra.mxu0 %v3849
    %4070 = vmatprep.subr.bf16.mxu0 %v3854
    %4071 = vmatpush1.bf16.msra.mxu0 %v3853
    %4072 = vmatprep.subr.bf16.mxu0 %v3858
    %4073 = vmatpush1.bf16.msra.mxu0 %v3857
    %4074 = vmatprep.subr.bf16.mxu0 %v3862
    %4075 = vmatpush1.bf16.msra.mxu0 %v3861
    %4076 = vmatprep.subr.bf16.mxu0 %v3866
    %4077 = vmatpush1.bf16.msra.mxu0 %v3865
    %4078 = vmatprep.subr.bf16.mxu0 %v3870
    %4079 = vmatpush1.bf16.msra.mxu0 %v3869
    %4080 = vmatprep.subr.bf16.mxu0 %v3874
    %4081 = vmatpush1.bf16.msra.mxu0 %v3873
    %4082 = vmatprep.subr.bf16.mxu0 %v3878
    %4083 = vmatpush1.bf16.msra.mxu0 %v3877
    %4084 = vmatprep.subr.bf16.mxu0 %v3882
    %4085 = vmatpush1.bf16.msra.mxu0 %v3881
    %4086 = vmatprep.mubr.bf16.mxu0 %v3222
    %4087 = vmatmul.mubr.bf16.gmra.mrb[0].mxu0 %v3221
    %v4088 = vpop.f32.mrb[0].mxu0
    %v4089 = vadd.f32 %v4048, %v4088
    %v4090 = vpop.f32.mrb[0].mxu0
    %v4091 = vadd.f32 %v4050, %v4090
    %v4092 = vpop.f32.mrb[0].mxu0
    %v4093 = vpop.f32.mrb[0].mxu0
    %4094 = vdwg.mxu0
    %4095 = vmatprep.subr.bf16.mxu0 %v3760
    %4096 = vmatpush1.bf16.msra.mxu0 %v3759
    %4097 = vmatprep.subr.bf16.mxu0 %v3764
    %4098 = vmatpush1.bf16.msra.mxu0 %v3763
    %4099 = vmatprep.subr.bf16.mxu0 %v3768
    %4100 = vmatpush1.bf16.msra.mxu0 %v3767
    %4101 = vmatprep.subr.bf16.mxu0 %v3772
    %4102 = vmatpush1.bf16.msra.mxu0 %v3771
    %4103 = vmatprep.subr.bf16.mxu0 %v3776
    %4104 = vmatpush1.bf16.msra.mxu0 %v3775
    %4105 = vmatprep.subr.bf16.mxu0 %v3780
    %4106 = vmatpush1.bf16.msra.mxu0 %v3779
    %4107 = vmatprep.subr.bf16.mxu0 %v3784
    %4108 = vmatpush1.bf16.msra.mxu0 %v3783
    %4109 = vmatprep.subr.bf16.mxu0 %v3788
    %4110 = vmatpush1.bf16.msra.mxu0 %v3787
    %4111 = vmatprep.subr.bf16.mxu0 %v3792
    %4112 = vmatpush1.bf16.msra.mxu0 %v3791
    %4113 = vmatprep.subr.bf16.mxu0 %v3796
    %4114 = vmatpush1.bf16.msra.mxu0 %v3795
    %4115 = vmatprep.subr.bf16.mxu0 %v3800
    %4116 = vmatpush1.bf16.msra.mxu0 %v3799
    %4117 = vmatprep.subr.bf16.mxu0 %v3804
    %4118 = vmatpush1.bf16.msra.mxu0 %v3803
    %4119 = vmatprep.subr.bf16.mxu0 %v3808
    %4120 = vmatpush1.bf16.msra.mxu0 %v3807
    %4121 = vmatprep.subr.bf16.mxu0 %v3812
    %4122 = vmatpush1.bf16.msra.mxu0 %v3811
    %4123 = vmatprep.subr.bf16.mxu0 %v3816
    %4124 = vmatpush1.bf16.msra.mxu0 %v3815
    %4125 = vmatprep.subr.bf16.mxu0 %v3820
    %4126 = vmatpush1.bf16.msra.mxu0 %v3819
    %4127 = vmatprep.mubr.bf16.mxu0 %v3220
    %4128 = vmatmul.mubr.bf16.gmra.mrb[0].mxu0 %v3219
    %v4129 = vpop.f32.mrb[0].mxu0
    %v4130 = vadd.f32 %v3364, %v4129
    %v4131 = vpop.f32.mrb[0].mxu0
    %v4132 = vadd.f32 %v3368, %v4131
    %v4133 = vpop.f32.mrb[0].mxu0
    %v4134 = vpop.f32.mrb[0].mxu0
    %4135 = vdwg.mxu0
    %4136 = vmatprep.subr.bf16.mxu0 %v3824
    %4137 = vmatpush1.bf16.msra.mxu0 %v3823
    %4138 = vmatprep.subr.bf16.mxu0 %v3828
    %4139 = vmatpush1.bf16.msra.mxu0 %v3827
    %4140 = vmatprep.subr.bf16.mxu0 %v3832
    %4141 = vmatpush1.bf16.msra.mxu0 %v3831
    %4142 = vmatprep.subr.bf16.mxu0 %v3836
    %4143 = vmatpush1.bf16.msra.mxu0 %v3835
    %4144 = vmatprep.subr.bf16.mxu0 %v3840
    %4145 = vmatpush1.bf16.msra.mxu0 %v3839
    %4146 = vmatprep.subr.bf16.mxu0 %v3844
    %4147 = vmatpush1.bf16.msra.mxu0 %v3843
    %4148 = vmatprep.subr.bf16.mxu0 %v3848
    %4149 = vmatpush1.bf16.msra.mxu0 %v3847
    %4150 = vmatprep.subr.bf16.mxu0 %v3852
    %4151 = vmatpush1.bf16.msra.mxu0 %v3851
    %4152 = vmatprep.subr.bf16.mxu0 %v3856
    %4153 = vmatpush1.bf16.msra.mxu0 %v3855
    %4154 = vmatprep.subr.bf16.mxu0 %v3860
    %4155 = vmatpush1.bf16.msra.mxu0 %v3859
    %4156 = vmatprep.subr.bf16.mxu0 %v3864
    %4157 = vmatpush1.bf16.msra.mxu0 %v3863
    %4158 = vmatprep.subr.bf16.mxu0 %v3868
    %4159 = vmatpush1.bf16.msra.mxu0 %v3867
    %4160 = vmatprep.subr.bf16.mxu0 %v3872
    %4161 = vmatpush1.bf16.msra.mxu0 %v3871
    %4162 = vmatprep.subr.bf16.mxu0 %v3876
    %4163 = vmatpush1.bf16.msra.mxu0 %v3875
    %4164 = vmatprep.subr.bf16.mxu0 %v3880
    %4165 = vmatpush1.bf16.msra.mxu0 %v3879
    %4166 = vmatprep.subr.bf16.mxu0 %v3884
    %4167 = vmatpush1.bf16.msra.mxu0 %v3883
    %4168 = vmatprep.mubr.bf16.mxu0 %v3222
    %4169 = vmatmul.mubr.bf16.gmra.mrb[0].mxu0 %v3221
    %v4170 = vpop.f32.mrb[0].mxu0
    %v4171 = vadd.f32 %v4130, %v4170
    %v4172 = vpop.f32.mrb[0].mxu0
    %v4173 = vadd.f32 %v4132, %v4172
    %v4174 = vpop.f32.mrb[0].mxu0
    %v4175 = vpop.f32.mrb[0].mxu0
    %4176 = vdwg.mxu0
    %v4177 = vpack.c.bf16 %v2157, %v2157
    %v4178 = vpack.c.bf16 %v2159, %v2159
    %v4179 = vpack.c.bf16 %v2239, %v2239
    %v4180 = vpack.c.bf16 %v2241, %v2241
    %v4181 = vld [vmem:[#allocation11] sm:$0xff]
    %v4182 = vld [vmem:[#allocation11 + $0x8] sm:$0xff]
    %v4183 = vld [vmem:[#allocation11 + $0x10] sm:$0xff]
    %v4184 = vld [vmem:[#allocation11 + $0x18] sm:$0xff]
    %v4185 = vld [vmem:[#allocation11 + $0x20] sm:$0xff]
    %v4186 = vld [vmem:[#allocation11 + $0x28] sm:$0xff]
    %v4187 = vld [vmem:[#allocation11 + $0x30] sm:$0xff]
    %v4188 = vld [vmem:[#allocation11 + $0x38] sm:$0xff]
    %v4189 = vld [vmem:[#allocation11 + $0x40] sm:$0xff]
    %v4190 = vld [vmem:[#allocation11 + $0x48] sm:$0xff]
    %v4191 = vld [vmem:[#allocation11 + $0x50] sm:$0xff]
    %v4192 = vld [vmem:[#allocation11 + $0x58] sm:$0xff]
    %v4193 = vld [vmem:[#allocation11 + $0x60] sm:$0xff]
    %v4194 = vld [vmem:[#allocation11 + $0x68] sm:$0xff]
    %v4195 = vld [vmem:[#allocation11 + $0x70] sm:$0xff]
    %v4196 = vld [vmem:[#allocation11 + $0x78] sm:$0xff]
    %v4197 = vld [vmem:[#allocation11 + $0x80] sm:$0xff]
    %v4198 = vld [vmem:[#allocation11 + $0x88] sm:$0xff]
    %v4199 = vld [vmem:[#allocation11 + $0x90] sm:$0xff]
    %v4200 = vld [vmem:[#allocation11 + $0x98] sm:$0xff]
    %v4201 = vld [vmem:[#allocation11 + $0xa0] sm:$0xff]
    %v4202 = vld [vmem:[#allocation11 + $0xa8] sm:$0xff]
    %v4203 = vld [vmem:[#allocation11 + $0xb0] sm:$0xff]
    %v4204 = vld [vmem:[#allocation11 + $0xb8] sm:$0xff]
    %v4205 = vld [vmem:[#allocation11 + $0xc0] sm:$0xff]
    %v4206 = vld [vmem:[#allocation11 + $0xc8] sm:$0xff]
    %v4207 = vld [vmem:[#allocation11 + $0xd0] sm:$0xff]
    %v4208 = vld [vmem:[#allocation11 + $0xd8] sm:$0xff]
    %v4209 = vld [vmem:[#allocation11 + $0xe0] sm:$0xff]
    %v4210 = vld [vmem:[#allocation11 + $0xe8] sm:$0xff]
    %v4211 = vld [vmem:[#allocation11 + $0xf0] sm:$0xff]
    %v4212 = vld [vmem:[#allocation11 + $0xf8] sm:$0xff]
    %v4213 = vld [vmem:[#allocation11 + $0x100] sm:$0xff]
    %v4214 = vld [vmem:[#allocation11 + $0x108] sm:$0xff]
    %v4215 = vld [vmem:[#allocation11 + $0x110] sm:$0xff]
    %v4216 = vld [vmem:[#allocation11 + $0x118] sm:$0xff]
    %v4217 = vld [vmem:[#allocation11 + $0x120] sm:$0xff]
    %v4218 = vld [vmem:[#allocation11 + $0x128] sm:$0xff]
    %v4219 = vld [vmem:[#allocation11 + $0x130] sm:$0xff]
    %v4220 = vld [vmem:[#allocation11 + $0x138] sm:$0xff]
    %v4221 = vld [vmem:[#allocation11 + $0x140] sm:$0xff]
    %v4222 = vld [vmem:[#allocation11 + $0x148] sm:$0xff]
    %v4223 = vld [vmem:[#allocation11 + $0x150] sm:$0xff]
    %v4224 = vld [vmem:[#allocation11 + $0x158] sm:$0xff]
    %v4225 = vld [vmem:[#allocation11 + $0x160] sm:$0xff]
    %v4226 = vld [vmem:[#allocation11 + $0x168] sm:$0xff]
    %v4227 = vld [vmem:[#allocation11 + $0x170] sm:$0xff]
    %v4228 = vld [vmem:[#allocation11 + $0x178] sm:$0xff]
    %v4229 = vld [vmem:[#allocation11 + $0x180] sm:$0xff]
    %v4230 = vld [vmem:[#allocation11 + $0x188] sm:$0xff]
    %v4231 = vld [vmem:[#allocation11 + $0x190] sm:$0xff]
    %v4232 = vld [vmem:[#allocation11 + $0x198] sm:$0xff]
    %v4233 = vld [vmem:[#allocation11 + $0x1a0] sm:$0xff]
    %v4234 = vld [vmem:[#allocation11 + $0x1a8] sm:$0xff]
    %v4235 = vld [vmem:[#allocation11 + $0x1b0] sm:$0xff]
    %v4236 = vld [vmem:[#allocation11 + $0x1b8] sm:$0xff]
    %v4237 = vld [vmem:[#allocation11 + $0x1c0] sm:$0xff]
    %v4238 = vld [vmem:[#allocation11 + $0x1c8] sm:$0xff]
    %v4239 = vld [vmem:[#allocation11 + $0x1d0] sm:$0xff]
    %v4240 = vld [vmem:[#allocation11 + $0x1d8] sm:$0xff]
    %v4241 = vld [vmem:[#allocation11 + $0x1e0] sm:$0xff]
    %v4242 = vld [vmem:[#allocation11 + $0x1e8] sm:$0xff]
    %v4243 = vld [vmem:[#allocation11 + $0x1f0] sm:$0xff]
    %v4244 = vld [vmem:[#allocation11 + $0x1f8] sm:$0xff]
    %v4245 = vld [vmem:[#allocation11 + $0x200] sm:$0xff]
    %v4246 = vld [vmem:[#allocation11 + $0x208] sm:$0xff]
    %v4247 = vld [vmem:[#allocation11 + $0x210] sm:$0xff]
    %v4248 = vld [vmem:[#allocation11 + $0x218] sm:$0xff]
    %v4249 = vld [vmem:[#allocation11 + $0x220] sm:$0xff]
    %v4250 = vld [vmem:[#allocation11 + $0x228] sm:$0xff]
    %v4251 = vld [vmem:[#allocation11 + $0x230] sm:$0xff]
    %v4252 = vld [vmem:[#allocation11 + $0x238] sm:$0xff]
    %v4253 = vld [vmem:[#allocation11 + $0x240] sm:$0xff]
    %v4254 = vld [vmem:[#allocation11 + $0x248] sm:$0xff]
    %v4255 = vld [vmem:[#allocation11 + $0x250] sm:$0xff]
    %v4256 = vld [vmem:[#allocation11 + $0x258] sm:$0xff]
    %v4257 = vld [vmem:[#allocation11 + $0x260] sm:$0xff]
    %v4258 = vld [vmem:[#allocation11 + $0x268] sm:$0xff]
    %v4259 = vld [vmem:[#allocation11 + $0x270] sm:$0xff]
    %v4260 = vld [vmem:[#allocation11 + $0x278] sm:$0xff]
    %v4261 = vld [vmem:[#allocation11 + $0x280] sm:$0xff]
    %v4262 = vld [vmem:[#allocation11 + $0x288] sm:$0xff]
    %v4263 = vld [vmem:[#allocation11 + $0x290] sm:$0xff]
    %v4264 = vld [vmem:[#allocation11 + $0x298] sm:$0xff]
    %v4265 = vld [vmem:[#allocation11 + $0x2a0] sm:$0xff]
    %v4266 = vld [vmem:[#allocation11 + $0x2a8] sm:$0xff]
    %v4267 = vld [vmem:[#allocation11 + $0x2b0] sm:$0xff]
    %v4268 = vld [vmem:[#allocation11 + $0x2b8] sm:$0xff]
    %v4269 = vld [vmem:[#allocation11 + $0x2c0] sm:$0xff]
    %v4270 = vld [vmem:[#allocation11 + $0x2c8] sm:$0xff]
    %v4271 = vld [vmem:[#allocation11 + $0x2d0] sm:$0xff]
    %v4272 = vld [vmem:[#allocation11 + $0x2d8] sm:$0xff]
    %v4273 = vld [vmem:[#allocation11 + $0x2e0] sm:$0xff]
    %v4274 = vld [vmem:[#allocation11 + $0x2e8] sm:$0xff]
    %v4275 = vld [vmem:[#allocation11 + $0x2f0] sm:$0xff]
    %v4276 = vld [vmem:[#allocation11 + $0x2f8] sm:$0xff]
    %v4277 = vld [vmem:[#allocation11 + $0x300] sm:$0xff]
    %v4278 = vld [vmem:[#allocation11 + $0x308] sm:$0xff]
    %v4279 = vld [vmem:[#allocation11 + $0x310] sm:$0xff]
    %v4280 = vld [vmem:[#allocation11 + $0x318] sm:$0xff]
    %v4281 = vld [vmem:[#allocation11 + $0x320] sm:$0xff]
    %v4282 = vld [vmem:[#allocation11 + $0x328] sm:$0xff]
    %v4283 = vld [vmem:[#allocation11 + $0x330] sm:$0xff]
    %v4284 = vld [vmem:[#allocation11 + $0x338] sm:$0xff]
    %v4285 = vld [vmem:[#allocation11 + $0x340] sm:$0xff]
    %v4286 = vld [vmem:[#allocation11 + $0x348] sm:$0xff]
    %v4287 = vld [vmem:[#allocation11 + $0x350] sm:$0xff]
    %v4288 = vld [vmem:[#allocation11 + $0x358] sm:$0xff]
    %v4289 = vld [vmem:[#allocation11 + $0x360] sm:$0xff]
    %v4290 = vld [vmem:[#allocation11 + $0x368] sm:$0xff]
    %v4291 = vld [vmem:[#allocation11 + $0x370] sm:$0xff]
    %v4292 = vld [vmem:[#allocation11 + $0x378] sm:$0xff]
    %v4293 = vld [vmem:[#allocation11 + $0x380] sm:$0xff]
    %v4294 = vld [vmem:[#allocation11 + $0x388] sm:$0xff]
    %v4295 = vld [vmem:[#allocation11 + $0x390] sm:$0xff]
    %v4296 = vld [vmem:[#allocation11 + $0x398] sm:$0xff]
    %v4297 = vld [vmem:[#allocation11 + $0x3a0] sm:$0xff]
    %v4298 = vld [vmem:[#allocation11 + $0x3a8] sm:$0xff]
    %v4299 = vld [vmem:[#allocation11 + $0x3b0] sm:$0xff]
    %v4300 = vld [vmem:[#allocation11 + $0x3b8] sm:$0xff]
    %v4301 = vld [vmem:[#allocation11 + $0x3c0] sm:$0xff]
    %v4302 = vld [vmem:[#allocation11 + $0x3c8] sm:$0xff]
    %v4303 = vld [vmem:[#allocation11 + $0x3d0] sm:$0xff]
    %v4304 = vld [vmem:[#allocation11 + $0x3d8] sm:$0xff]
    %v4305 = vld [vmem:[#allocation11 + $0x3e0] sm:$0xff]
    %v4306 = vld [vmem:[#allocation11 + $0x3e8] sm:$0xff]
    %v4307 = vld [vmem:[#allocation11 + $0x3f0] sm:$0xff]
    %v4308 = vld [vmem:[#allocation11 + $0x3f8] sm:$0xff]
    %v4309 = vpack.c.bf16 %v4089, %v4089
    %v4310 = vpack.c.bf16 %v4091, %v4091
    %v4311 = vpack.c.bf16 %v4171, %v4171
    %v4312 = vpack.c.bf16 %v4173, %v4173
    %v4313 = vld [vmem:[#allocation13] sm:$0xff]
    %v4314 = vld [vmem:[#allocation13 + $0x8] sm:$0xff]
    %v4315 = vld [vmem:[#allocation13 + $0x10] sm:$0xff]
    %v4316 = vld [vmem:[#allocation13 + $0x18] sm:$0xff]
    %v4317 = vld [vmem:[#allocation13 + $0x20] sm:$0xff]
    %v4318 = vld [vmem:[#allocation13 + $0x28] sm:$0xff]
    %v4319 = vld [vmem:[#allocation13 + $0x30] sm:$0xff]
    %v4320 = vld [vmem:[#allocation13 + $0x38] sm:$0xff]
    %v4321 = vld [vmem:[#allocation13 + $0x40] sm:$0xff]
    %v4322 = vld [vmem:[#allocation13 + $0x48] sm:$0xff]
    %v4323 = vld [vmem:[#allocation13 + $0x50] sm:$0xff]
    %v4324 = vld [vmem:[#allocation13 + $0x58] sm:$0xff]
    %v4325 = vld [vmem:[#allocation13 + $0x60] sm:$0xff]
    %v4326 = vld [vmem:[#allocation13 + $0x68] sm:$0xff]
    %v4327 = vld [vmem:[#allocation13 + $0x70] sm:$0xff]
    %v4328 = vld [vmem:[#allocation13 + $0x78] sm:$0xff]
    %v4329 = vld [vmem:[#allocation13 + $0x80] sm:$0xff]
    %v4330 = vld [vmem:[#allocation13 + $0x88] sm:$0xff]
    %v4331 = vld [vmem:[#allocation13 + $0x90] sm:$0xff]
    %v4332 = vld [vmem:[#allocation13 + $0x98] sm:$0xff]
    %v4333 = vld [vmem:[#allocation13 + $0xa0] sm:$0xff]
    %v4334 = vld [vmem:[#allocation13 + $0xa8] sm:$0xff]
    %v4335 = vld [vmem:[#allocation13 + $0xb0] sm:$0xff]
    %v4336 = vld [vmem:[#allocation13 + $0xb8] sm:$0xff]
    %v4337 = vld [vmem:[#allocation13 + $0xc0] sm:$0xff]
    %v4338 = vld [vmem:[#allocation13 + $0xc8] sm:$0xff]
    %v4339 = vld [vmem:[#allocation13 + $0xd0] sm:$0xff]
    %v4340 = vld [vmem:[#allocation13 + $0xd8] sm:$0xff]
    %v4341 = vld [vmem:[#allocation13 + $0xe0] sm:$0xff]
    %v4342 = vld [vmem:[#allocation13 + $0xe8] sm:$0xff]
    %v4343 = vld [vmem:[#allocation13 + $0xf0] sm:$0xff]
    %v4344 = vld [vmem:[#allocation13 + $0xf8] sm:$0xff]
    %v4345 = vld [vmem:[#allocation13 + $0x100] sm:$0xff]
    %v4346 = vld [vmem:[#allocation13 + $0x108] sm:$0xff]
    %v4347 = vld [vmem:[#allocation13 + $0x110] sm:$0xff]
    %v4348 = vld [vmem:[#allocation13 + $0x118] sm:$0xff]
    %v4349 = vld [vmem:[#allocation13 + $0x120] sm:$0xff]
    %v4350 = vld [vmem:[#allocation13 + $0x128] sm:$0xff]
    %v4351 = vld [vmem:[#allocation13 + $0x130] sm:$0xff]
    %v4352 = vld [vmem:[#allocation13 + $0x138] sm:$0xff]
    %v4353 = vld [vmem:[#allocation13 + $0x140] sm:$0xff]
    %v4354 = vld [vmem:[#allocation13 + $0x148] sm:$0xff]
    %v4355 = vld [vmem:[#allocation13 + $0x150] sm:$0xff]
    %v4356 = vld [vmem:[#allocation13 + $0x158] sm:$0xff]
    %v4357 = vld [vmem:[#allocation13 + $0x160] sm:$0xff]
    %v4358 = vld [vmem:[#allocation13 + $0x168] sm:$0xff]
    %v4359 = vld [vmem:[#allocation13 + $0x170] sm:$0xff]
    %v4360 = vld [vmem:[#allocation13 + $0x178] sm:$0xff]
    %v4361 = vld [vmem:[#allocation13 + $0x180] sm:$0xff]
    %v4362 = vld [vmem:[#allocation13 + $0x188] sm:$0xff]
    %v4363 = vld [vmem:[#allocation13 + $0x190] sm:$0xff]
    %v4364 = vld [vmem:[#allocation13 + $0x198] sm:$0xff]
    %v4365 = vld [vmem:[#allocation13 + $0x1a0] sm:$0xff]
    %v4366 = vld [vmem:[#allocation13 + $0x1a8] sm:$0xff]
    %v4367 = vld [vmem:[#allocation13 + $0x1b0] sm:$0xff]
    %v4368 = vld [vmem:[#allocation13 + $0x1b8] sm:$0xff]
    %v4369 = vld [vmem:[#allocation13 + $0x1c0] sm:$0xff]
    %v4370 = vld [vmem:[#allocation13 + $0x1c8] sm:$0xff]
    %v4371 = vld [vmem:[#allocation13 + $0x1d0] sm:$0xff]
    %v4372 = vld [vmem:[#allocation13 + $0x1d8] sm:$0xff]
    %v4373 = vld [vmem:[#allocation13 + $0x1e0] sm:$0xff]
    %v4374 = vld [vmem:[#allocation13 + $0x1e8] sm:$0xff]
    %v4375 = vld [vmem:[#allocation13 + $0x1f0] sm:$0xff]
    %v4376 = vld [vmem:[#allocation13 + $0x1f8] sm:$0xff]
    %v4377 = vld [vmem:[#allocation13 + $0x200] sm:$0xff]
    %v4378 = vld [vmem:[#allocation13 + $0x208] sm:$0xff]
    %v4379 = vld [vmem:[#allocation13 + $0x210] sm:$0xff]
    %v4380 = vld [vmem:[#allocation13 + $0x218] sm:$0xff]
    %v4381 = vld [vmem:[#allocation13 + $0x220] sm:$0xff]
    %v4382 = vld [vmem:[#allocation13 + $0x228] sm:$0xff]
    %v4383 = vld [vmem:[#allocation13 + $0x230] sm:$0xff]
    %v4384 = vld [vmem:[#allocation13 + $0x238] sm:$0xff]
    %v4385 = vld [vmem:[#allocation13 + $0x240] sm:$0xff]
    %v4386 = vld [vmem:[#allocation13 + $0x248] sm:$0xff]
    %v4387 = vld [vmem:[#allocation13 + $0x250] sm:$0xff]
    %v4388 = vld [vmem:[#allocation13 + $0x258] sm:$0xff]
    %v4389 = vld [vmem:[#allocation13 + $0x260] sm:$0xff]
    %v4390 = vld [vmem:[#allocation13 + $0x268] sm:$0xff]
    %v4391 = vld [vmem:[#allocation13 + $0x270] sm:$0xff]
    %v4392 = vld [vmem:[#allocation13 + $0x278] sm:$0xff]
    %v4393 = vld [vmem:[#allocation13 + $0x280] sm:$0xff]
    %v4394 = vld [vmem:[#allocation13 + $0x288] sm:$0xff]
    %v4395 = vld [vmem:[#allocation13 + $0x290] sm:$0xff]
    %v4396 = vld [vmem:[#allocation13 + $0x298] sm:$0xff]
    %v4397 = vld [vmem:[#allocation13 + $0x2a0] sm:$0xff]
    %v4398 = vld [vmem:[#allocation13 + $0x2a8] sm:$0xff]
    %v4399 = vld [vmem:[#allocation13 + $0x2b0] sm:$0xff]
    %v4400 = vld [vmem:[#allocation13 + $0x2b8] sm:$0xff]
    %v4401 = vld [vmem:[#allocation13 + $0x2c0] sm:$0xff]
    %v4402 = vld [vmem:[#allocation13 + $0x2c8] sm:$0xff]
    %v4403 = vld [vmem:[#allocation13 + $0x2d0] sm:$0xff]
    %v4404 = vld [vmem:[#allocation13 + $0x2d8] sm:$0xff]
    %v4405 = vld [vmem:[#allocation13 + $0x2e0] sm:$0xff]
    %v4406 = vld [vmem:[#allocation13 + $0x2e8] sm:$0xff]
    %v4407 = vld [vmem:[#allocation13 + $0x2f0] sm:$0xff]
    %v4408 = vld [vmem:[#allocation13 + $0x2f8] sm:$0xff]
    %v4409 = vld [vmem:[#allocation13 + $0x300] sm:$0xff]
    %v4410 = vld [vmem:[#allocation13 + $0x308] sm:$0xff]
    %v4411 = vld [vmem:[#allocation13 + $0x310] sm:$0xff]
    %v4412 = vld [vmem:[#allocation13 + $0x318] sm:$0xff]
    %v4413 = vld [vmem:[#allocation13 + $0x320] sm:$0xff]
    %v4414 = vld [vmem:[#allocation13 + $0x328] sm:$0xff]
    %v4415 = vld [vmem:[#allocation13 + $0x330] sm:$0xff]
    %v4416 = vld [vmem:[#allocation13 + $0x338] sm:$0xff]
    %v4417 = vld [vmem:[#allocation13 + $0x340] sm:$0xff]
    %v4418 = vld [vmem:[#allocation13 + $0x348] sm:$0xff]
    %v4419 = vld [vmem:[#allocation13 + $0x350] sm:$0xff]
    %v4420 = vld [vmem:[#allocation13 + $0x358] sm:$0xff]
    %v4421 = vld [vmem:[#allocation13 + $0x360] sm:$0xff]
    %v4422 = vld [vmem:[#allocation13 + $0x368] sm:$0xff]
    %v4423 = vld [vmem:[#allocation13 + $0x370] sm:$0xff]
    %v4424 = vld [vmem:[#allocation13 + $0x378] sm:$0xff]
    %v4425 = vld [vmem:[#allocation13 + $0x380] sm:$0xff]
    %v4426 = vld [vmem:[#allocation13 + $0x388] sm:$0xff]
    %v4427 = vld [vmem:[#allocation13 + $0x390] sm:$0xff]
    %v4428 = vld [vmem:[#allocation13 + $0x398] sm:$0xff]
    %v4429 = vld [vmem:[#allocation13 + $0x3a0] sm:$0xff]
    %v4430 = vld [vmem:[#allocation13 + $0x3a8] sm:$0xff]
    %v4431 = vld [vmem:[#allocation13 + $0x3b0] sm:$0xff]
    %v4432 = vld [vmem:[#allocation13 + $0x3b8] sm:$0xff]
    %v4433 = vld [vmem:[#allocation13 + $0x3c0] sm:$0xff]
    %v4434 = vld [vmem:[#allocation13 + $0x3c8] sm:$0xff]
    %v4435 = vld [vmem:[#allocation13 + $0x3d0] sm:$0xff]
    %v4436 = vld [vmem:[#allocation13 + $0x3d8] sm:$0xff]
    %v4437 = vld [vmem:[#allocation13 + $0x3e0] sm:$0xff]
    %v4438 = vld [vmem:[#allocation13 + $0x3e8] sm:$0xff]
    %v4439 = vld [vmem:[#allocation13 + $0x3f0] sm:$0xff]
    %v4440 = vld [vmem:[#allocation13 + $0x3f8] sm:$0xff]
    %v4569 = vunpack.c.l.b16 %v4313
    %v4570 = vunpack.c.h.b16 %v4313
    %v4571 = vunpack.c.l.b16 %v4314
    %v4572 = vunpack.c.h.b16 %v4314
    %v4573 = vunpack.c.l.b16 %v4315
    %v4574 = vunpack.c.h.b16 %v4315
    %v4575 = vunpack.c.l.b16 %v4316
    %v4576 = vunpack.c.h.b16 %v4316
    %v4577 = vunpack.c.l.b16 %v4317
    %v4578 = vunpack.c.h.b16 %v4317
    %v4579 = vunpack.c.l.b16 %v4318
    %v4580 = vunpack.c.h.b16 %v4318
    %v4581 = vunpack.c.l.b16 %v4319
    %v4582 = vunpack.c.h.b16 %v4319
    %v4583 = vunpack.c.l.b16 %v4320
    %v4584 = vunpack.c.h.b16 %v4320
    %v4585 = vunpack.c.l.b16 %v4321
    %v4586 = vunpack.c.h.b16 %v4321
    %v4587 = vunpack.c.l.b16 %v4322
    %v4588 = vunpack.c.h.b16 %v4322
    %v4589 = vunpack.c.l.b16 %v4323
    %v4590 = vunpack.c.h.b16 %v4323
    %v4591 = vunpack.c.l.b16 %v4324
    %v4592 = vunpack.c.h.b16 %v4324
    %v4593 = vunpack.c.l.b16 %v4325
    %v4594 = vunpack.c.h.b16 %v4325
    %v4595 = vunpack.c.l.b16 %v4326
    %v4596 = vunpack.c.h.b16 %v4326
    %v4597 = vunpack.c.l.b16 %v4327
    %v4598 = vunpack.c.h.b16 %v4327
    %v4599 = vunpack.c.l.b16 %v4328
    %v4600 = vunpack.c.h.b16 %v4328
    %v4601 = vunpack.c.l.b16 %v4329
    %v4602 = vunpack.c.h.b16 %v4329
    %v4603 = vunpack.c.l.b16 %v4330
    %v4604 = vunpack.c.h.b16 %v4330
    %v4605 = vunpack.c.l.b16 %v4331
    %v4606 = vunpack.c.h.b16 %v4331
    %v4607 = vunpack.c.l.b16 %v4332
    %v4608 = vunpack.c.h.b16 %v4332
    %v4609 = vunpack.c.l.b16 %v4333
    %v4610 = vunpack.c.h.b16 %v4333
    %v4611 = vunpack.c.l.b16 %v4334
    %v4612 = vunpack.c.h.b16 %v4334
    %v4613 = vunpack.c.l.b16 %v4335
    %v4614 = vunpack.c.h.b16 %v4335
    %v4615 = vunpack.c.l.b16 %v4336
    %v4616 = vunpack.c.h.b16 %v4336
    %v4617 = vunpack.c.l.b16 %v4337
    %v4618 = vunpack.c.h.b16 %v4337
    %v4619 = vunpack.c.l.b16 %v4338
    %v4620 = vunpack.c.h.b16 %v4338
    %v4621 = vunpack.c.l.b16 %v4339
    %v4622 = vunpack.c.h.b16 %v4339
    %v4623 = vunpack.c.l.b16 %v4340
    %v4624 = vunpack.c.h.b16 %v4340
    %v4625 = vunpack.c.l.b16 %v4341
    %v4626 = vunpack.c.h.b16 %v4341
    %v4627 = vunpack.c.l.b16 %v4342
    %v4628 = vunpack.c.h.b16 %v4342
    %v4629 = vunpack.c.l.b16 %v4343
    %v4630 = vunpack.c.h.b16 %v4343
    %v4631 = vunpack.c.l.b16 %v4344
    %v4632 = vunpack.c.h.b16 %v4344
    %v4633 = vunpack.c.l.b16 %v4345
    %v4634 = vunpack.c.h.b16 %v4345
    %v4635 = vunpack.c.l.b16 %v4346
    %v4636 = vunpack.c.h.b16 %v4346
    %v4637 = vunpack.c.l.b16 %v4347
    %v4638 = vunpack.c.h.b16 %v4347
    %v4639 = vunpack.c.l.b16 %v4348
    %v4640 = vunpack.c.h.b16 %v4348
    %v4641 = vunpack.c.l.b16 %v4349
    %v4642 = vunpack.c.h.b16 %v4349
    %v4643 = vunpack.c.l.b16 %v4350
    %v4644 = vunpack.c.h.b16 %v4350
    %v4645 = vunpack.c.l.b16 %v4351
    %v4646 = vunpack.c.h.b16 %v4351
    %v4647 = vunpack.c.l.b16 %v4352
    %v4648 = vunpack.c.h.b16 %v4352
    %v4649 = vunpack.c.l.b16 %v4353
    %v4650 = vunpack.c.h.b16 %v4353
    %v4651 = vunpack.c.l.b16 %v4354
    %v4652 = vunpack.c.h.b16 %v4354
    %v4653 = vunpack.c.l.b16 %v4355
    %v4654 = vunpack.c.h.b16 %v4355
    %v4655 = vunpack.c.l.b16 %v4356
    %v4656 = vunpack.c.h.b16 %v4356
    %v4657 = vunpack.c.l.b16 %v4357
    %v4658 = vunpack.c.h.b16 %v4357
    %v4659 = vunpack.c.l.b16 %v4358
    %v4660 = vunpack.c.h.b16 %v4358
    %v4661 = vunpack.c.l.b16 %v4359
    %v4662 = vunpack.c.h.b16 %v4359
    %v4663 = vunpack.c.l.b16 %v4360
    %v4664 = vunpack.c.h.b16 %v4360
    %v4665 = vunpack.c.l.b16 %v4361
    %v4666 = vunpack.c.h.b16 %v4361
    %v4667 = vunpack.c.l.b16 %v4362
    %v4668 = vunpack.c.h.b16 %v4362
    %v4669 = vunpack.c.l.b16 %v4363
    %v4670 = vunpack.c.h.b16 %v4363
    %v4671 = vunpack.c.l.b16 %v4364
    %v4672 = vunpack.c.h.b16 %v4364
    %v4673 = vunpack.c.l.b16 %v4365
    %v4674 = vunpack.c.h.b16 %v4365
    %v4675 = vunpack.c.l.b16 %v4366
    %v4676 = vunpack.c.h.b16 %v4366
    %v4677 = vunpack.c.l.b16 %v4367
    %v4678 = vunpack.c.h.b16 %v4367
    %v4679 = vunpack.c.l.b16 %v4368
    %v4680 = vunpack.c.h.b16 %v4368
    %v4681 = vunpack.c.l.b16 %v4369
    %v4682 = vunpack.c.h.b16 %v4369
    %v4683 = vunpack.c.l.b16 %v4370
    %v4684 = vunpack.c.h.b16 %v4370
    %v4685 = vunpack.c.l.b16 %v4371
    %v4686 = vunpack.c.h.b16 %v4371
    %v4687 = vunpack.c.l.b16 %v4372
    %v4688 = vunpack.c.h.b16 %v4372
    %v4689 = vunpack.c.l.b16 %v4373
    %v4690 = vunpack.c.h.b16 %v4373
    %v4691 = vunpack.c.l.b16 %v4374
    %v4692 = vunpack.c.h.b16 %v4374
    %v4693 = vunpack.c.l.b16 %v4375
    %v4694 = vunpack.c.h.b16 %v4375
    %v4695 = vunpack.c.l.b16 %v4376
    %v4696 = vunpack.c.h.b16 %v4376
    %v4697 = vunpack.c.l.b16 %v4377
    %v4698 = vunpack.c.h.b16 %v4377
    %v4699 = vunpack.c.l.b16 %v4378
    %v4700 = vunpack.c.h.b16 %v4378
    %v4701 = vunpack.c.l.b16 %v4379
    %v4702 = vunpack.c.h.b16 %v4379
    %v4703 = vunpack.c.l.b16 %v4380
    %v4704 = vunpack.c.h.b16 %v4380
    %v4705 = vunpack.c.l.b16 %v4381
    %v4706 = vunpack.c.h.b16 %v4381
    %v4707 = vunpack.c.l.b16 %v4382
    %v4708 = vunpack.c.h.b16 %v4382
    %v4709 = vunpack.c.l.b16 %v4383
    %v4710 = vunpack.c.h.b16 %v4383
    %v4711 = vunpack.c.l.b16 %v4384
    %v4712 = vunpack.c.h.b16 %v4384
    %v4713 = vunpack.c.l.b16 %v4385
    %v4714 = vunpack.c.h.b16 %v4385
    %v4715 = vunpack.c.l.b16 %v4386
    %v4716 = vunpack.c.h.b16 %v4386
    %v4717 = vunpack.c.l.b16 %v4387
    %v4718 = vunpack.c.h.b16 %v4387
    %v4719 = vunpack.c.l.b16 %v4388
    %v4720 = vunpack.c.h.b16 %v4388
    %v4721 = vunpack.c.l.b16 %v4389
    %v4722 = vunpack.c.h.b16 %v4389
    %v4723 = vunpack.c.l.b16 %v4390
    %v4724 = vunpack.c.h.b16 %v4390
    %v4725 = vunpack.c.l.b16 %v4391
    %v4726 = vunpack.c.h.b16 %v4391
    %v4727 = vunpack.c.l.b16 %v4392
    %v4728 = vunpack.c.h.b16 %v4392
    %v4729 = vunpack.c.l.b16 %v4393
    %v4730 = vunpack.c.h.b16 %v4393
    %v4731 = vunpack.c.l.b16 %v4394
    %v4732 = vunpack.c.h.b16 %v4394
    %v4733 = vunpack.c.l.b16 %v4395
    %v4734 = vunpack.c.h.b16 %v4395
    %v4735 = vunpack.c.l.b16 %v4396
    %v4736 = vunpack.c.h.b16 %v4396
    %v4737 = vunpack.c.l.b16 %v4397
    %v4738 = vunpack.c.h.b16 %v4397
    %v4739 = vunpack.c.l.b16 %v4398
    %v4740 = vunpack.c.h.b16 %v4398
    %v4741 = vunpack.c.l.b16 %v4399
    %v4742 = vunpack.c.h.b16 %v4399
    %v4743 = vunpack.c.l.b16 %v4400
    %v4744 = vunpack.c.h.b16 %v4400
    %v4745 = vunpack.c.l.b16 %v4401
    %v4746 = vunpack.c.h.b16 %v4401
    %v4747 = vunpack.c.l.b16 %v4402
    %v4748 = vunpack.c.h.b16 %v4402
    %v4749 = vunpack.c.l.b16 %v4403
    %v4750 = vunpack.c.h.b16 %v4403
    %v4751 = vunpack.c.l.b16 %v4404
    %v4752 = vunpack.c.h.b16 %v4404
    %v4753 = vunpack.c.l.b16 %v4405
    %v4754 = vunpack.c.h.b16 %v4405
    %v4755 = vunpack.c.l.b16 %v4406
    %v4756 = vunpack.c.h.b16 %v4406
    %v4757 = vunpack.c.l.b16 %v4407
    %v4758 = vunpack.c.h.b16 %v4407
    %v4759 = vunpack.c.l.b16 %v4408
    %v4760 = vunpack.c.h.b16 %v4408
    %v4761 = vunpack.c.l.b16 %v4409
    %v4762 = vunpack.c.h.b16 %v4409
    %v4763 = vunpack.c.l.b16 %v4410
    %v4764 = vunpack.c.h.b16 %v4410
    %v4765 = vunpack.c.l.b16 %v4411
    %v4766 = vunpack.c.h.b16 %v4411
    %v4767 = vunpack.c.l.b16 %v4412
    %v4768 = vunpack.c.h.b16 %v4412
    %v4769 = vunpack.c.l.b16 %v4413
    %v4770 = vunpack.c.h.b16 %v4413
    %v4771 = vunpack.c.l.b16 %v4414
    %v4772 = vunpack.c.h.b16 %v4414
    %v4773 = vunpack.c.l.b16 %v4415
    %v4774 = vunpack.c.h.b16 %v4415
    %v4775 = vunpack.c.l.b16 %v4416
    %v4776 = vunpack.c.h.b16 %v4416
    %v4777 = vunpack.c.l.b16 %v4417
    %v4778 = vunpack.c.h.b16 %v4417
    %v4779 = vunpack.c.l.b16 %v4418
    %v4780 = vunpack.c.h.b16 %v4418
    %v4781 = vunpack.c.l.b16 %v4419
    %v4782 = vunpack.c.h.b16 %v4419
    %v4783 = vunpack.c.l.b16 %v4420
    %v4784 = vunpack.c.h.b16 %v4420
    %v4785 = vunpack.c.l.b16 %v4421
    %v4786 = vunpack.c.h.b16 %v4421
    %v4787 = vunpack.c.l.b16 %v4422
    %v4788 = vunpack.c.h.b16 %v4422
    %v4789 = vunpack.c.l.b16 %v4423
    %v4790 = vunpack.c.h.b16 %v4423
    %v4791 = vunpack.c.l.b16 %v4424
    %v4792 = vunpack.c.h.b16 %v4424
    %v4793 = vunpack.c.l.b16 %v4425
    %v4794 = vunpack.c.h.b16 %v4425
    %v4795 = vunpack.c.l.b16 %v4426
    %v4796 = vunpack.c.h.b16 %v4426
    %v4797 = vunpack.c.l.b16 %v4427
    %v4798 = vunpack.c.h.b16 %v4427
    %v4799 = vunpack.c.l.b16 %v4428
    %v4800 = vunpack.c.h.b16 %v4428
    %v4801 = vunpack.c.l.b16 %v4429
    %v4802 = vunpack.c.h.b16 %v4429
    %v4803 = vunpack.c.l.b16 %v4430
    %v4804 = vunpack.c.h.b16 %v4430
    %v4805 = vunpack.c.l.b16 %v4431
    %v4806 = vunpack.c.h.b16 %v4431
    %v4807 = vunpack.c.l.b16 %v4432
    %v4808 = vunpack.c.h.b16 %v4432
    %v4809 = vunpack.c.l.b16 %v4433
    %v4810 = vunpack.c.h.b16 %v4433
    %v4811 = vunpack.c.l.b16 %v4434
    %v4812 = vunpack.c.h.b16 %v4434
    %v4813 = vunpack.c.l.b16 %v4435
    %v4814 = vunpack.c.h.b16 %v4435
    %v4815 = vunpack.c.l.b16 %v4436
    %v4816 = vunpack.c.h.b16 %v4436
    %v4817 = vunpack.c.l.b16 %v4437
    %v4818 = vunpack.c.h.b16 %v4437
    %v4819 = vunpack.c.l.b16 %v4438
    %v4820 = vunpack.c.h.b16 %v4438
    %v4821 = vunpack.c.l.b16 %v4439
    %v4822 = vunpack.c.h.b16 %v4439
    %v4823 = vunpack.c.l.b16 %v4440
    %v4824 = vunpack.c.h.b16 %v4440
    %v4825 = vpack.c.b16 %v4573, %v4569
    %v4826 = vpack.c.b16 %v4574, %v4570
    %v4827 = vpack.c.b16 %v4575, %v4571
    %v4828 = vpack.c.b16 %v4576, %v4572
    %v4829 = vpack.c.b16 %v4581, %v4577
    %v4830 = vpack.c.b16 %v4582, %v4578
    %v4831 = vpack.c.b16 %v4583, %v4579
    %v4832 = vpack.c.b16 %v4584, %v4580
    %v4833 = vpack.c.b16 %v4589, %v4585
    %v4834 = vpack.c.b16 %v4590, %v4586
    %v4835 = vpack.c.b16 %v4591, %v4587
    %v4836 = vpack.c.b16 %v4592, %v4588
    %v4837 = vpack.c.b16 %v4597, %v4593
    %v4838 = vpack.c.b16 %v4598, %v4594
    %v4839 = vpack.c.b16 %v4599, %v4595
    %v4840 = vpack.c.b16 %v4600, %v4596
    %v4841 = vpack.c.b16 %v4605, %v4601
    %v4842 = vpack.c.b16 %v4606, %v4602
    %v4843 = vpack.c.b16 %v4607, %v4603
    %v4844 = vpack.c.b16 %v4608, %v4604
    %v4845 = vpack.c.b16 %v4613, %v4609
    %v4846 = vpack.c.b16 %v4614, %v4610
    %v4847 = vpack.c.b16 %v4615, %v4611
    %v4848 = vpack.c.b16 %v4616, %v4612
    %v4849 = vpack.c.b16 %v4621, %v4617
    %v4850 = vpack.c.b16 %v4622, %v4618
    %v4851 = vpack.c.b16 %v4623, %v4619
    %v4852 = vpack.c.b16 %v4624, %v4620
    %v4853 = vpack.c.b16 %v4629, %v4625
    %v4854 = vpack.c.b16 %v4630, %v4626
    %v4855 = vpack.c.b16 %v4631, %v4627
    %v4856 = vpack.c.b16 %v4632, %v4628
    %v4857 = vpack.c.b16 %v4637, %v4633
    %v4858 = vpack.c.b16 %v4638, %v4634
    %v4859 = vpack.c.b16 %v4639, %v4635
    %v4860 = vpack.c.b16 %v4640, %v4636
    %v4861 = vpack.c.b16 %v4645, %v4641
    %v4862 = vpack.c.b16 %v4646, %v4642
    %v4863 = vpack.c.b16 %v4647, %v4643
    %v4864 = vpack.c.b16 %v4648, %v4644
    %v4865 = vpack.c.b16 %v4653, %v4649
    %v4866 = vpack.c.b16 %v4654, %v4650
    %v4867 = vpack.c.b16 %v4655, %v4651
    %v4868 = vpack.c.b16 %v4656, %v4652
    %v4869 = vpack.c.b16 %v4661, %v4657
    %v4870 = vpack.c.b16 %v4662, %v4658
    %v4871 = vpack.c.b16 %v4663, %v4659
    %v4872 = vpack.c.b16 %v4664, %v4660
    %v4873 = vpack.c.b16 %v4669, %v4665
    %v4874 = vpack.c.b16 %v4670, %v4666
    %v4875 = vpack.c.b16 %v4671, %v4667
    %v4876 = vpack.c.b16 %v4672, %v4668
    %v4877 = vpack.c.b16 %v4677, %v4673
    %v4878 = vpack.c.b16 %v4678, %v4674
    %v4879 = vpack.c.b16 %v4679, %v4675
    %v4880 = vpack.c.b16 %v4680, %v4676
    %v4881 = vpack.c.b16 %v4685, %v4681
    %v4882 = vpack.c.b16 %v4686, %v4682
    %v4883 = vpack.c.b16 %v4687, %v4683
    %v4884 = vpack.c.b16 %v4688, %v4684
    %v4885 = vpack.c.b16 %v4693, %v4689
    %v4886 = vpack.c.b16 %v4694, %v4690
    %v4887 = vpack.c.b16 %v4695, %v4691
    %v4888 = vpack.c.b16 %v4696, %v4692
    %v4889 = vpack.c.b16 %v4701, %v4697
    %v4890 = vpack.c.b16 %v4702, %v4698
    %v4891 = vpack.c.b16 %v4703, %v4699
    %v4892 = vpack.c.b16 %v4704, %v4700
    %v4893 = vpack.c.b16 %v4709, %v4705
    %v4894 = vpack.c.b16 %v4710, %v4706
    %v4895 = vpack.c.b16 %v4711, %v4707
    %v4896 = vpack.c.b16 %v4712, %v4708
    %v4897 = vpack.c.b16 %v4717, %v4713
    %v4898 = vpack.c.b16 %v4718, %v4714
    %v4899 = vpack.c.b16 %v4719, %v4715
    %v4900 = vpack.c.b16 %v4720, %v4716
    %v4901 = vpack.c.b16 %v4725, %v4721
    %v4902 = vpack.c.b16 %v4726, %v4722
    %v4903 = vpack.c.b16 %v4727, %v4723
    %v4904 = vpack.c.b16 %v4728, %v4724
    %v4905 = vpack.c.b16 %v4733, %v4729
    %v4906 = vpack.c.b16 %v4734, %v4730
    %v4907 = vpack.c.b16 %v4735, %v4731
    %v4908 = vpack.c.b16 %v4736, %v4732
    %v4909 = vpack.c.b16 %v4741, %v4737
    %v4910 = vpack.c.b16 %v4742, %v4738
    %v4911 = vpack.c.b16 %v4743, %v4739
    %v4912 = vpack.c.b16 %v4744, %v4740
    %v4913 = vpack.c.b16 %v4749, %v4745
    %v4914 = vpack.c.b16 %v4750, %v4746
    %v4915 = vpack.c.b16 %v4751, %v4747
    %v4916 = vpack.c.b16 %v4752, %v4748
    %v4917 = vpack.c.b16 %v4757, %v4753
    %v4918 = vpack.c.b16 %v4758, %v4754
    %v4919 = vpack.c.b16 %v4759, %v4755
    %v4920 = vpack.c.b16 %v4760, %v4756
    %v4921 = vpack.c.b16 %v4765, %v4761
    %v4922 = vpack.c.b16 %v4766, %v4762
    %v4923 = vpack.c.b16 %v4767, %v4763
    %v4924 = vpack.c.b16 %v4768, %v4764
    %v4925 = vpack.c.b16 %v4773, %v4769
    %v4926 = vpack.c.b16 %v4774, %v4770
    %v4927 = vpack.c.b16 %v4775, %v4771
    %v4928 = vpack.c.b16 %v4776, %v4772
    %v4929 = vpack.c.b16 %v4781, %v4777
    %v4930 = vpack.c.b16 %v4782, %v4778
    %v4931 = vpack.c.b16 %v4783, %v4779
    %v4932 = vpack.c.b16 %v4784, %v4780
    %v4933 = vpack.c.b16 %v4789, %v4785
    %v4934 = vpack.c.b16 %v4790, %v4786
    %v4935 = vpack.c.b16 %v4791, %v4787
    %v4936 = vpack.c.b16 %v4792, %v4788
    %v4937 = vpack.c.b16 %v4797, %v4793
    %v4938 = vpack.c.b16 %v4798, %v4794
    %v4939 = vpack.c.b16 %v4799, %v4795
    %v4940 = vpack.c.b16 %v4800, %v4796
    %v4941 = vpack.c.b16 %v4805, %v4801
    %v4942 = vpack.c.b16 %v4806, %v4802
    %v4943 = vpack.c.b16 %v4807, %v4803
    %v4944 = vpack.c.b16 %v4808, %v4804
    %v4945 = vpack.c.b16 %v4813, %v4809
    %v4946 = vpack.c.b16 %v4814, %v4810
    %v4947 = vpack.c.b16 %v4815, %v4811
    %v4948 = vpack.c.b16 %v4816, %v4812
    %v4949 = vpack.c.b16 %v4821, %v4817
    %v4950 = vpack.c.b16 %v4822, %v4818
    %v4951 = vpack.c.b16 %v4823, %v4819
    %v4952 = vpack.c.b16 %v4824, %v4820
    %5081 = vmatprep.subr.bf16.mxu0 %v4826
    %5082 = vmatpush1.bf16.msra.mxu0 %v4825
    %5083 = vmatprep.subr.bf16.mxu0 %v4830
    %5084 = vmatpush1.bf16.msra.mxu0 %v4829
    %5085 = vmatprep.subr.bf16.mxu0 %v4834
    %5086 = vmatpush1.bf16.msra.mxu0 %v4833
    %5087 = vmatprep.subr.bf16.mxu0 %v4838
    %5088 = vmatpush1.bf16.msra.mxu0 %v4837
    %5089 = vmatprep.subr.bf16.mxu0 %v4842
    %5090 = vmatpush1.bf16.msra.mxu0 %v4841
    %5091 = vmatprep.subr.bf16.mxu0 %v4846
    %5092 = vmatpush1.bf16.msra.mxu0 %v4845
    %5093 = vmatprep.subr.bf16.mxu0 %v4850
    %5094 = vmatpush1.bf16.msra.mxu0 %v4849
    %5095 = vmatprep.subr.bf16.mxu0 %v4854
    %5096 = vmatpush1.bf16.msra.mxu0 %v4853
    %5097 = vmatprep.subr.bf16.mxu0 %v4858
    %5098 = vmatpush1.bf16.msra.mxu0 %v4857
    %5099 = vmatprep.subr.bf16.mxu0 %v4862
    %5100 = vmatpush1.bf16.msra.mxu0 %v4861
    %5101 = vmatprep.subr.bf16.mxu0 %v4866
    %5102 = vmatpush1.bf16.msra.mxu0 %v4865
    %5103 = vmatprep.subr.bf16.mxu0 %v4870
    %5104 = vmatpush1.bf16.msra.mxu0 %v4869
    %5105 = vmatprep.subr.bf16.mxu0 %v4874
    %5106 = vmatpush1.bf16.msra.mxu0 %v4873
    %5107 = vmatprep.subr.bf16.mxu0 %v4878
    %5108 = vmatpush1.bf16.msra.mxu0 %v4877
    %5109 = vmatprep.subr.bf16.mxu0 %v4882
    %5110 = vmatpush1.bf16.msra.mxu0 %v4881
    %5111 = vmatprep.subr.bf16.mxu0 %v4886
    %5112 = vmatpush1.bf16.msra.mxu0 %v4885
    %5113 = vmatprep.mubr.bf16.mxu0 %v4310
    %5114 = vmatmul.mubr.bf16.gmra.mrb[0].mxu0 %v4309
    %v5115 = vpop.f32.mrb[0].mxu0
    %v5116 = vadd.f32 0.0, %v5115
    %v5117 = vpop.f32.mrb[0].mxu0
    %v5118 = vadd.f32 0.0, %v5117
    %v5119 = vpop.f32.mrb[0].mxu0
    %v5120 = vpop.f32.mrb[0].mxu0
    %5121 = vdwg.mxu0
    %5122 = vmatprep.subr.bf16.mxu0 %v4890
    %5123 = vmatpush1.bf16.msra.mxu0 %v4889
    %5124 = vmatprep.subr.bf16.mxu0 %v4894
    %5125 = vmatpush1.bf16.msra.mxu0 %v4893
    %5126 = vmatprep.subr.bf16.mxu0 %v4898
    %5127 = vmatpush1.bf16.msra.mxu0 %v4897
    %5128 = vmatprep.subr.bf16.mxu0 %v4902
    %5129 = vmatpush1.bf16.msra.mxu0 %v4901
    %5130 = vmatprep.subr.bf16.mxu0 %v4906
    %5131 = vmatpush1.bf16.msra.mxu0 %v4905
    %5132 = vmatprep.subr.bf16.mxu0 %v4910
    %5133 = vmatpush1.bf16.msra.mxu0 %v4909
    %5134 = vmatprep.subr.bf16.mxu0 %v4914
    %5135 = vmatpush1.bf16.msra.mxu0 %v4913
    %5136 = vmatprep.subr.bf16.mxu0 %v4918
    %5137 = vmatpush1.bf16.msra.mxu0 %v4917
    %5138 = vmatprep.subr.bf16.mxu0 %v4922
    %5139 = vmatpush1.bf16.msra.mxu0 %v4921
    %5140 = vmatprep.subr.bf16.mxu0 %v4926
    %5141 = vmatpush1.bf16.msra.mxu0 %v4925
    %5142 = vmatprep.subr.bf16.mxu0 %v4930
    %5143 = vmatpush1.bf16.msra.mxu0 %v4929
    %5144 = vmatprep.subr.bf16.mxu0 %v4934
    %5145 = vmatpush1.bf16.msra.mxu0 %v4933
    %5146 = vmatprep.subr.bf16.mxu0 %v4938
    %5147 = vmatpush1.bf16.msra.mxu0 %v4937
    %5148 = vmatprep.subr.bf16.mxu0 %v4942
    %5149 = vmatpush1.bf16.msra.mxu0 %v4941
    %5150 = vmatprep.subr.bf16.mxu0 %v4946
    %5151 = vmatpush1.bf16.msra.mxu0 %v4945
    %5152 = vmatprep.subr.bf16.mxu0 %v4950
    %5153 = vmatpush1.bf16.msra.mxu0 %v4949
    %5154 = vmatprep.mubr.bf16.mxu0 %v4312
    %5155 = vmatmul.mubr.bf16.gmra.mrb[0].mxu0 %v4311
    %v5156 = vpop.f32.mrb[0].mxu0
    %v5157 = vadd.f32 %v5116, %v5156
    %v5158 = vpop.f32.mrb[0].mxu0
    %v5159 = vadd.f32 %v5118, %v5158
    %v5160 = vpop.f32.mrb[0].mxu0
    %v5161 = vpop.f32.mrb[0].mxu0
    %5162 = vdwg.mxu0
    %5163 = vmatprep.subr.bf16.mxu0 %v4828
    %5164 = vmatpush1.bf16.msra.mxu0 %v4827
    %5165 = vmatprep.subr.bf16.mxu0 %v4832
    %5166 = vmatpush1.bf16.msra.mxu0 %v4831
    %5167 = vmatprep.subr.bf16.mxu0 %v4836
    %5168 = vmatpush1.bf16.msra.mxu0 %v4835
    %5169 = vmatprep.subr.bf16.mxu0 %v4840
    %5170 = vmatpush1.bf16.msra.mxu0 %v4839
    %5171 = vmatprep.subr.bf16.mxu0 %v4844
    %5172 = vmatpush1.bf16.msra.mxu0 %v4843
    %5173 = vmatprep.subr.bf16.mxu0 %v4848
    %5174 = vmatpush1.bf16.msra.mxu0 %v4847
    %5175 = vmatprep.subr.bf16.mxu0 %v4852
    %5176 = vmatpush1.bf16.msra.mxu0 %v4851
    %5177 = vmatprep.subr.bf16.mxu0 %v4856
    %5178 = vmatpush1.bf16.msra.mxu0 %v4855
    %5179 = vmatprep.subr.bf16.mxu0 %v4860
    %5180 = vmatpush1.bf16.msra.mxu0 %v4859
    %5181 = vmatprep.subr.bf16.mxu0 %v4864
    %5182 = vmatpush1.bf16.msra.mxu0 %v4863
    %5183 = vmatprep.subr.bf16.mxu0 %v4868
    %5184 = vmatpush1.bf16.msra.mxu0 %v4867
    %5185 = vmatprep.subr.bf16.mxu0 %v4872
    %5186 = vmatpush1.bf16.msra.mxu0 %v4871
    %5187 = vmatprep.subr.bf16.mxu0 %v4876
    %5188 = vmatpush1.bf16.msra.mxu0 %v4875
    %5189 = vmatprep.subr.bf16.mxu0 %v4880
    %5190 = vmatpush1.bf16.msra.mxu0 %v4879
    %5191 = vmatprep.subr.bf16.mxu0 %v4884
    %5192 = vmatpush1.bf16.msra.mxu0 %v4883
    %5193 = vmatprep.subr.bf16.mxu0 %v4888
    %5194 = vmatpush1.bf16.msra.mxu0 %v4887
    %5195 = vmatprep.mubr.bf16.mxu0 %v4310
    %5196 = vmatmul.mubr.bf16.gmra.mrb[0].mxu0 %v4309
    %v5197 = vpop.f32.mrb[0].mxu0
    %v5198 = vadd.f32 0.0, %v5197
    %v5199 = vpop.f32.mrb[0].mxu0
    %v5200 = vadd.f32 0.0, %v5199
    %v5201 = vpop.f32.mrb[0].mxu0
    %v5202 = vpop.f32.mrb[0].mxu0
    %5203 = vdwg.mxu0
    %5204 = vmatprep.subr.bf16.mxu0 %v4892
    %5205 = vmatpush1.bf16.msra.mxu0 %v4891
    %5206 = vmatprep.subr.bf16.mxu0 %v4896
    %5207 = vmatpush1.bf16.msra.mxu0 %v4895
    %5208 = vmatprep.subr.bf16.mxu0 %v4900
    %5209 = vmatpush1.bf16.msra.mxu0 %v4899
    %5210 = vmatprep.subr.bf16.mxu0 %v4904
    %5211 = vmatpush1.bf16.msra.mxu0 %v4903
    %5212 = vmatprep.subr.bf16.mxu0 %v4908
    %5213 = vmatpush1.bf16.msra.mxu0 %v4907
    %5214 = vmatprep.subr.bf16.mxu0 %v4912
    %5215 = vmatpush1.bf16.msra.mxu0 %v4911
    %5216 = vmatprep.subr.bf16.mxu0 %v4916
    %5217 = vmatpush1.bf16.msra.mxu0 %v4915
    %5218 = vmatprep.subr.bf16.mxu0 %v4920
    %5219 = vmatpush1.bf16.msra.mxu0 %v4919
    %5220 = vmatprep.subr.bf16.mxu0 %v4924
    %5221 = vmatpush1.bf16.msra.mxu0 %v4923
    %5222 = vmatprep.subr.bf16.mxu0 %v4928
    %5223 = vmatpush1.bf16.msra.mxu0 %v4927
    %5224 = vmatprep.subr.bf16.mxu0 %v4932
    %5225 = vmatpush1.bf16.msra.mxu0 %v4931
    %5226 = vmatprep.subr.bf16.mxu0 %v4936
    %5227 = vmatpush1.bf16.msra.mxu0 %v4935
    %5228 = vmatprep.subr.bf16.mxu0 %v4940
    %5229 = vmatpush1.bf16.msra.mxu0 %v4939
    %5230 = vmatprep.subr.bf16.mxu0 %v4944
    %5231 = vmatpush1.bf16.msra.mxu0 %v4943
    %5232 = vmatprep.subr.bf16.mxu0 %v4948
    %5233 = vmatpush1.bf16.msra.mxu0 %v4947
    %5234 = vmatprep.subr.bf16.mxu0 %v4952
    %5235 = vmatpush1.bf16.msra.mxu0 %v4951
    %5236 = vmatprep.mubr.bf16.mxu0 %v4312
    %5237 = vmatmul.mubr.bf16.gmra.mrb[0].mxu0 %v4311
    %v5238 = vpop.f32.mrb[0].mxu0
    %v5239 = vadd.f32 %v5198, %v5238
    %v5240 = vpop.f32.mrb[0].mxu0
    %v5241 = vadd.f32 %v5200, %v5240
    %v5242 = vpop.f32.mrb[0].mxu0
    %v5243 = vpop.f32.mrb[0].mxu0
    %5244 = vdwg.mxu0
    %v5373 = vunpack.c.l.b16 %v4181
    %v5374 = vunpack.c.h.b16 %v4181
    %v5375 = vunpack.c.l.b16 %v4182
    %v5376 = vunpack.c.h.b16 %v4182
    %v5377 = vunpack.c.l.b16 %v4183
    %v5378 = vunpack.c.h.b16 %v4183
    %v5379 = vunpack.c.l.b16 %v4184
    %v5380 = vunpack.c.h.b16 %v4184
    %v5381 = vunpack.c.l.b16 %v4185
    %v5382 = vunpack.c.h.b16 %v4185
    %v5383 = vunpack.c.l.b16 %v4186
    %v5384 = vunpack.c.h.b16 %v4186
    %v5385 = vunpack.c.l.b16 %v4187
    %v5386 = vunpack.c.h.b16 %v4187
    %v5387 = vunpack.c.l.b16 %v4188
    %v5388 = vunpack.c.h.b16 %v4188
    %v5389 = vunpack.c.l.b16 %v4189
    %v5390 = vunpack.c.h.b16 %v4189
    %v5391 = vunpack.c.l.b16 %v4190
    %v5392 = vunpack.c.h.b16 %v4190
    %v5393 = vunpack.c.l.b16 %v4191
    %v5394 = vunpack.c.h.b16 %v4191
    %v5395 = vunpack.c.l.b16 %v4192
    %v5396 = vunpack.c.h.b16 %v4192
    %v5397 = vunpack.c.l.b16 %v4193
    %v5398 = vunpack.c.h.b16 %v4193
    %v5399 = vunpack.c.l.b16 %v4194
    %v5400 = vunpack.c.h.b16 %v4194
    %v5401 = vunpack.c.l.b16 %v4195
    %v5402 = vunpack.c.h.b16 %v4195
    %v5403 = vunpack.c.l.b16 %v4196
    %v5404 = vunpack.c.h.b16 %v4196
    %v5405 = vunpack.c.l.b16 %v4197
    %v5406 = vunpack.c.h.b16 %v4197
    %v5407 = vunpack.c.l.b16 %v4198
    %v5408 = vunpack.c.h.b16 %v4198
    %v5409 = vunpack.c.l.b16 %v4199
    %v5410 = vunpack.c.h.b16 %v4199
    %v5411 = vunpack.c.l.b16 %v4200
    %v5412 = vunpack.c.h.b16 %v4200
    %v5413 = vunpack.c.l.b16 %v4201
    %v5414 = vunpack.c.h.b16 %v4201
    %v5415 = vunpack.c.l.b16 %v4202
    %v5416 = vunpack.c.h.b16 %v4202
    %v5417 = vunpack.c.l.b16 %v4203
    %v5418 = vunpack.c.h.b16 %v4203
    %v5419 = vunpack.c.l.b16 %v4204
    %v5420 = vunpack.c.h.b16 %v4204
    %v5421 = vunpack.c.l.b16 %v4205
    %v5422 = vunpack.c.h.b16 %v4205
    %v5423 = vunpack.c.l.b16 %v4206
    %v5424 = vunpack.c.h.b16 %v4206
    %v5425 = vunpack.c.l.b16 %v4207
    %v5426 = vunpack.c.h.b16 %v4207
    %v5427 = vunpack.c.l.b16 %v4208
    %v5428 = vunpack.c.h.b16 %v4208
    %v5429 = vunpack.c.l.b16 %v4209
    %v5430 = vunpack.c.h.b16 %v4209
    %v5431 = vunpack.c.l.b16 %v4210
    %v5432 = vunpack.c.h.b16 %v4210
    %v5433 = vunpack.c.l.b16 %v4211
    %v5434 = vunpack.c.h.b16 %v4211
    %v5435 = vunpack.c.l.b16 %v4212
    %v5436 = vunpack.c.h.b16 %v4212
    %v5437 = vunpack.c.l.b16 %v4213
    %v5438 = vunpack.c.h.b16 %v4213
    %v5439 = vunpack.c.l.b16 %v4214
    %v5440 = vunpack.c.h.b16 %v4214
    %v5441 = vunpack.c.l.b16 %v4215
    %v5442 = vunpack.c.h.b16 %v4215
    %v5443 = vunpack.c.l.b16 %v4216
    %v5444 = vunpack.c.h.b16 %v4216
    %v5445 = vunpack.c.l.b16 %v4217
    %v5446 = vunpack.c.h.b16 %v4217
    %v5447 = vunpack.c.l.b16 %v4218
    %v5448 = vunpack.c.h.b16 %v4218
    %v5449 = vunpack.c.l.b16 %v4219
    %v5450 = vunpack.c.h.b16 %v4219
    %v5451 = vunpack.c.l.b16 %v4220
    %v5452 = vunpack.c.h.b16 %v4220
    %v5453 = vunpack.c.l.b16 %v4221
    %v5454 = vunpack.c.h.b16 %v4221
    %v5455 = vunpack.c.l.b16 %v4222
    %v5456 = vunpack.c.h.b16 %v4222
    %v5457 = vunpack.c.l.b16 %v4223
    %v5458 = vunpack.c.h.b16 %v4223
    %v5459 = vunpack.c.l.b16 %v4224
    %v5460 = vunpack.c.h.b16 %v4224
    %v5461 = vunpack.c.l.b16 %v4225
    %v5462 = vunpack.c.h.b16 %v4225
    %v5463 = vunpack.c.l.b16 %v4226
    %v5464 = vunpack.c.h.b16 %v4226
    %v5465 = vunpack.c.l.b16 %v4227
    %v5466 = vunpack.c.h.b16 %v4227
    %v5467 = vunpack.c.l.b16 %v4228
    %v5468 = vunpack.c.h.b16 %v4228
    %v5469 = vunpack.c.l.b16 %v4229
    %v5470 = vunpack.c.h.b16 %v4229
    %v5471 = vunpack.c.l.b16 %v4230
    %v5472 = vunpack.c.h.b16 %v4230
    %v5473 = vunpack.c.l.b16 %v4231
    %v5474 = vunpack.c.h.b16 %v4231
    %v5475 = vunpack.c.l.b16 %v4232
    %v5476 = vunpack.c.h.b16 %v4232
    %v5477 = vunpack.c.l.b16 %v4233
    %v5478 = vunpack.c.h.b16 %v4233
    %v5479 = vunpack.c.l.b16 %v4234
    %v5480 = vunpack.c.h.b16 %v4234
    %v5481 = vunpack.c.l.b16 %v4235
    %v5482 = vunpack.c.h.b16 %v4235
    %v5483 = vunpack.c.l.b16 %v4236
    %v5484 = vunpack.c.h.b16 %v4236
    %v5485 = vunpack.c.l.b16 %v4237
    %v5486 = vunpack.c.h.b16 %v4237
    %v5487 = vunpack.c.l.b16 %v4238
    %v5488 = vunpack.c.h.b16 %v4238
    %v5489 = vunpack.c.l.b16 %v4239
    %v5490 = vunpack.c.h.b16 %v4239
    %v5491 = vunpack.c.l.b16 %v4240
    %v5492 = vunpack.c.h.b16 %v4240
    %v5493 = vunpack.c.l.b16 %v4241
    %v5494 = vunpack.c.h.b16 %v4241
    %v5495 = vunpack.c.l.b16 %v4242
    %v5496 = vunpack.c.h.b16 %v4242
    %v5497 = vunpack.c.l.b16 %v4243
    %v5498 = vunpack.c.h.b16 %v4243
    %v5499 = vunpack.c.l.b16 %v4244
    %v5500 = vunpack.c.h.b16 %v4244
    %v5501 = vunpack.c.l.b16 %v4245
    %v5502 = vunpack.c.h.b16 %v4245
    %v5503 = vunpack.c.l.b16 %v4246
    %v5504 = vunpack.c.h.b16 %v4246
    %v5505 = vunpack.c.l.b16 %v4247
    %v5506 = vunpack.c.h.b16 %v4247
    %v5507 = vunpack.c.l.b16 %v4248
    %v5508 = vunpack.c.h.b16 %v4248
    %v5509 = vunpack.c.l.b16 %v4249
    %v5510 = vunpack.c.h.b16 %v4249
    %v5511 = vunpack.c.l.b16 %v4250
    %v5512 = vunpack.c.h.b16 %v4250
    %v5513 = vunpack.c.l.b16 %v4251
    %v5514 = vunpack.c.h.b16 %v4251
    %v5515 = vunpack.c.l.b16 %v4252
    %v5516 = vunpack.c.h.b16 %v4252
    %v5517 = vunpack.c.l.b16 %v4253
    %v5518 = vunpack.c.h.b16 %v4253
    %v5519 = vunpack.c.l.b16 %v4254
    %v5520 = vunpack.c.h.b16 %v4254
    %v5521 = vunpack.c.l.b16 %v4255
    %v5522 = vunpack.c.h.b16 %v4255
    %v5523 = vunpack.c.l.b16 %v4256
    %v5524 = vunpack.c.h.b16 %v4256
    %v5525 = vunpack.c.l.b16 %v4257
    %v5526 = vunpack.c.h.b16 %v4257
    %v5527 = vunpack.c.l.b16 %v4258
    %v5528 = vunpack.c.h.b16 %v4258
    %v5529 = vunpack.c.l.b16 %v4259
    %v5530 = vunpack.c.h.b16 %v4259
    %v5531 = vunpack.c.l.b16 %v4260
    %v5532 = vunpack.c.h.b16 %v4260
    %v5533 = vunpack.c.l.b16 %v4261
    %v5534 = vunpack.c.h.b16 %v4261
    %v5535 = vunpack.c.l.b16 %v4262
    %v5536 = vunpack.c.h.b16 %v4262
    %v5537 = vunpack.c.l.b16 %v4263
    %v5538 = vunpack.c.h.b16 %v4263
    %v5539 = vunpack.c.l.b16 %v4264
    %v5540 = vunpack.c.h.b16 %v4264
    %v5541 = vunpack.c.l.b16 %v4265
    %v5542 = vunpack.c.h.b16 %v4265
    %v5543 = vunpack.c.l.b16 %v4266
    %v5544 = vunpack.c.h.b16 %v4266
    %v5545 = vunpack.c.l.b16 %v4267
    %v5546 = vunpack.c.h.b16 %v4267
    %v5547 = vunpack.c.l.b16 %v4268
    %v5548 = vunpack.c.h.b16 %v4268
    %v5549 = vunpack.c.l.b16 %v4269
    %v5550 = vunpack.c.h.b16 %v4269
    %v5551 = vunpack.c.l.b16 %v4270
    %v5552 = vunpack.c.h.b16 %v4270
    %v5553 = vunpack.c.l.b16 %v4271
    %v5554 = vunpack.c.h.b16 %v4271
    %v5555 = vunpack.c.l.b16 %v4272
    %v5556 = vunpack.c.h.b16 %v4272
    %v5557 = vunpack.c.l.b16 %v4273
    %v5558 = vunpack.c.h.b16 %v4273
    %v5559 = vunpack.c.l.b16 %v4274
    %v5560 = vunpack.c.h.b16 %v4274
    %v5561 = vunpack.c.l.b16 %v4275
    %v5562 = vunpack.c.h.b16 %v4275
    %v5563 = vunpack.c.l.b16 %v4276
    %v5564 = vunpack.c.h.b16 %v4276
    %v5565 = vunpack.c.l.b16 %v4277
    %v5566 = vunpack.c.h.b16 %v4277
    %v5567 = vunpack.c.l.b16 %v4278
    %v5568 = vunpack.c.h.b16 %v4278
    %v5569 = vunpack.c.l.b16 %v4279
    %v5570 = vunpack.c.h.b16 %v4279
    %v5571 = vunpack.c.l.b16 %v4280
    %v5572 = vunpack.c.h.b16 %v4280
    %v5573 = vunpack.c.l.b16 %v4281
    %v5574 = vunpack.c.h.b16 %v4281
    %v5575 = vunpack.c.l.b16 %v4282
    %v5576 = vunpack.c.h.b16 %v4282
    %v5577 = vunpack.c.l.b16 %v4283
    %v5578 = vunpack.c.h.b16 %v4283
    %v5579 = vunpack.c.l.b16 %v4284
    %v5580 = vunpack.c.h.b16 %v4284
    %v5581 = vunpack.c.l.b16 %v4285
    %v5582 = vunpack.c.h.b16 %v4285
    %v5583 = vunpack.c.l.b16 %v4286
    %v5584 = vunpack.c.h.b16 %v4286
    %v5585 = vunpack.c.l.b16 %v4287
    %v5586 = vunpack.c.h.b16 %v4287
    %v5587 = vunpack.c.l.b16 %v4288
    %v5588 = vunpack.c.h.b16 %v4288
    %v5589 = vunpack.c.l.b16 %v4289
    %v5590 = vunpack.c.h.b16 %v4289
    %v5591 = vunpack.c.l.b16 %v4290
    %v5592 = vunpack.c.h.b16 %v4290
    %v5593 = vunpack.c.l.b16 %v4291
    %v5594 = vunpack.c.h.b16 %v4291
    %v5595 = vunpack.c.l.b16 %v4292
    %v5596 = vunpack.c.h.b16 %v4292
    %v5597 = vunpack.c.l.b16 %v4293
    %v5598 = vunpack.c.h.b16 %v4293
    %v5599 = vunpack.c.l.b16 %v4294
    %v5600 = vunpack.c.h.b16 %v4294
    %v5601 = vunpack.c.l.b16 %v4295
    %v5602 = vunpack.c.h.b16 %v4295
    %v5603 = vunpack.c.l.b16 %v4296
    %v5604 = vunpack.c.h.b16 %v4296
    %v5605 = vunpack.c.l.b16 %v4297
    %v5606 = vunpack.c.h.b16 %v4297
    %v5607 = vunpack.c.l.b16 %v4298
    %v5608 = vunpack.c.h.b16 %v4298
    %v5609 = vunpack.c.l.b16 %v4299
    %v5610 = vunpack.c.h.b16 %v4299
    %v5611 = vunpack.c.l.b16 %v4300
    %v5612 = vunpack.c.h.b16 %v4300
    %v5613 = vunpack.c.l.b16 %v4301
    %v5614 = vunpack.c.h.b16 %v4301
    %v5615 = vunpack.c.l.b16 %v4302
    %v5616 = vunpack.c.h.b16 %v4302
    %v5617 = vunpack.c.l.b16 %v4303
    %v5618 = vunpack.c.h.b16 %v4303
    %v5619 = vunpack.c.l.b16 %v4304
    %v5620 = vunpack.c.h.b16 %v4304
    %v5621 = vunpack.c.l.b16 %v4305
    %v5622 = vunpack.c.h.b16 %v4305
    %v5623 = vunpack.c.l.b16 %v4306
    %v5624 = vunpack.c.h.b16 %v4306
    %v5625 = vunpack.c.l.b16 %v4307
    %v5626 = vunpack.c.h.b16 %v4307
    %v5627 = vunpack.c.l.b16 %v4308
    %v5628 = vunpack.c.h.b16 %v4308
    %v5629 = vpack.c.b16 %v5377, %v5373
    %v5630 = vpack.c.b16 %v5378, %v5374
    %v5631 = vpack.c.b16 %v5379, %v5375
    %v5632 = vpack.c.b16 %v5380, %v5376
    %v5633 = vpack.c.b16 %v5385, %v5381
    %v5634 = vpack.c.b16 %v5386, %v5382
    %v5635 = vpack.c.b16 %v5387, %v5383
    %v5636 = vpack.c.b16 %v5388, %v5384
    %v5637 = vpack.c.b16 %v5393, %v5389
    %v5638 = vpack.c.b16 %v5394, %v5390
    %v5639 = vpack.c.b16 %v5395, %v5391
    %v5640 = vpack.c.b16 %v5396, %v5392
    %v5641 = vpack.c.b16 %v5401, %v5397
    %v5642 = vpack.c.b16 %v5402, %v5398
    %v5643 = vpack.c.b16 %v5403, %v5399
    %v5644 = vpack.c.b16 %v5404, %v5400
    %v5645 = vpack.c.b16 %v5409, %v5405
    %v5646 = vpack.c.b16 %v5410, %v5406
    %v5647 = vpack.c.b16 %v5411, %v5407
    %v5648 = vpack.c.b16 %v5412, %v5408
    %v5649 = vpack.c.b16 %v5417, %v5413
    %v5650 = vpack.c.b16 %v5418, %v5414
    %v5651 = vpack.c.b16 %v5419, %v5415
    %v5652 = vpack.c.b16 %v5420, %v5416
    %v5653 = vpack.c.b16 %v5425, %v5421
    %v5654 = vpack.c.b16 %v5426, %v5422
    %v5655 = vpack.c.b16 %v5427, %v5423
    %v5656 = vpack.c.b16 %v5428, %v5424
    %v5657 = vpack.c.b16 %v5433, %v5429
    %v5658 = vpack.c.b16 %v5434, %v5430
    %v5659 = vpack.c.b16 %v5435, %v5431
    %v5660 = vpack.c.b16 %v5436, %v5432
    %v5661 = vpack.c.b16 %v5441, %v5437
    %v5662 = vpack.c.b16 %v5442, %v5438
    %v5663 = vpack.c.b16 %v5443, %v5439
    %v5664 = vpack.c.b16 %v5444, %v5440
    %v5665 = vpack.c.b16 %v5449, %v5445
    %v5666 = vpack.c.b16 %v5450, %v5446
    %v5667 = vpack.c.b16 %v5451, %v5447
    %v5668 = vpack.c.b16 %v5452, %v5448
    %v5669 = vpack.c.b16 %v5457, %v5453
    %v5670 = vpack.c.b16 %v5458, %v5454
    %v5671 = vpack.c.b16 %v5459, %v5455
    %v5672 = vpack.c.b16 %v5460, %v5456
    %v5673 = vpack.c.b16 %v5465, %v5461
    %v5674 = vpack.c.b16 %v5466, %v5462
    %v5675 = vpack.c.b16 %v5467, %v5463
    %v5676 = vpack.c.b16 %v5468, %v5464
    %v5677 = vpack.c.b16 %v5473, %v5469
    %v5678 = vpack.c.b16 %v5474, %v5470
    %v5679 = vpack.c.b16 %v5475, %v5471
    %v5680 = vpack.c.b16 %v5476, %v5472
    %v5681 = vpack.c.b16 %v5481, %v5477
    %v5682 = vpack.c.b16 %v5482, %v5478
    %v5683 = vpack.c.b16 %v5483, %v5479
    %v5684 = vpack.c.b16 %v5484, %v5480
    %v5685 = vpack.c.b16 %v5489, %v5485
    %v5686 = vpack.c.b16 %v5490, %v5486
    %v5687 = vpack.c.b16 %v5491, %v5487
    %v5688 = vpack.c.b16 %v5492, %v5488
    %v5689 = vpack.c.b16 %v5497, %v5493
    %v5690 = vpack.c.b16 %v5498, %v5494
    %v5691 = vpack.c.b16 %v5499, %v5495
    %v5692 = vpack.c.b16 %v5500, %v5496
    %v5693 = vpack.c.b16 %v5505, %v5501
    %v5694 = vpack.c.b16 %v5506, %v5502
    %v5695 = vpack.c.b16 %v5507, %v5503
    %v5696 = vpack.c.b16 %v5508, %v5504
    %v5697 = vpack.c.b16 %v5513, %v5509
    %v5698 = vpack.c.b16 %v5514, %v5510
    %v5699 = vpack.c.b16 %v5515, %v5511
    %v5700 = vpack.c.b16 %v5516, %v5512
    %v5701 = vpack.c.b16 %v5521, %v5517
    %v5702 = vpack.c.b16 %v5522, %v5518
    %v5703 = vpack.c.b16 %v5523, %v5519
    %v5704 = vpack.c.b16 %v5524, %v5520
    %v5705 = vpack.c.b16 %v5529, %v5525
    %v5706 = vpack.c.b16 %v5530, %v5526
    %v5707 = vpack.c.b16 %v5531, %v5527
    %v5708 = vpack.c.b16 %v5532, %v5528
    %v5709 = vpack.c.b16 %v5537, %v5533
    %v5710 = vpack.c.b16 %v5538, %v5534
    %v5711 = vpack.c.b16 %v5539, %v5535
    %v5712 = vpack.c.b16 %v5540, %v5536
    %v5713 = vpack.c.b16 %v5545, %v5541
    %v5714 = vpack.c.b16 %v5546, %v5542
    %v5715 = vpack.c.b16 %v5547, %v5543
    %v5716 = vpack.c.b16 %v5548, %v5544
    %v5717 = vpack.c.b16 %v5553, %v5549
    %v5718 = vpack.c.b16 %v5554, %v5550
    %v5719 = vpack.c.b16 %v5555, %v5551
    %v5720 = vpack.c.b16 %v5556, %v5552
    %v5721 = vpack.c.b16 %v5561, %v5557
    %v5722 = vpack.c.b16 %v5562, %v5558
    %v5723 = vpack.c.b16 %v5563, %v5559
    %v5724 = vpack.c.b16 %v5564, %v5560
    %v5725 = vpack.c.b16 %v5569, %v5565
    %v5726 = vpack.c.b16 %v5570, %v5566
    %v5727 = vpack.c.b16 %v5571, %v5567
    %v5728 = vpack.c.b16 %v5572, %v5568
    %v5729 = vpack.c.b16 %v5577, %v5573
    %v5730 = vpack.c.b16 %v5578, %v5574
    %v5731 = vpack.c.b16 %v5579, %v5575
    %v5732 = vpack.c.b16 %v5580, %v5576
    %v5733 = vpack.c.b16 %v5585, %v5581
    %v5734 = vpack.c.b16 %v5586, %v5582
    %v5735 = vpack.c.b16 %v5587, %v5583
    %v5736 = vpack.c.b16 %v5588, %v5584
    %v5737 = vpack.c.b16 %v5593, %v5589
    %v5738 = vpack.c.b16 %v5594, %v5590
    %v5739 = vpack.c.b16 %v5595, %v5591
    %v5740 = vpack.c.b16 %v5596, %v5592
    %v5741 = vpack.c.b16 %v5601, %v5597
    %v5742 = vpack.c.b16 %v5602, %v5598
    %v5743 = vpack.c.b16 %v5603, %v5599
    %v5744 = vpack.c.b16 %v5604, %v5600
    %v5745 = vpack.c.b16 %v5609, %v5605
    %v5746 = vpack.c.b16 %v5610, %v5606
    %v5747 = vpack.c.b16 %v5611, %v5607
    %v5748 = vpack.c.b16 %v5612, %v5608
    %v5749 = vpack.c.b16 %v5617, %v5613
    %v5750 = vpack.c.b16 %v5618, %v5614
    %v5751 = vpack.c.b16 %v5619, %v5615
    %v5752 = vpack.c.b16 %v5620, %v5616
    %v5753 = vpack.c.b16 %v5625, %v5621
    %v5754 = vpack.c.b16 %v5626, %v5622
    %v5755 = vpack.c.b16 %v5627, %v5623
    %v5756 = vpack.c.b16 %v5628, %v5624
    %5885 = vmatprep.subr.bf16.mxu0 %v5630
    %5886 = vmatpush1.bf16.msra.mxu0 %v5629
    %5887 = vmatprep.subr.bf16.mxu0 %v5634
    %5888 = vmatpush1.bf16.msra.mxu0 %v5633
    %5889 = vmatprep.subr.bf16.mxu0 %v5638
    %5890 = vmatpush1.bf16.msra.mxu0 %v5637
    %5891 = vmatprep.subr.bf16.mxu0 %v5642
    %5892 = vmatpush1.bf16.msra.mxu0 %v5641
    %5893 = vmatprep.subr.bf16.mxu0 %v5646
    %5894 = vmatpush1.bf16.msra.mxu0 %v5645
    %5895 = vmatprep.subr.bf16.mxu0 %v5650
    %5896 = vmatpush1.bf16.msra.mxu0 %v5649
    %5897 = vmatprep.subr.bf16.mxu0 %v5654
    %5898 = vmatpush1.bf16.msra.mxu0 %v5653
    %5899 = vmatprep.subr.bf16.mxu0 %v5658
    %5900 = vmatpush1.bf16.msra.mxu0 %v5657
    %5901 = vmatprep.subr.bf16.mxu0 %v5662
    %5902 = vmatpush1.bf16.msra.mxu0 %v5661
    %5903 = vmatprep.subr.bf16.mxu0 %v5666
    %5904 = vmatpush1.bf16.msra.mxu0 %v5665
    %5905 = vmatprep.subr.bf16.mxu0 %v5670
    %5906 = vmatpush1.bf16.msra.mxu0 %v5669
    %5907 = vmatprep.subr.bf16.mxu0 %v5674
    %5908 = vmatpush1.bf16.msra.mxu0 %v5673
    %5909 = vmatprep.subr.bf16.mxu0 %v5678
    %5910 = vmatpush1.bf16.msra.mxu0 %v5677
    %5911 = vmatprep.subr.bf16.mxu0 %v5682
    %5912 = vmatpush1.bf16.msra.mxu0 %v5681
    %5913 = vmatprep.subr.bf16.mxu0 %v5686
    %5914 = vmatpush1.bf16.msra.mxu0 %v5685
    %5915 = vmatprep.subr.bf16.mxu0 %v5690
    %5916 = vmatpush1.bf16.msra.mxu0 %v5689
    %5917 = vmatprep.mubr.bf16.mxu0 %v4178
    %5918 = vmatmul.mubr.bf16.gmra.mrb[0].mxu0 %v4177
    %v5919 = vpop.f32.mrb[0].mxu0
    %v5920 = vadd.f32 %v5157, %v5919
    %v5921 = vpop.f32.mrb[0].mxu0
    %v5922 = vadd.f32 %v5159, %v5921
    %v5923 = vpop.f32.mrb[0].mxu0
    %v5924 = vpop.f32.mrb[0].mxu0
    %5925 = vdwg.mxu0
    %5926 = vmatprep.subr.bf16.mxu0 %v5694
    %5927 = vmatpush1.bf16.msra.mxu0 %v5693
    %5928 = vmatprep.subr.bf16.mxu0 %v5698
    %5929 = vmatpush1.bf16.msra.mxu0 %v5697
    %5930 = vmatprep.subr.bf16.mxu0 %v5702
    %5931 = vmatpush1.bf16.msra.mxu0 %v5701
    %5932 = vmatprep.subr.bf16.mxu0 %v5706
    %5933 = vmatpush1.bf16.msra.mxu0 %v5705
    %5934 = vmatprep.subr.bf16.mxu0 %v5710
    %5935 = vmatpush1.bf16.msra.mxu0 %v5709
    %5936 = vmatprep.subr.bf16.mxu0 %v5714
    %5937 = vmatpush1.bf16.msra.mxu0 %v5713
    %5938 = vmatprep.subr.bf16.mxu0 %v5718
    %5939 = vmatpush1.bf16.msra.mxu0 %v5717
    %5940 = vmatprep.subr.bf16.mxu0 %v5722
    %5941 = vmatpush1.bf16.msra.mxu0 %v5721
    %5942 = vmatprep.subr.bf16.mxu0 %v5726
    %5943 = vmatpush1.bf16.msra.mxu0 %v5725
    %5944 = vmatprep.subr.bf16.mxu0 %v5730
    %5945 = vmatpush1.bf16.msra.mxu0 %v5729
    %5946 = vmatprep.subr.bf16.mxu0 %v5734
    %5947 = vmatpush1.bf16.msra.mxu0 %v5733
    %5948 = vmatprep.subr.bf16.mxu0 %v5738
    %5949 = vmatpush1.bf16.msra.mxu0 %v5737
    %5950 = vmatprep.subr.bf16.mxu0 %v5742
    %5951 = vmatpush1.bf16.msra.mxu0 %v5741
    %5952 = vmatprep.subr.bf16.mxu0 %v5746
    %5953 = vmatpush1.bf16.msra.mxu0 %v5745
    %5954 = vmatprep.subr.bf16.mxu0 %v5750
    %5955 = vmatpush1.bf16.msra.mxu0 %v5749
    %5956 = vmatprep.subr.bf16.mxu0 %v5754
    %5957 = vmatpush1.bf16.msra.mxu0 %v5753
    %5958 = vmatprep.mubr.bf16.mxu0 %v4180
    %5959 = vmatmul.mubr.bf16.gmra.mrb[0].mxu0 %v4179
    %v5960 = vpop.f32.mrb[0].mxu0
    %v5961 = vadd.f32 %v5920, %v5960
    %v5962 = vpop.f32.mrb[0].mxu0
    %v5963 = vadd.f32 %v5922, %v5962
    %v5964 = vpop.f32.mrb[0].mxu0
    %v5965 = vpop.f32.mrb[0].mxu0
    %5966 = vdwg.mxu0
    %5967 = vmatprep.subr.bf16.mxu0 %v5632
    %5968 = vmatpush1.bf16.msra.mxu0 %v5631
    %5969 = vmatprep.subr.bf16.mxu0 %v5636
    %5970 = vmatpush1.bf16.msra.mxu0 %v5635
    %5971 = vmatprep.subr.bf16.mxu0 %v5640
    %5972 = vmatpush1.bf16.msra.mxu0 %v5639
    %5973 = vmatprep.subr.bf16.mxu0 %v5644
    %5974 = vmatpush1.bf16.msra.mxu0 %v5643
    %5975 = vmatprep.subr.bf16.mxu0 %v5648
    %5976 = vmatpush1.bf16.msra.mxu0 %v5647
    %5977 = vmatprep.subr.bf16.mxu0 %v5652
    %5978 = vmatpush1.bf16.msra.mxu0 %v5651
    %5979 = vmatprep.subr.bf16.mxu0 %v5656
    %5980 = vmatpush1.bf16.msra.mxu0 %v5655
    %5981 = vmatprep.subr.bf16.mxu0 %v5660
    %5982 = vmatpush1.bf16.msra.mxu0 %v5659
    %5983 = vmatprep.subr.bf16.mxu0 %v5664
    %5984 = vmatpush1.bf16.msra.mxu0 %v5663
    %5985 = vmatprep.subr.bf16.mxu0 %v5668
    %5986 = vmatpush1.bf16.msra.mxu0 %v5667
    %5987 = vmatprep.subr.bf16.mxu0 %v5672
    %5988 = vmatpush1.bf16.msra.mxu0 %v5671
    %5989 = vmatprep.subr.bf16.mxu0 %v5676
    %5990 = vmatpush1.bf16.msra.mxu0 %v5675
    %5991 = vmatprep.subr.bf16.mxu0 %v5680
    %5992 = vmatpush1.bf16.msra.mxu0 %v5679
    %5993 = vmatprep.subr.bf16.mxu0 %v5684
    %5994 = vmatpush1.bf16.msra.mxu0 %v5683
    %5995 = vmatprep.subr.bf16.mxu0 %v5688
    %5996 = vmatpush1.bf16.msra.mxu0 %v5687
    %5997 = vmatprep.subr.bf16.mxu0 %v5692
    %5998 = vmatpush1.bf16.msra.mxu0 %v5691
    %5999 = vmatprep.mubr.bf16.mxu0 %v4178
    %6000 = vmatmul.mubr.bf16.gmra.mrb[0].mxu0 %v4177
    %v6001 = vpop.f32.mrb[0].mxu0
    %v6002 = vadd.f32 %v5239, %v6001
    %v6003 = vpop.f32.mrb[0].mxu0
    %v6004 = vadd.f32 %v5241, %v6003
    %v6005 = vpop.f32.mrb[0].mxu0
    %v6006 = vpop.f32.mrb[0].mxu0
    %6007 = vdwg.mxu0
    %6008 = vmatprep.subr.bf16.mxu0 %v5696
    %6009 = vmatpush1.bf16.msra.mxu0 %v5695
    %6010 = vmatprep.subr.bf16.mxu0 %v5700
    %6011 = vmatpush1.bf16.msra.mxu0 %v5699
    %6012 = vmatprep.subr.bf16.mxu0 %v5704
    %6013 = vmatpush1.bf16.msra.mxu0 %v5703
    %6014 = vmatprep.subr.bf16.mxu0 %v5708
    %6015 = vmatpush1.bf16.msra.mxu0 %v5707
    %6016 = vmatprep.subr.bf16.mxu0 %v5712
    %6017 = vmatpush1.bf16.msra.mxu0 %v5711
    %6018 = vmatprep.subr.bf16.mxu0 %v5716
    %6019 = vmatpush1.bf16.msra.mxu0 %v5715
    %6020 = vmatprep.subr.bf16.mxu0 %v5720
    %6021 = vmatpush1.bf16.msra.mxu0 %v5719
    %6022 = vmatprep.subr.bf16.mxu0 %v5724
    %6023 = vmatpush1.bf16.msra.mxu0 %v5723
    %6024 = vmatprep.subr.bf16.mxu0 %v5728
    %6025 = vmatpush1.bf16.msra.mxu0 %v5727
    %6026 = vmatprep.subr.bf16.mxu0 %v5732
    %6027 = vmatpush1.bf16.msra.mxu0 %v5731
    %6028 = vmatprep.subr.bf16.mxu0 %v5736
    %6029 = vmatpush1.bf16.msra.mxu0 %v5735
    %6030 = vmatprep.subr.bf16.mxu0 %v5740
    %6031 = vmatpush1.bf16.msra.mxu0 %v5739
    %6032 = vmatprep.subr.bf16.mxu0 %v5744
    %6033 = vmatpush1.bf16.msra.mxu0 %v5743
    %6034 = vmatprep.subr.bf16.mxu0 %v5748
    %6035 = vmatpush1.bf16.msra.mxu0 %v5747
    %6036 = vmatprep.subr.bf16.mxu0 %v5752
    %6037 = vmatpush1.bf16.msra.mxu0 %v5751
    %6038 = vmatprep.subr.bf16.mxu0 %v5756
    %6039 = vmatpush1.bf16.msra.mxu0 %v5755
    %6040 = vmatprep.mubr.bf16.mxu0 %v4180
    %6041 = vmatmul.mubr.bf16.gmra.mrb[0].mxu0 %v4179
    %v6042 = vpop.f32.mrb[0].mxu0
    %v6043 = vadd.f32 %v6002, %v6042
    %v6044 = vpop.f32.mrb[0].mxu0
    %v6045 = vadd.f32 %v6004, %v6044
    %v6046 = vpop.f32.mrb[0].mxu0
    %v6047 = vpop.f32.mrb[0].mxu0
    %6048 = vdwg.mxu0
    %v6049 = vld [vmem:[%s14] sm:$0xf]
    %v6051 = vlaneseq
    %v6052 = vshrl.u32 %v6051, 7
    %v6053 = vsub.s32 0, %v6052
    %v6054 = vrot.slane %v6049, %v6053
    %v6055 = vlaneseq
    %v6056 = vshrl.u32 %v6055, 7
    %v6057 = vsub.s32 1, %v6056
    %v6058 = vrot.slane %v6049, %v6057
    %v6059 = vlaneseq
    %v6060 = vshrl.u32 %v6059, 7
    %v6061 = vsub.s32 2, %v6060
    %v6062 = vrot.slane %v6049, %v6061
    %v6063 = vlaneseq
    %v6064 = vshrl.u32 %v6063, 7
    %v6065 = vsub.s32 3, %v6064
    %v6066 = vrot.slane %v6049, %v6065
    %v6071 = vadd.f32 %v5961, %v6054
    %v6072 = vadd.f32 %v5963, %v6058
    %v6073 = vadd.f32 %v6043, %v6062
    %v6074 = vadd.f32 %v6045, %v6066
    %v6075 = vmax.f32 %v6071, 0.0
    %v6076 = vmax.f32 %v6072, 0.0
    %v6077 = vmax.f32 %v6073, 0.0
    %v6078 = vmax.f32 %v6074, 0.0
    %v6079 = vpack.c.bf16 %v6075, %v6075
    %v6080 = vpack.c.bf16 %v6076, %v6076
    %v6081 = vpack.c.bf16 %v6077, %v6077
    %v6082 = vpack.c.bf16 %v6078, %v6078
    %v6083 = vld [vmem:[#allocation14] sm:$0xff]
    %v6084 = vld [vmem:[#allocation14 + $0x8] sm:$0xff]
    %v6085 = vld [vmem:[#allocation14 + $0x10] sm:$0xff]
    %v6086 = vld [vmem:[#allocation14 + $0x18] sm:$0xff]
    %v6087 = vld [vmem:[#allocation14 + $0x20] sm:$0xff]
    %v6088 = vld [vmem:[#allocation14 + $0x28] sm:$0xff]
    %v6089 = vld [vmem:[#allocation14 + $0x30] sm:$0xff]
    %v6090 = vld [vmem:[#allocation14 + $0x38] sm:$0xff]
    %v6091 = vld [vmem:[#allocation14 + $0x40] sm:$0xff]
    %v6092 = vld [vmem:[#allocation14 + $0x48] sm:$0xff]
    %v6093 = vld [vmem:[#allocation14 + $0x50] sm:$0xff]
    %v6094 = vld [vmem:[#allocation14 + $0x58] sm:$0xff]
    %v6095 = vld [vmem:[#allocation14 + $0x60] sm:$0xff]
    %v6096 = vld [vmem:[#allocation14 + $0x68] sm:$0xff]
    %v6097 = vld [vmem:[#allocation14 + $0x70] sm:$0xff]
    %v6098 = vld [vmem:[#allocation14 + $0x78] sm:$0xff]
    %v6099 = vld [vmem:[#allocation14 + $0x80] sm:$0xff]
    %v6100 = vld [vmem:[#allocation14 + $0x88] sm:$0xff]
    %v6101 = vld [vmem:[#allocation14 + $0x90] sm:$0xff]
    %v6102 = vld [vmem:[#allocation14 + $0x98] sm:$0xff]
    %v6103 = vld [vmem:[#allocation14 + $0xa0] sm:$0xff]
    %v6104 = vld [vmem:[#allocation14 + $0xa8] sm:$0xff]
    %v6105 = vld [vmem:[#allocation14 + $0xb0] sm:$0xff]
    %v6106 = vld [vmem:[#allocation14 + $0xb8] sm:$0xff]
    %v6107 = vld [vmem:[#allocation14 + $0xc0] sm:$0xff]
    %v6108 = vld [vmem:[#allocation14 + $0xc8] sm:$0xff]
    %v6109 = vld [vmem:[#allocation14 + $0xd0] sm:$0xff]
    %v6110 = vld [vmem:[#allocation14 + $0xd8] sm:$0xff]
    %v6111 = vld [vmem:[#allocation14 + $0xe0] sm:$0xff]
    %v6112 = vld [vmem:[#allocation14 + $0xe8] sm:$0xff]
    %v6113 = vld [vmem:[#allocation14 + $0xf0] sm:$0xff]
    %v6114 = vld [vmem:[#allocation14 + $0xf8] sm:$0xff]
    %v6115 = vld [vmem:[#allocation14 + $0x100] sm:$0xff]
    %v6116 = vld [vmem:[#allocation14 + $0x108] sm:$0xff]
    %v6117 = vld [vmem:[#allocation14 + $0x110] sm:$0xff]
    %v6118 = vld [vmem:[#allocation14 + $0x118] sm:$0xff]
    %v6119 = vld [vmem:[#allocation14 + $0x120] sm:$0xff]
    %v6120 = vld [vmem:[#allocation14 + $0x128] sm:$0xff]
    %v6121 = vld [vmem:[#allocation14 + $0x130] sm:$0xff]
    %v6122 = vld [vmem:[#allocation14 + $0x138] sm:$0xff]
    %v6123 = vld [vmem:[#allocation14 + $0x140] sm:$0xff]
    %v6124 = vld [vmem:[#allocation14 + $0x148] sm:$0xff]
    %v6125 = vld [vmem:[#allocation14 + $0x150] sm:$0xff]
    %v6126 = vld [vmem:[#allocation14 + $0x158] sm:$0xff]
    %v6127 = vld [vmem:[#allocation14 + $0x160] sm:$0xff]
    %v6128 = vld [vmem:[#allocation14 + $0x168] sm:$0xff]
    %v6129 = vld [vmem:[#allocation14 + $0x170] sm:$0xff]
    %v6130 = vld [vmem:[#allocation14 + $0x178] sm:$0xff]
    %v6131 = vld [vmem:[#allocation14 + $0x180] sm:$0xff]
    %v6132 = vld [vmem:[#allocation14 + $0x188] sm:$0xff]
    %v6133 = vld [vmem:[#allocation14 + $0x190] sm:$0xff]
    %v6134 = vld [vmem:[#allocation14 + $0x198] sm:$0xff]
    %v6135 = vld [vmem:[#allocation14 + $0x1a0] sm:$0xff]
    %v6136 = vld [vmem:[#allocation14 + $0x1a8] sm:$0xff]
    %v6137 = vld [vmem:[#allocation14 + $0x1b0] sm:$0xff]
    %v6138 = vld [vmem:[#allocation14 + $0x1b8] sm:$0xff]
    %v6139 = vld [vmem:[#allocation14 + $0x1c0] sm:$0xff]
    %v6140 = vld [vmem:[#allocation14 + $0x1c8] sm:$0xff]
    %v6141 = vld [vmem:[#allocation14 + $0x1d0] sm:$0xff]
    %v6142 = vld [vmem:[#allocation14 + $0x1d8] sm:$0xff]
    %v6143 = vld [vmem:[#allocation14 + $0x1e0] sm:$0xff]
    %v6144 = vld [vmem:[#allocation14 + $0x1e8] sm:$0xff]
    %v6145 = vld [vmem:[#allocation14 + $0x1f0] sm:$0xff]
    %v6146 = vld [vmem:[#allocation14 + $0x1f8] sm:$0xff]
    %v6147 = vld [vmem:[%s16] sm:$0x3]
    %v6149 = vlaneseq
    %v6150 = vshrl.u32 %v6149, 7
    %v6151 = vsub.s32 0, %v6150
    %v6152 = vrot.slane %v6147, %v6151
    %v6153 = vlaneseq
    %v6154 = vshrl.u32 %v6153, 7
    %v6155 = vsub.s32 1, %v6154
    %v6156 = vrot.slane %v6147, %v6155
    %v6223 = vunpack.c.l.b16 %v6083
    %v6224 = vunpack.c.h.b16 %v6083
    %v6225 = vunpack.c.l.b16 %v6084
    %v6226 = vunpack.c.h.b16 %v6084
    %v6227 = vunpack.c.l.b16 %v6085
    %v6228 = vunpack.c.h.b16 %v6085
    %v6229 = vunpack.c.l.b16 %v6086
    %v6230 = vunpack.c.h.b16 %v6086
    %v6231 = vunpack.c.l.b16 %v6087
    %v6232 = vunpack.c.h.b16 %v6087
    %v6233 = vunpack.c.l.b16 %v6088
    %v6234 = vunpack.c.h.b16 %v6088
    %v6235 = vunpack.c.l.b16 %v6089
    %v6236 = vunpack.c.h.b16 %v6089
    %v6237 = vunpack.c.l.b16 %v6090
    %v6238 = vunpack.c.h.b16 %v6090
    %v6239 = vunpack.c.l.b16 %v6091
    %v6240 = vunpack.c.h.b16 %v6091
    %v6241 = vunpack.c.l.b16 %v6092
    %v6242 = vunpack.c.h.b16 %v6092
    %v6243 = vunpack.c.l.b16 %v6093
    %v6244 = vunpack.c.h.b16 %v6093
    %v6245 = vunpack.c.l.b16 %v6094
    %v6246 = vunpack.c.h.b16 %v6094
    %v6247 = vunpack.c.l.b16 %v6095
    %v6248 = vunpack.c.h.b16 %v6095
    %v6249 = vunpack.c.l.b16 %v6096
    %v6250 = vunpack.c.h.b16 %v6096
    %v6251 = vunpack.c.l.b16 %v6097
    %v6252 = vunpack.c.h.b16 %v6097
    %v6253 = vunpack.c.l.b16 %v6098
    %v6254 = vunpack.c.h.b16 %v6098
    %v6255 = vunpack.c.l.b16 %v6099
    %v6256 = vunpack.c.h.b16 %v6099
    %v6257 = vunpack.c.l.b16 %v6100
    %v6258 = vunpack.c.h.b16 %v6100
    %v6259 = vunpack.c.l.b16 %v6101
    %v6260 = vunpack.c.h.b16 %v6101
    %v6261 = vunpack.c.l.b16 %v6102
    %v6262 = vunpack.c.h.b16 %v6102
    %v6263 = vunpack.c.l.b16 %v6103
    %v6264 = vunpack.c.h.b16 %v6103
    %v6265 = vunpack.c.l.b16 %v6104
    %v6266 = vunpack.c.h.b16 %v6104
    %v6267 = vunpack.c.l.b16 %v6105
    %v6268 = vunpack.c.h.b16 %v6105
    %v6269 = vunpack.c.l.b16 %v6106
    %v6270 = vunpack.c.h.b16 %v6106
    %v6271 = vunpack.c.l.b16 %v6107
    %v6272 = vunpack.c.h.b16 %v6107
    %v6273 = vunpack.c.l.b16 %v6108
    %v6274 = vunpack.c.h.b16 %v6108
    %v6275 = vunpack.c.l.b16 %v6109
    %v6276 = vunpack.c.h.b16 %v6109
    %v6277 = vunpack.c.l.b16 %v6110
    %v6278 = vunpack.c.h.b16 %v6110
    %v6279 = vunpack.c.l.b16 %v6111
    %v6280 = vunpack.c.h.b16 %v6111
    %v6281 = vunpack.c.l.b16 %v6112
    %v6282 = vunpack.c.h.b16 %v6112
    %v6283 = vunpack.c.l.b16 %v6113
    %v6284 = vunpack.c.h.b16 %v6113
    %v6285 = vunpack.c.l.b16 %v6114
    %v6286 = vunpack.c.h.b16 %v6114
    %v6287 = vunpack.c.l.b16 %v6115
    %v6288 = vunpack.c.h.b16 %v6115
    %v6289 = vunpack.c.l.b16 %v6116
    %v6290 = vunpack.c.h.b16 %v6116
    %v6291 = vunpack.c.l.b16 %v6117
    %v6292 = vunpack.c.h.b16 %v6117
    %v6293 = vunpack.c.l.b16 %v6118
    %v6294 = vunpack.c.h.b16 %v6118
    %v6295 = vunpack.c.l.b16 %v6119
    %v6296 = vunpack.c.h.b16 %v6119
    %v6297 = vunpack.c.l.b16 %v6120
    %v6298 = vunpack.c.h.b16 %v6120
    %v6299 = vunpack.c.l.b16 %v6121
    %v6300 = vunpack.c.h.b16 %v6121
    %v6301 = vunpack.c.l.b16 %v6122
    %v6302 = vunpack.c.h.b16 %v6122
    %v6303 = vunpack.c.l.b16 %v6123
    %v6304 = vunpack.c.h.b16 %v6123
    %v6305 = vunpack.c.l.b16 %v6124
    %v6306 = vunpack.c.h.b16 %v6124
    %v6307 = vunpack.c.l.b16 %v6125
    %v6308 = vunpack.c.h.b16 %v6125
    %v6309 = vunpack.c.l.b16 %v6126
    %v6310 = vunpack.c.h.b16 %v6126
    %v6311 = vunpack.c.l.b16 %v6127
    %v6312 = vunpack.c.h.b16 %v6127
    %v6313 = vunpack.c.l.b16 %v6128
    %v6314 = vunpack.c.h.b16 %v6128
    %v6315 = vunpack.c.l.b16 %v6129
    %v6316 = vunpack.c.h.b16 %v6129
    %v6317 = vunpack.c.l.b16 %v6130
    %v6318 = vunpack.c.h.b16 %v6130
    %v6319 = vunpack.c.l.b16 %v6131
    %v6320 = vunpack.c.h.b16 %v6131
    %v6321 = vunpack.c.l.b16 %v6132
    %v6322 = vunpack.c.h.b16 %v6132
    %v6323 = vunpack.c.l.b16 %v6133
    %v6324 = vunpack.c.h.b16 %v6133
    %v6325 = vunpack.c.l.b16 %v6134
    %v6326 = vunpack.c.h.b16 %v6134
    %v6327 = vunpack.c.l.b16 %v6135
    %v6328 = vunpack.c.h.b16 %v6135
    %v6329 = vunpack.c.l.b16 %v6136
    %v6330 = vunpack.c.h.b16 %v6136
    %v6331 = vunpack.c.l.b16 %v6137
    %v6332 = vunpack.c.h.b16 %v6137
    %v6333 = vunpack.c.l.b16 %v6138
    %v6334 = vunpack.c.h.b16 %v6138
    %v6335 = vunpack.c.l.b16 %v6139
    %v6336 = vunpack.c.h.b16 %v6139
    %v6337 = vunpack.c.l.b16 %v6140
    %v6338 = vunpack.c.h.b16 %v6140
    %v6339 = vunpack.c.l.b16 %v6141
    %v6340 = vunpack.c.h.b16 %v6141
    %v6341 = vunpack.c.l.b16 %v6142
    %v6342 = vunpack.c.h.b16 %v6142
    %v6343 = vunpack.c.l.b16 %v6143
    %v6344 = vunpack.c.h.b16 %v6143
    %v6345 = vunpack.c.l.b16 %v6144
    %v6346 = vunpack.c.h.b16 %v6144
    %v6347 = vunpack.c.l.b16 %v6145
    %v6348 = vunpack.c.h.b16 %v6145
    %v6349 = vunpack.c.l.b16 %v6146
    %v6350 = vunpack.c.h.b16 %v6146
    %v6351 = vpack.c.b16 %v6225, %v6223
    %v6352 = vpack.c.b16 %v6226, %v6224
    %v6353 = vpack.c.b16 %v6229, %v6227
    %v6354 = vpack.c.b16 %v6230, %v6228
    %v6355 = vpack.c.b16 %v6233, %v6231
    %v6356 = vpack.c.b16 %v6234, %v6232
    %v6357 = vpack.c.b16 %v6237, %v6235
    %v6358 = vpack.c.b16 %v6238, %v6236
    %v6359 = vpack.c.b16 %v6241, %v6239
    %v6360 = vpack.c.b16 %v6242, %v6240
    %v6361 = vpack.c.b16 %v6245, %v6243
    %v6362 = vpack.c.b16 %v6246, %v6244
    %v6363 = vpack.c.b16 %v6249, %v6247
    %v6364 = vpack.c.b16 %v6250, %v6248
    %v6365 = vpack.c.b16 %v6253, %v6251
    %v6366 = vpack.c.b16 %v6254, %v6252
    %v6367 = vpack.c.b16 %v6257, %v6255
    %v6368 = vpack.c.b16 %v6258, %v6256
    %v6369 = vpack.c.b16 %v6261, %v6259
    %v6370 = vpack.c.b16 %v6262, %v6260
    %v6371 = vpack.c.b16 %v6265, %v6263
    %v6372 = vpack.c.b16 %v6266, %v6264
    %v6373 = vpack.c.b16 %v6269, %v6267
    %v6374 = vpack.c.b16 %v6270, %v6268
    %v6375 = vpack.c.b16 %v6273, %v6271
    %v6376 = vpack.c.b16 %v6274, %v6272
    %v6377 = vpack.c.b16 %v6277, %v6275
    %v6378 = vpack.c.b16 %v6278, %v6276
    %v6379 = vpack.c.b16 %v6281, %v6279
    %v6380 = vpack.c.b16 %v6282, %v6280
    %v6381 = vpack.c.b16 %v6285, %v6283
    %v6382 = vpack.c.b16 %v6286, %v6284
    %v6383 = vpack.c.b16 %v6289, %v6287
    %v6384 = vpack.c.b16 %v6290, %v6288
    %v6385 = vpack.c.b16 %v6293, %v6291
    %v6386 = vpack.c.b16 %v6294, %v6292
    %v6387 = vpack.c.b16 %v6297, %v6295
    %v6388 = vpack.c.b16 %v6298, %v6296
    %v6389 = vpack.c.b16 %v6301, %v6299
    %v6390 = vpack.c.b16 %v6302, %v6300
    %v6391 = vpack.c.b16 %v6305, %v6303
    %v6392 = vpack.c.b16 %v6306, %v6304
    %v6393 = vpack.c.b16 %v6309, %v6307
    %v6394 = vpack.c.b16 %v6310, %v6308
    %v6395 = vpack.c.b16 %v6313, %v6311
    %v6396 = vpack.c.b16 %v6314, %v6312
    %v6397 = vpack.c.b16 %v6317, %v6315
    %v6398 = vpack.c.b16 %v6318, %v6316
    %v6399 = vpack.c.b16 %v6321, %v6319
    %v6400 = vpack.c.b16 %v6322, %v6320
    %v6401 = vpack.c.b16 %v6325, %v6323
    %v6402 = vpack.c.b16 %v6326, %v6324
    %v6403 = vpack.c.b16 %v6329, %v6327
    %v6404 = vpack.c.b16 %v6330, %v6328
    %v6405 = vpack.c.b16 %v6333, %v6331
    %v6406 = vpack.c.b16 %v6334, %v6332
    %v6407 = vpack.c.b16 %v6337, %v6335
    %v6408 = vpack.c.b16 %v6338, %v6336
    %v6409 = vpack.c.b16 %v6341, %v6339
    %v6410 = vpack.c.b16 %v6342, %v6340
    %v6411 = vpack.c.b16 %v6345, %v6343
    %v6412 = vpack.c.b16 %v6346, %v6344
    %v6413 = vpack.c.b16 %v6349, %v6347
    %v6414 = vpack.c.b16 %v6350, %v6348
    %6479 = vmatprep.subr.bf16.mxu0 %v6352
    %6480 = vmatpush1.bf16.msra.mxu0 %v6351
    %6481 = vmatprep.subr.bf16.mxu0 %v6354
    %6482 = vmatpush1.bf16.msra.mxu0 %v6353
    %6483 = vmatprep.subr.bf16.mxu0 %v6356
    %6484 = vmatpush1.bf16.msra.mxu0 %v6355
    %6485 = vmatprep.subr.bf16.mxu0 %v6358
    %6486 = vmatpush1.bf16.msra.mxu0 %v6357
    %6487 = vmatprep.subr.bf16.mxu0 %v6360
    %6488 = vmatpush1.bf16.msra.mxu0 %v6359
    %6489 = vmatprep.subr.bf16.mxu0 %v6362
    %6490 = vmatpush1.bf16.msra.mxu0 %v6361
    %6491 = vmatprep.subr.bf16.mxu0 %v6364
    %6492 = vmatpush1.bf16.msra.mxu0 %v6363
    %6493 = vmatprep.subr.bf16.mxu0 %v6366
    %6494 = vmatpush1.bf16.msra.mxu0 %v6365
    %6495 = vmatprep.subr.bf16.mxu0 %v6368
    %6496 = vmatpush1.bf16.msra.mxu0 %v6367
    %6497 = vmatprep.subr.bf16.mxu0 %v6370
    %6498 = vmatpush1.bf16.msra.mxu0 %v6369
    %6499 = vmatprep.subr.bf16.mxu0 %v6372
    %6500 = vmatpush1.bf16.msra.mxu0 %v6371
    %6501 = vmatprep.subr.bf16.mxu0 %v6374
    %6502 = vmatpush1.bf16.msra.mxu0 %v6373
    %6503 = vmatprep.subr.bf16.mxu0 %v6376
    %6504 = vmatpush1.bf16.msra.mxu0 %v6375
    %6505 = vmatprep.subr.bf16.mxu0 %v6378
    %6506 = vmatpush1.bf16.msra.mxu0 %v6377
    %6507 = vmatprep.subr.bf16.mxu0 %v6380
    %6508 = vmatpush1.bf16.msra.mxu0 %v6379
    %6509 = vmatprep.subr.bf16.mxu0 %v6382
    %6510 = vmatpush1.bf16.msra.mxu0 %v6381
    %6511 = vmatprep.mubr.bf16.mxu0 %v6080
    %6512 = vmatmul.mubr.bf16.gmra.mrb[0].mxu0 %v6079
    %v6513 = vpop.f32.mrb[0].mxu0
    %v6514 = vadd.f32 %v6152, %v6513
    %v6515 = vpop.f32.mrb[0].mxu0
    %v6516 = vadd.f32 %v6156, %v6515
    %v6517 = vpop.f32.mrb[0].mxu0
    %v6518 = vpop.f32.mrb[0].mxu0
    %6519 = vdwg.mxu0
    %6520 = vmatprep.subr.bf16.mxu0 %v6384
    %6521 = vmatpush1.bf16.msra.mxu0 %v6383
    %6522 = vmatprep.subr.bf16.mxu0 %v6386
    %6523 = vmatpush1.bf16.msra.mxu0 %v6385
    %6524 = vmatprep.subr.bf16.mxu0 %v6388
    %6525 = vmatpush1.bf16.msra.mxu0 %v6387
    %6526 = vmatprep.subr.bf16.mxu0 %v6390
    %6527 = vmatpush1.bf16.msra.mxu0 %v6389
    %6528 = vmatprep.subr.bf16.mxu0 %v6392
    %6529 = vmatpush1.bf16.msra.mxu0 %v6391
    %6530 = vmatprep.subr.bf16.mxu0 %v6394
    %6531 = vmatpush1.bf16.msra.mxu0 %v6393
    %6532 = vmatprep.subr.bf16.mxu0 %v6396
    %6533 = vmatpush1.bf16.msra.mxu0 %v6395
    %6534 = vmatprep.subr.bf16.mxu0 %v6398
    %6535 = vmatpush1.bf16.msra.mxu0 %v6397
    %6536 = vmatprep.subr.bf16.mxu0 %v6400
    %6537 = vmatpush1.bf16.msra.mxu0 %v6399
    %6538 = vmatprep.subr.bf16.mxu0 %v6402
    %6539 = vmatpush1.bf16.msra.mxu0 %v6401
    %6540 = vmatprep.subr.bf16.mxu0 %v6404
    %6541 = vmatpush1.bf16.msra.mxu0 %v6403
    %6542 = vmatprep.subr.bf16.mxu0 %v6406
    %6543 = vmatpush1.bf16.msra.mxu0 %v6405
    %6544 = vmatprep.subr.bf16.mxu0 %v6408
    %6545 = vmatpush1.bf16.msra.mxu0 %v6407
    %6546 = vmatprep.subr.bf16.mxu0 %v6410
    %6547 = vmatpush1.bf16.msra.mxu0 %v6409
    %6548 = vmatprep.subr.bf16.mxu0 %v6412
    %6549 = vmatpush1.bf16.msra.mxu0 %v6411
    %6550 = vmatprep.subr.bf16.mxu0 %v6414
    %6551 = vmatpush1.bf16.msra.mxu0 %v6413
    %6552 = vmatprep.mubr.bf16.mxu0 %v6082
    %6553 = vmatmul.mubr.bf16.gmra.mrb[0].mxu0 %v6081
    %v6554 = vpop.f32.mrb[0].mxu0
    %v6555 = vadd.f32 %v6514, %v6554
    %v6556 = vpop.f32.mrb[0].mxu0
    %v6557 = vadd.f32 %v6516, %v6556
    %v6558 = vpop.f32.mrb[0].mxu0
    %v6559 = vpop.f32.mrb[0].mxu0
    %6560 = vdwg.mxu0
    %v6561 = vmax.f32 %v6555, 0.0
    %v6562 = vmax.f32 %v6557, 0.0
    %v6563 = vpack.c.bf16 %v6561, %v6561
    %v6564 = vpack.c.bf16 %v6562, %v6562
    %v6565 = vld [vmem:[#allocation16] sm:$0xf]
    %v6566 = vld [vmem:[#allocation16 + $0x4] sm:$0xf]
    %v6567 = vld [vmem:[#allocation16 + $0x8] sm:$0xf]
    %v6568 = vld [vmem:[#allocation16 + $0xc] sm:$0xf]
    %v6569 = vld [vmem:[#allocation16 + $0x10] sm:$0xf]
    %v6570 = vld [vmem:[#allocation16 + $0x14] sm:$0xf]
    %v6571 = vld [vmem:[#allocation16 + $0x18] sm:$0xf]
    %v6572 = vld [vmem:[#allocation16 + $0x1c] sm:$0xf]
    %v6573 = vld [vmem:[#allocation16 + $0x20] sm:$0xf]
    %v6574 = vld [vmem:[#allocation16 + $0x24] sm:$0xf]
    %v6575 = vld [vmem:[#allocation16 + $0x28] sm:$0xf]
    %v6576 = vld [vmem:[#allocation16 + $0x2c] sm:$0xf]
    %v6577 = vld [vmem:[#allocation16 + $0x30] sm:$0xf]
    %v6578 = vld [vmem:[#allocation16 + $0x34] sm:$0xf]
    %v6579 = vld [vmem:[#allocation16 + $0x38] sm:$0xf]
    %v6580 = vld [vmem:[#allocation16 + $0x3c] sm:$0xf]
    %v6581 = vld [vmem:[#allocation16 + $0x40] sm:$0xf]
    %v6582 = vld [vmem:[#allocation16 + $0x44] sm:$0xf]
    %v6583 = vld [vmem:[#allocation16 + $0x48] sm:$0xf]
    %v6584 = vld [vmem:[#allocation16 + $0x4c] sm:$0xf]
    %v6585 = vld [vmem:[#allocation16 + $0x50] sm:$0xf]
    %v6586 = vld [vmem:[#allocation16 + $0x54] sm:$0xf]
    %v6587 = vld [vmem:[#allocation16 + $0x58] sm:$0xf]
    %v6588 = vld [vmem:[#allocation16 + $0x5c] sm:$0xf]
    %v6589 = vld [vmem:[#allocation16 + $0x60] sm:$0xf]
    %v6590 = vld [vmem:[#allocation16 + $0x64] sm:$0xf]
    %v6591 = vld [vmem:[#allocation16 + $0x68] sm:$0xf]
    %v6592 = vld [vmem:[#allocation16 + $0x6c] sm:$0xf]
    %v6593 = vld [vmem:[#allocation16 + $0x70] sm:$0xf]
    %v6594 = vld [vmem:[#allocation16 + $0x74] sm:$0xf]
    %v6595 = vld [vmem:[#allocation16 + $0x78] sm:$0xf]
    %v6596 = vld [vmem:[#allocation16 + $0x7c] sm:$0xf]
    %v6597 = vld [vmem:[%s18] sm:$0x1]
    %v6599 = vlaneseq
    %v6600 = vshrl.u32 %v6599, 7
    %v6601 = vsub.s32 0, %v6600
    %v6602 = vrot.slane %v6597, %v6601
    %v6636 = vunpack.c.l.b16 %v6565
    %v6637 = vunpack.c.l.b16 %v6566
    %v6638 = vunpack.c.l.b16 %v6567
    %v6639 = vunpack.c.l.b16 %v6568
    %v6640 = vunpack.c.l.b16 %v6569
    %v6641 = vunpack.c.l.b16 %v6570
    %v6642 = vunpack.c.l.b16 %v6571
    %v6643 = vunpack.c.l.b16 %v6572
    %v6644 = vunpack.c.l.b16 %v6573
    %v6645 = vunpack.c.l.b16 %v6574
    %v6646 = vunpack.c.l.b16 %v6575
    %v6647 = vunpack.c.l.b16 %v6576
    %v6648 = vunpack.c.l.b16 %v6577
    %v6649 = vunpack.c.l.b16 %v6578
    %v6650 = vunpack.c.l.b16 %v6579
    %v6651 = vunpack.c.l.b16 %v6580
    %v6652 = vunpack.c.l.b16 %v6581
    %v6653 = vunpack.c.l.b16 %v6582
    %v6654 = vunpack.c.l.b16 %v6583
    %v6655 = vunpack.c.l.b16 %v6584
    %v6656 = vunpack.c.l.b16 %v6585
    %v6657 = vunpack.c.l.b16 %v6586
    %v6658 = vunpack.c.l.b16 %v6587
    %v6659 = vunpack.c.l.b16 %v6588
    %v6660 = vunpack.c.l.b16 %v6589
    %v6661 = vunpack.c.l.b16 %v6590
    %v6662 = vunpack.c.l.b16 %v6591
    %v6663 = vunpack.c.l.b16 %v6592
    %v6664 = vunpack.c.l.b16 %v6593
    %v6665 = vunpack.c.l.b16 %v6594
    %v6666 = vunpack.c.l.b16 %v6595
    %v6667 = vunpack.c.l.b16 %v6596
    %v6668 = vpack.c.b16 %v6637, %v6636
    %v6669 = vpack.c.b16 %v6639, %v6638
    %v6670 = vpack.c.b16 %v6641, %v6640
    %v6671 = vpack.c.b16 %v6643, %v6642
    %v6672 = vpack.c.b16 %v6645, %v6644
    %v6673 = vpack.c.b16 %v6647, %v6646
    %v6674 = vpack.c.b16 %v6649, %v6648
    %v6675 = vpack.c.b16 %v6651, %v6650
    %v6676 = vpack.c.b16 %v6653, %v6652
    %v6677 = vpack.c.b16 %v6655, %v6654
    %v6678 = vpack.c.b16 %v6657, %v6656
    %v6679 = vpack.c.b16 %v6659, %v6658
    %v6680 = vpack.c.b16 %v6661, %v6660
    %v6681 = vpack.c.b16 %v6663, %v6662
    %v6682 = vpack.c.b16 %v6665, %v6664
    %v6683 = vpack.c.b16 %v6667, %v6666
    %6700 = vmatprep.subr.bf16.mxu0 0
    %6701 = vmatpush1.bf16.msra.mxu0 %v6668
    %6702 = vmatprep.subr.bf16.mxu0 0
    %6703 = vmatpush1.bf16.msra.mxu0 %v6669
    %6704 = vmatprep.subr.bf16.mxu0 0
    %6705 = vmatpush1.bf16.msra.mxu0 %v6670
    %6706 = vmatprep.subr.bf16.mxu0 0
    %6707 = vmatpush1.bf16.msra.mxu0 %v6671
    %6708 = vmatprep.subr.bf16.mxu0 0
    %6709 = vmatpush1.bf16.msra.mxu0 %v6672
    %6710 = vmatprep.subr.bf16.mxu0 0
    %6711 = vmatpush1.bf16.msra.mxu0 %v6673
    %6712 = vmatprep.subr.bf16.mxu0 0
    %6713 = vmatpush1.bf16.msra.mxu0 %v6674
    %6714 = vmatprep.subr.bf16.mxu0 0
    %6715 = vmatpush1.bf16.msra.mxu0 %v6675
    %6716 = vmatprep.subr.bf16.mxu0 0
    %6717 = vmatpush1.bf16.msra.mxu0 %v6676
    %6718 = vmatprep.subr.bf16.mxu0 0
    %6719 = vmatpush1.bf16.msra.mxu0 %v6677
    %6720 = vmatprep.subr.bf16.mxu0 0
    %6721 = vmatpush1.bf16.msra.mxu0 %v6678
    %6722 = vmatprep.subr.bf16.mxu0 0
    %6723 = vmatpush1.bf16.msra.mxu0 %v6679
    %6724 = vmatprep.subr.bf16.mxu0 0
    %6725 = vmatpush1.bf16.msra.mxu0 %v6680
    %6726 = vmatprep.subr.bf16.mxu0 0
    %6727 = vmatpush1.bf16.msra.mxu0 %v6681
    %6728 = vmatprep.subr.bf16.mxu0 0
    %6729 = vmatpush1.bf16.msra.mxu0 %v6682
    %6730 = vmatprep.subr.bf16.mxu0 0
    %6731 = vmatpush1.bf16.msra.mxu0 %v6683
    %6732 = vmatprep.mubr.bf16.mxu0 %v6564
    %6733 = vmatmul.mubr.bf16.gmra.mrb[0].mxu0 %v6563
    %v6734 = vpop.f32.mrb[0].mxu0
    %v6735 = vadd.f32 %v6602, %v6734
    %v6736 = vpop.f32.mrb[0].mxu0
    %v6737 = vpop.f32.mrb[0].mxu0
    %v6738 = vpop.f32.mrb[0].mxu0
    %6739 = vdwg.mxu0
    %6740 = vst [vmem:[#allocation17] sm:$0xff] %v6735
    // Predicated region
    $region114: #{tpu_custom_call.1} parent=1 // pred_check
      _
    $region115: #{tpu_custom_call.1} parent=1 // pred_check_branch
      %6742 = sbr.rel (0) target = $region117
    $region116: #{tpu_custom_call.1} parent=1 // pred_region
      %s6744 = ssub.s32 128, 128
      %6745 = vsyncadd [#allocation4], %s6744
      %s6747 = sshll.u32 [#allocation17], 4
      %s6748 = int_to_ptr.vmem [resolvable:$true] %s6747
      %6750 = dma.vmem_to_hbm [thread:$0]  %s6748, 128, %s19, [#allocation4]
    $region117: #{tpu_custom_call.1} parent=1 // pred_fallthru
      _
    // Predicated region
    $region118: #{tpu_custom_call.1} parent=1 // pred_check
      _
    $region119: #{tpu_custom_call.1} parent=1 // pred_check_branch
      %6752 = sbr.rel (0) target = $region121
    $region120: #{tpu_custom_call.1} parent=1 // pred_region
      %6753 = dma.done [#allocation4], 128
    $region121: #{tpu_custom_call.1} parent=1 // pred_fallthru
      _
    %6754 = vsyncpa [#allocation3], 1
    %6755 = vsyncpa [#allocation6], 1
    %6756 = vsyncpa [#allocation9], 1
    %6757 = vsyncpa [#allocation12], 1
    %6758 = vsyncpa [#allocation15], 1
    %6759 = vsyncpa [#allocation4], 1

</llo_original>
